<compile_context>
chip_gen: v7x
topology: tpu7x:2x2x1
jax: 0.10.0
libtpu: 0.0.40
codegen_flags: <defaults>
</compile_context>

<pallas_src>
import functools

import jax
import jax.numpy as jnp
from jax import lax
from jax.experimental import pallas as pl
from jax.experimental.pallas import tpu as pltpu


# -----------------------------------------------------------------------------
# Fused kernel: embed -> [router + experts + sparse combine] * n_blocks -> head
# -----------------------------------------------------------------------------
def _moe_sparse_kernel(x_ref, we_ref, be_ref, wr_ref, w1_ref, w2bd_ref,
                       wo_ref, bo_ref, o_ref, yall_ref,
                       *, n_blocks, num_experts, k, d_expert, d_block):
    E, H, D = num_experts, d_expert, d_block
    cdt = w1_ref.dtype                       # bf16 dtype for expert matmuls
    NEG = jnp.float32(-1e30)                 # real logits are O(1) << 1e30

    # ---- embed: Linear(d_in -> d_block), f32 so routing stays exact ----------
    h = jnp.dot(x_ref[...], we_ref[...],
                preferred_element_type=jnp.float32) + be_ref[...]
    tb = h.shape[0]
    col = lax.broadcasted_iota(jnp.int32, (tb, E), 1)        # int32 lane ids

    def block_body(i, h):
        # -- router: logits = h @ Wr[i].T (contract last axes, no transpose) --
        logits = lax.dot_general(h, wr_ref[i], (((1,), (1,)), ((), ())),
                                 preferred_element_type=jnp.float32)  # (tb, E)

        # -- exact top-k (first-index tie-break) + softmax on the top-k set ---
        work = logits
        on = jnp.zeros((tb, E), jnp.bool_)
        for _ in range(k):                                   # k is small/static
            row_max = jnp.max(work, axis=-1, keepdims=True)
            cand = jnp.where(work == row_max, col, E)
            first = jnp.min(cand, axis=-1, keepdims=True)
            sel = col == first
            on = jnp.logical_or(on, sel)
            work = jnp.where(sel, NEG, work)
        masked = jnp.where(on, logits, NEG)
        m = jnp.max(masked, axis=-1, keepdims=True)
        ex = jnp.where(on, jnp.exp(masked - m), 0.0)
        denom = jnp.sum(ex, axis=-1, keepdims=True)
        gate = ex * pl.reciprocal(denom, approx=True)        # (tb, E), 0 off top-k

        # -- expert layer 1: all experts, one lane-dense bf16 matmul ----------
        h1 = jnp.dot(h.astype(cdt), w1_ref[i],
                     preferred_element_type=jnp.float32)     # (tb, E*H)
        hf = jnp.maximum(h1, 0.0).astype(cdt)                # ReLU, stays in vregs

        # -- expert layer 2: ONE block-diagonal matmul (K=E*H, N=E*D) ---------
        yall_ref[...] = jnp.maximum(
            jnp.dot(hf, w2bd_ref[i], preferred_element_type=jnp.float32), 0.0)

        # -- top-k sparse combine: gate columns are exactly zero off top-k ----
        acc = jnp.zeros_like(h)
        for e in range(E):                                   # lane-aligned slices
            acc = acc + gate[:, e:e + 1] * yall_ref[:, e * D:(e + 1) * D]
        return acc

    h = lax.fori_loop(0, n_blocks, block_body, h)

    # ---- output head: Linear(d_block -> d_out) -------------------------------
    o_ref[...] = (jnp.dot(h, wo_ref[...], preferred_element_type=jnp.float32)
                  + bo_ref[...]).astype(o_ref.dtype)


# -----------------------------------------------------------------------------
# pallas_call wrapper
# -----------------------------------------------------------------------------
def moe_sparse_forward(x, params, *, n_blocks, num_experts, k, d_expert,
                       d_block, row_tile=128):
    B, d_in = x.shape
    d_out = params["out_w"].shape[1]
    row_tile = min(row_tile, B)              # tiny batches: one grid step
    assert B % row_tile == 0 and row_tile % 8 == 0

    weights = (params["embed_w"], params["embed_b"], params["route_w"],
               params["w1_flat"], params["w2_bd"],
               params["out_w"], params["out_b"])

    def resident(a):  # full-array block, constant index -> stays in VMEM
        return pl.BlockSpec(a.shape, lambda i, _nd=a.ndim: (0,) * _nd)

    kernel = functools.partial(_moe_sparse_kernel, n_blocks=n_blocks,
                               num_experts=num_experts, k=k,
                               d_expert=d_expert, d_block=d_block)
    return pl.pallas_call(
        kernel,
        out_shape=jax.ShapeDtypeStruct((B, d_out), jnp.float32),
        grid=(B // row_tile,),
        in_specs=[pl.BlockSpec((row_tile, d_in), lambda i: (i, 0))]
                 + [resident(a) for a in weights],
        out_specs=pl.BlockSpec((row_tile, d_out), lambda i: (i, 0)),
        scratch_shapes=[pltpu.VMEM((row_tile, num_experts * d_block),
                                   jnp.float32)],          # fused layer-2 slab
        compiler_params=pltpu.CompilerParams(
            dimension_semantics=("parallel",)),  # v7x: grid steps split across TCs
    )(x, *weights)


# -----------------------------------------------------------------------------
# Parameter init (init_rsqrt_uniform_) + kernel-layout prep (done once, offline)
# -----------------------------------------------------------------------------
def init_params(key, *, d_in, d_block, n_blocks, d_out, num_experts, moe_ratio):
    E, D = num_experts, d_block
    H = int(d_block * moe_ratio)
    ks = jax.random.split(key, 7)

    def ru(k_, shape, fan_in):                      # init_rsqrt_uniform_
        b = fan_in ** -0.5
        return jax.random.uniform(k_, shape, jnp.float32, -b, b)

    embed_w = ru(ks[0], (d_in, d_block), d_in)
    embed_b = ru(ks[1], (1, d_block), d_in)
    route_w = ru(ks[2], (n_blocks, E, d_block), d_block)      # no bias
    w1 = ru(ks[3], (n_blocks, E, d_block, H), H)              # weights1
    w2 = ru(ks[4], (n_blocks, E, H, d_block), d_block)        # weights2
    out_w = ru(ks[5], (d_block, d_out), d_block)
    out_b = ru(ks[6], (1, d_out), d_block)

    # weights1 (E, d_block, H) -> (d_block, E*H): one lane-dense layer-1 matmul.
    w1_flat = jnp.transpose(w1, (0, 2, 1, 3)).reshape(
        n_blocks, d_block, E * H).astype(jnp.bfloat16)

    # weights2 -> block-diagonal (E*H, E*D): one fused layer-2 matmul per block.
    w2_bf = w2.astype(jnp.bfloat16)
    w2_bd = jnp.zeros((n_blocks, E * H, E * D), jnp.bfloat16)
    for e in range(E):
        w2_bd = w2_bd.at[:, e * H:(e + 1) * H, e * D:(e + 1) * D].set(w2_bf[:, e])

    return {"embed_w": embed_w, "embed_b": embed_b, "route_w": route_w,
            "w1_flat": w1_flat, "w2_stack": w2_bf, "w2_bd": w2_bd,
            "out_w": out_w, "out_b": out_b}


# -----------------------------------------------------------------------------
# Pure-JAX reference (topk + softmax + scatter + gather + einsum semantics,
# mirroring the kernel's bf16 cast points) for an in-script correctness check.
# -----------------------------------------------------------------------------
def reference_forward(x, params, *, n_blocks, num_experts, k, d_expert):
    E, H = num_experts, d_expert
    hp = lax.Precision.HIGHEST
    f32, bf16 = jnp.float32, jnp.bfloat16

    h = jnp.dot(x, params["embed_w"], precision=hp) + params["embed_b"]
    for i in range(n_blocks):
        logits = jnp.dot(h, params["route_w"][i].T, precision=hp)      # (B, E)
        top_vals, top_idx = lax.top_k(logits, k)
        top_w = jax.nn.softmax(top_vals, axis=-1)
        full_w = jnp.zeros_like(logits).at[
            jnp.arange(h.shape[0])[:, None], top_idx].set(top_w)       # scatter_
        w1 = params["w1_flat"][i].astype(f32)
        h1 = jnp.dot(h.astype(bf16).astype(f32), w1, precision=hp)
        hf = jnp.maximum(h1, 0.0).astype(bf16).astype(f32)
        acc = jnp.zeros_like(h)
        for e in range(E):
            w2 = params["w2_stack"][i, e].astype(f32)
            ye = jnp.maximum(
                jnp.dot(hf[:, e * H:(e + 1) * H], w2, precision=hp), 0.0)
            acc = acc + full_w[:, e:e + 1] * ye          # gather + 'bkd,bk->bd'
        h = acc
    return jnp.dot(h, params["out_w"], precision=hp) + params["out_b"]


if __name__ == "__main__":
    # Module defaults: activation=ReLU, moe_ratio=0.25, k=4.  B=256 so that
    # row_tile=128 gives grid=(2,) (both v7x TensorCores get work).
    B = 256
    d_in, d_block, d_out = 32, 128, 16
    n_blocks, num_experts, k, moe_ratio = 2, 8, 4, 0.25
    d_expert = int(d_block * moe_ratio)            # 32

    key = jax.random.PRNGKey(0)
    kx, kp = jax.random.split(key)
    x = jax.random.normal(kx, (B, d_in), jnp.float32)
    params = init_params(kp, d_in=d_in, d_block=d_block, n_blocks=n_blocks,
                         d_out=d_out, num_experts=num_experts,
                         moe_ratio=moe_ratio)

    fwd = jax.jit(functools.partial(
        moe_sparse_forward, n_blocks=n_blocks, num_experts=num_experts,
        k=k, d_expert=d_expert, d_block=d_block))
    out = jax.block_until_ready(fwd(x, params))
    assert out.shape == (B, d_out), out.shape

    ref = reference_forward(x, params, n_blocks=n_blocks,
                            num_experts=num_experts, k=k, d_expert=d_expert)
    err = float(jnp.max(jnp.abs(out - ref)))
    # pl.reciprocal(approx=True) perturbs gates by ~1e-3 relative; everything
    # else matches the reference's cast points.
    assert err < 3e-2, f"max |kernel - reference| = {err}"
    print("KERNEL_OK")
</pallas_src>

<mosaic_0001>
module attributes {stable_mosaic.version = 11 : i64} {
  func.func @_moe_sparse_kernel(%arg0: i32, %arg1: memref<128x32xf32, #tpu.memory_space<vmem>>, %arg2: memref<32x128xf32, #tpu.memory_space<vmem>>, %arg3: memref<1x128xf32, #tpu.memory_space<vmem>>, %arg4: memref<2x8x128xf32, #tpu.memory_space<vmem>>, %arg5: memref<2x128x256xbf16, #tpu.memory_space<vmem>>, %arg6: memref<2x256x1024xbf16, #tpu.memory_space<vmem>>, %arg7: memref<128x16xf32, #tpu.memory_space<vmem>>, %arg8: memref<1x16xf32, #tpu.memory_space<vmem>>, %arg9: memref<128x16xf32, #tpu.memory_space<vmem>>, %arg10: memref<128x1024xf32, #tpu.memory_space<vmem>>) attributes {dimension_semantics = [#tpu.dimension_semantics<parallel>], iteration_bounds = array<i64: 2>, scalar_prefetch = 0 : i64, scratch_operands = 1 : i64, tpu.core_type = #tpu.core_type<tc>, window_params = [{transform_indices = @transform_0, window_bounds = array<i64: 128, 32>}, {pipeline_mode = #tpu.pipeline_mode<synchronous>, transform_indices = @transform_1, window_bounds = array<i64: 32, 128>}, {pipeline_mode = #tpu.pipeline_mode<synchronous>, transform_indices = @transform_2, window_bounds = array<i64: 1, 128>}, {pipeline_mode = #tpu.pipeline_mode<synchronous>, transform_indices = @transform_3, window_bounds = array<i64: 2, 8, 128>}, {pipeline_mode = #tpu.pipeline_mode<synchronous>, transform_indices = @transform_4, window_bounds = array<i64: 2, 128, 256>}, {pipeline_mode = #tpu.pipeline_mode<synchronous>, transform_indices = @transform_5, window_bounds = array<i64: 2, 256, 1024>}, {pipeline_mode = #tpu.pipeline_mode<synchronous>, transform_indices = @transform_6, window_bounds = array<i64: 128, 16>}, {pipeline_mode = #tpu.pipeline_mode<synchronous>, transform_indices = @transform_7, window_bounds = array<i64: 1, 16>}, {transform_indices = @transform_8, window_bounds = array<i64: 128, 16>}]} {
    %c0 = arith.constant 0 : index
    %c0_0 = arith.constant 0 : index
    %0 = vector.load %arg1[%c0, %c0_0] : memref<128x32xf32, #tpu.memory_space<vmem>>, vector<128x32xf32>
    %c0_1 = arith.constant 0 : index
    %c0_2 = arith.constant 0 : index
    %1 = vector.load %arg2[%c0_1, %c0_2] : memref<32x128xf32, #tpu.memory_space<vmem>>, vector<32x128xf32>
    %cst = arith.constant dense<0.000000e+00> : vector<128x128xf32>
    %2 = tpu.matmul %0, %1, %cst {dimension_numbers = #tpu.dot_dimension_numbers<[1], [0], [0], [1], [0, 0, 1, 1], [], []>} : vector<128x32xf32>, vector<32x128xf32>, vector<128x128xf32> -> vector<128x128xf32>
    %c0_3 = arith.constant 0 : index
    %c0_4 = arith.constant 0 : index
    %3 = vector.load %arg3[%c0_3, %c0_4] : memref<1x128xf32, #tpu.memory_space<vmem>>, vector<1x128xf32>
    %4 = vector.broadcast %3 : vector<1x128xf32> to vector<128x128xf32>
    %5 = arith.addf %2, %4 : vector<128x128xf32>
    %6 = tpu.iota {dimensions = array<i32: 1>} : vector<128x8xi32>
    %cst_5 = arith.constant -1.000000e+30 : f32
    %c0_i32 = arith.constant 0 : i32
    %c2_i32 = arith.constant 2 : i32
    %7 = arith.addi %c0_i32, %c2_i32 : i32
    %c1_i32 = arith.constant 1 : i32
    %8 = scf.for %arg11 = %c0_i32 to %7 step %c1_i32 iter_args(%arg12 = %5) -> (vector<128x128xf32>)  : i32 {
      %15 = arith.index_cast %arg11 : i32 to index
      %c0_14 = arith.constant 0 : index
      %c0_15 = arith.constant 0 : index
      %16 = vector.load %arg4[%15, %c0_14, %c0_15] : memref<2x8x128xf32, #tpu.memory_space<vmem>>, vector<1x8x128xf32>
      %17 = vector.shape_cast %16 : vector<1x8x128xf32> to vector<8x128xf32>
      %cst_16 = arith.constant dense<0.000000e+00> : vector<128x8xf32>
      %18 = tpu.matmul %arg12, %17, %cst_16 {dimension_numbers = #tpu.dot_dimension_numbers<[1], [1], [0], [0], [0, 0, 1, 0], [], []>} : vector<128x128xf32>, vector<8x128xf32>, vector<128x8xf32> -> vector<128x8xf32>
      %false = arith.constant false
      %19 = vector.broadcast %false : i1 to vector<128x8xi1>
      %cst_17 = arith.constant dense<0xFF800000> : vector<128xf32>
      %20 = vector.multi_reduction <maximumf>, %18, %cst_17 [1] : vector<128x8xf32> to vector<128xf32>
      %21 = vector.shape_cast %20 : vector<128xf32> to vector<128x1xf32>
      %22 = vector.broadcast %21 : vector<128x1xf32> to vector<128x8xf32>
      %23 = arith.cmpf oeq, %18, %22 : vector<128x8xf32>
      %c8_i32 = arith.constant 8 : i32
      %24 = vector.broadcast %c8_i32 : i32 to vector<128x8xi32>
      %25 = arith.select %23, %6, %24 : vector<128x8xi1>, vector<128x8xi32>
      %cst_18 = arith.constant dense<2147483647> : vector<128xi32>
      %26 = vector.multi_reduction <minsi>, %25, %cst_18 [1] : vector<128x8xi32> to vector<128xi32>
      %27 = vector.shape_cast %26 : vector<128xi32> to vector<128x1xi32>
      %28 = vector.broadcast %27 : vector<128x1xi32> to vector<128x8xi32>
      %29 = arith.cmpi eq, %6, %28 : vector<128x8xi32>
      %30 = arith.ori %19, %29 : vector<128x8xi1>
      %31 = vector.broadcast %cst_5 : f32 to vector<128x8xf32>
      %32 = arith.select %29, %31, %18 : vector<128x8xi1>, vector<128x8xf32>
      %cst_19 = arith.constant dense<0xFF800000> : vector<128xf32>
      %33 = vector.multi_reduction <maximumf>, %32, %cst_19 [1] : vector<128x8xf32> to vector<128xf32>
      %34 = vector.shape_cast %33 : vector<128xf32> to vector<128x1xf32>
      %35 = vector.broadcast %34 : vector<128x1xf32> to vector<128x8xf32>
      %36 = arith.cmpf oeq, %32, %35 : vector<128x8xf32>
      %c8_i32_20 = arith.constant 8 : i32
      %37 = vector.broadcast %c8_i32_20 : i32 to vector<128x8xi32>
      %38 = arith.select %36, %6, %37 : vector<128x8xi1>, vector<128x8xi32>
      %cst_21 = arith.constant dense<2147483647> : vector<128xi32>
      %39 = vector.multi_reduction <minsi>, %38, %cst_21 [1] : vector<128x8xi32> to vector<128xi32>
      %40 = vector.shape_cast %39 : vector<128xi32> to vector<128x1xi32>
      %41 = vector.broadcast %40 : vector<128x1xi32> to vector<128x8xi32>
      %42 = arith.cmpi eq, %6, %41 : vector<128x8xi32>
      %43 = arith.ori %30, %42 : vector<128x8xi1>
      %44 = vector.broadcast %cst_5 : f32 to vector<128x8xf32>
      %45 = arith.select %42, %44, %32 : vector<128x8xi1>, vector<128x8xf32>
      %cst_22 = arith.constant dense<0xFF800000> : vector<128xf32>
      %46 = vector.multi_reduction <maximumf>, %45, %cst_22 [1] : vector<128x8xf32> to vector<128xf32>
      %47 = vector.shape_cast %46 : vector<128xf32> to vector<128x1xf32>
      %48 = vector.broadcast %47 : vector<128x1xf32> to vector<128x8xf32>
      %49 = arith.cmpf oeq, %45, %48 : vector<128x8xf32>
      %c8_i32_23 = arith.constant 8 : i32
      %50 = vector.broadcast %c8_i32_23 : i32 to vector<128x8xi32>
      %51 = arith.select %49, %6, %50 : vector<128x8xi1>, vector<128x8xi32>
      %cst_24 = arith.constant dense<2147483647> : vector<128xi32>
      %52 = vector.multi_reduction <minsi>, %51, %cst_24 [1] : vector<128x8xi32> to vector<128xi32>
      %53 = vector.shape_cast %52 : vector<128xi32> to vector<128x1xi32>
      %54 = vector.broadcast %53 : vector<128x1xi32> to vector<128x8xi32>
      %55 = arith.cmpi eq, %6, %54 : vector<128x8xi32>
      %56 = arith.ori %43, %55 : vector<128x8xi1>
      %57 = vector.broadcast %cst_5 : f32 to vector<128x8xf32>
      %58 = arith.select %55, %57, %45 : vector<128x8xi1>, vector<128x8xf32>
      %cst_25 = arith.constant dense<0xFF800000> : vector<128xf32>
      %59 = vector.multi_reduction <maximumf>, %58, %cst_25 [1] : vector<128x8xf32> to vector<128xf32>
      %60 = vector.shape_cast %59 : vector<128xf32> to vector<128x1xf32>
      %61 = vector.broadcast %60 : vector<128x1xf32> to vector<128x8xf32>
      %62 = arith.cmpf oeq, %58, %61 : vector<128x8xf32>
      %c8_i32_26 = arith.constant 8 : i32
      %63 = vector.broadcast %c8_i32_26 : i32 to vector<128x8xi32>
      %64 = arith.select %62, %6, %63 : vector<128x8xi1>, vector<128x8xi32>
      %cst_27 = arith.constant dense<2147483647> : vector<128xi32>
      %65 = vector.multi_reduction <minsi>, %64, %cst_27 [1] : vector<128x8xi32> to vector<128xi32>
      %66 = vector.shape_cast %65 : vector<128xi32> to vector<128x1xi32>
      %67 = vector.broadcast %66 : vector<128x1xi32> to vector<128x8xi32>
      %68 = arith.cmpi eq, %6, %67 : vector<128x8xi32>
      %69 = arith.ori %56, %68 : vector<128x8xi1>
      %70 = vector.broadcast %cst_5 : f32 to vector<128x8xf32>
      %71 = arith.select %69, %18, %70 : vector<128x8xi1>, vector<128x8xf32>
      %cst_28 = arith.constant dense<0xFF800000> : vector<128xf32>
      %72 = vector.multi_reduction <maximumf>, %71, %cst_28 [1] : vector<128x8xf32> to vector<128xf32>
      %73 = vector.shape_cast %72 : vector<128xf32> to vector<128x1xf32>
      %74 = vector.broadcast %73 : vector<128x1xf32> to vector<128x8xf32>
      %75 = arith.subf %71, %74 : vector<128x8xf32>
      %76 = math.exp %75 : vector<128x8xf32>
      %cst_29 = arith.constant 0.000000e+00 : f32
      %77 = vector.broadcast %cst_29 : f32 to vector<128x8xf32>
      %78 = arith.select %69, %76, %77 : vector<128x8xi1>, vector<128x8xf32>
      %cst_30 = arith.constant dense<0.000000e+00> : vector<128xf32>
      %79 = vector.multi_reduction <add>, %78, %cst_30 [1] : vector<128x8xf32> to vector<128xf32>
      %80 = vector.shape_cast %79 : vector<128xf32> to vector<128x1xf32>
      %81 = tpu.reciprocal %80 {approx = true} : vector<128x1xf32> -> vector<128x1xf32>
      %82 = vector.broadcast %81 : vector<128x1xf32> to vector<128x8xf32>
      %83 = arith.mulf %78, %82 : vector<128x8xf32>
      %84 = arith.truncf %arg12 : vector<128x128xf32> to vector<128x128xbf16>
      %85 = arith.index_cast %arg11 : i32 to index
      %c0_31 = arith.constant 0 : index
      %c0_32 = arith.constant 0 : index
      %86 = vector.load %arg5[%85, %c0_31, %c0_32] : memref<2x128x256xbf16, #tpu.memory_space<vmem>>, vector<1x128x256xbf16>
      %87 = vector.shape_cast %86 : vector<1x128x256xbf16> to vector<128x256xbf16>
      %cst_33 = arith.constant dense<0.000000e+00> : vector<128x256xf32>
      %88 = tpu.matmul %84, %87, %cst_33 {dimension_numbers = #tpu.dot_dimension_numbers<[1], [0], [0], [1], [0, 0, 1, 1], [], []>} : vector<128x128xbf16>, vector<128x256xbf16>, vector<128x256xf32> -> vector<128x256xf32>
      %cst_34 = arith.constant 0.000000e+00 : f32
      %89 = vector.broadcast %cst_34 : f32 to vector<128x256xf32>
      %90 = arith.maximumf %88, %89 : vector<128x256xf32>
      %91 = arith.truncf %90 : vector<128x256xf32> to vector<128x256xbf16>
      %92 = arith.index_cast %arg11 : i32 to index
      %c0_35 = arith.constant 0 : index
      %c0_36 = arith.constant 0 : index
      %93 = vector.load %arg6[%92, %c0_35, %c0_36] : memref<2x256x1024xbf16, #tpu.memory_space<vmem>>, vector<1x256x1024xbf16>
      %94 = vector.shape_cast %93 : vector<1x256x1024xbf16> to vector<256x1024xbf16>
      %cst_37 = arith.constant dense<0.000000e+00> : vector<128x1024xf32>
      %95 = tpu.matmul %91, %94, %cst_37 {dimension_numbers = #tpu.dot_dimension_numbers<[1], [0], [0], [1], [0, 0, 1, 1], [], []>} : vector<128x256xbf16>, vector<256x1024xbf16>, vector<128x1024xf32> -> vector<128x1024xf32>
      %cst_38 = arith.constant 0.000000e+00 : f32
      %96 = vector.broadcast %cst_38 : f32 to vector<128x1024xf32>
      %97 = arith.maximumf %95, %96 : vector<128x1024xf32>
      %c0_39 = arith.constant 0 : index
      %c0_40 = arith.constant 0 : index
      %98 = vector.load %arg10[%c0_39, %c0_40] : memref<128x1024xf32, #tpu.memory_space<vmem>>, vector<128x1024xf32>
      tpu.vector_store %arg10[%c0_39, %c0_40], %97 {strides = array<i32>} : memref<128x1024xf32, #tpu.memory_space<vmem>>, vector<128x1024xf32>,
      %cst_41 = arith.constant 0.000000e+00 : f32
      %99 = vector.broadcast %cst_41 : f32 to vector<128x128xf32>
      %100 = vector.extract_strided_slice %83 {offsets = [0, 0], sizes = [128, 1], strides = [1, 1]} : vector<128x8xf32> to vector<128x1xf32>
      %c0_42 = arith.constant 0 : index
      %c0_43 = arith.constant 0 : index
      %101 = vector.load %arg10[%c0_42, %c0_43] : memref<128x1024xf32, #tpu.memory_space<vmem>>, vector<128x128xf32>
      %102 = vector.broadcast %100 : vector<128x1xf32> to vector<128x128xf32>
      %103 = arith.mulf %102, %101 : vector<128x128xf32>
      %104 = arith.addf %99, %103 : vector<128x128xf32>
      %105 = vector.extract_strided_slice %83 {offsets = [0, 1], sizes = [128, 1], strides = [1, 1]} : vector<128x8xf32> to vector<128x1xf32>
      %c0_44 = arith.constant 0 : index
      %c128 = arith.constant 128 : index
      %106 = vector.load %arg10[%c0_44, %c128] : memref<128x1024xf32, #tpu.memory_space<vmem>>, vector<128x128xf32>
      %107 = vector.broadcast %105 : vector<128x1xf32> to vector<128x128xf32>
      %108 = arith.mulf %107, %106 : vector<128x128xf32>
      %109 = arith.addf %104, %108 : vector<128x128xf32>
      %110 = vector.extract_strided_slice %83 {offsets = [0, 2], sizes = [128, 1], strides = [1, 1]} : vector<128x8xf32> to vector<128x1xf32>
      %c0_45 = arith.constant 0 : index
      %c256 = arith.constant 256 : index
      %111 = vector.load %arg10[%c0_45, %c256] : memref<128x1024xf32, #tpu.memory_space<vmem>>, vector<128x128xf32>
      %112 = vector.broadcast %110 : vector<128x1xf32> to vector<128x128xf32>
      %113 = arith.mulf %112, %111 : vector<128x128xf32>
      %114 = arith.addf %109, %113 : vector<128x128xf32>
      %115 = vector.extract_strided_slice %83 {offsets = [0, 3], sizes = [128, 1], strides = [1, 1]} : vector<128x8xf32> to vector<128x1xf32>
      %c0_46 = arith.constant 0 : index
      %c384 = arith.constant 384 : index
      %116 = vector.load %arg10[%c0_46, %c384] : memref<128x1024xf32, #tpu.memory_space<vmem>>, vector<128x128xf32>
      %117 = vector.broadcast %115 : vector<128x1xf32> to vector<128x128xf32>
      %118 = arith.mulf %117, %116 : vector<128x128xf32>
      %119 = arith.addf %114, %118 : vector<128x128xf32>
      %120 = vector.extract_strided_slice %83 {offsets = [0, 4], sizes = [128, 1], strides = [1, 1]} : vector<128x8xf32> to vector<128x1xf32>
      %c0_47 = arith.constant 0 : index
      %c512 = arith.constant 512 : index
      %121 = vector.load %arg10[%c0_47, %c512] : memref<128x1024xf32, #tpu.memory_space<vmem>>, vector<128x128xf32>
      %122 = vector.broadcast %120 : vector<128x1xf32> to vector<128x128xf32>
      %123 = arith.mulf %122, %121 : vector<128x128xf32>
      %124 = arith.addf %119, %123 : vector<128x128xf32>
      %125 = vector.extract_strided_slice %83 {offsets = [0, 5], sizes = [128, 1], strides = [1, 1]} : vector<128x8xf32> to vector<128x1xf32>
      %c0_48 = arith.constant 0 : index
      %c640 = arith.constant 640 : index
      %126 = vector.load %arg10[%c0_48, %c640] : memref<128x1024xf32, #tpu.memory_space<vmem>>, vector<128x128xf32>
      %127 = vector.broadcast %125 : vector<128x1xf32> to vector<128x128xf32>
      %128 = arith.mulf %127, %126 : vector<128x128xf32>
      %129 = arith.addf %124, %128 : vector<128x128xf32>
      %130 = vector.extract_strided_slice %83 {offsets = [0, 6], sizes = [128, 1], strides = [1, 1]} : vector<128x8xf32> to vector<128x1xf32>
      %c0_49 = arith.constant 0 : index
      %c768 = arith.constant 768 : index
      %131 = vector.load %arg10[%c0_49, %c768] : memref<128x1024xf32, #tpu.memory_space<vmem>>, vector<128x128xf32>
      %132 = vector.broadcast %130 : vector<128x1xf32> to vector<128x128xf32>
      %133 = arith.mulf %132, %131 : vector<128x128xf32>
      %134 = arith.addf %129, %133 : vector<128x128xf32>
      %135 = vector.extract_strided_slice %83 {offsets = [0, 7], sizes = [128, 1], strides = [1, 1]} : vector<128x8xf32> to vector<128x1xf32>
      %c0_50 = arith.constant 0 : index
      %c896 = arith.constant 896 : index
      %136 = vector.load %arg10[%c0_50, %c896] : memref<128x1024xf32, #tpu.memory_space<vmem>>, vector<128x128xf32>
      %137 = vector.broadcast %135 : vector<128x1xf32> to vector<128x128xf32>
      %138 = arith.mulf %137, %136 : vector<128x128xf32>
      %139 = arith.addf %134, %138 : vector<128x128xf32>
      scf.yield %139 : vector<128x128xf32>
    }
    %c2_i32_6 = arith.constant 2 : i32
    %c0_7 = arith.constant 0 : index
    %c0_8 = arith.constant 0 : index
    %9 = vector.load %arg7[%c0_7, %c0_8] : memref<128x16xf32, #tpu.memory_space<vmem>>, vector<128x16xf32>
    %cst_9 = arith.constant dense<0.000000e+00> : vector<128x16xf32>
    %10 = tpu.matmul %8, %9, %cst_9 {dimension_numbers = #tpu.dot_dimension_numbers<[1], [0], [0], [1], [0, 0, 1, 1], [], []>} : vector<128x128xf32>, vector<128x16xf32>, vector<128x16xf32> -> vector<128x16xf32>
    %c0_10 = arith.constant 0 : index
    %c0_11 = arith.constant 0 : index
    %11 = vector.load %arg8[%c0_10, %c0_11] : memref<1x16xf32, #tpu.memory_space<vmem>>, vector<1x16xf32>
    %12 = vector.broadcast %11 : vector<1x16xf32> to vector<128x16xf32>
    %13 = arith.addf %10, %12 : vector<128x16xf32>
    %c0_12 = arith.constant 0 : index
    %c0_13 = arith.constant 0 : index
    %14 = vector.load %arg9[%c0_12, %c0_13] : memref<128x16xf32, #tpu.memory_space<vmem>>, vector<128x16xf32>
    tpu.vector_store %arg9[%c0_12, %c0_13], %13 {strides = array<i32>} : memref<128x16xf32, #tpu.memory_space<vmem>>, vector<128x16xf32>,
    return
  }
  func.func @transform_0(%arg0: i32) -> (i32, i32) {
    %c0_i32 = arith.constant 0 : i32
    %c0_i32_0 = arith.constant 0 : i32
    return %arg0, %c0_i32 : i32, i32
  }
  func.func @transform_1(%arg0: i32) -> (i32, i32) {
    %c0_i32 = arith.constant 0 : i32
    %c0_i32_0 = arith.constant 0 : i32
    %c0_i32_1 = arith.constant 0 : i32
    return %c0_i32, %c0_i32_0 : i32, i32
  }
  func.func @transform_2(%arg0: i32) -> (i32, i32) {
    %c0_i32 = arith.constant 0 : i32
    %c0_i32_0 = arith.constant 0 : i32
    %c0_i32_1 = arith.constant 0 : i32
    return %c0_i32, %c0_i32_0 : i32, i32
  }
  func.func @transform_3(%arg0: i32) -> (i32, i32, i32) {
    %c0_i32 = arith.constant 0 : i32
    %c0_i32_0 = arith.constant 0 : i32
    %c0_i32_1 = arith.constant 0 : i32
    %c0_i32_2 = arith.constant 0 : i32
    return %c0_i32, %c0_i32_0, %c0_i32_1 : i32, i32, i32
  }
  func.func @transform_4(%arg0: i32) -> (i32, i32, i32) {
    %c0_i32 = arith.constant 0 : i32
    %c0_i32_0 = arith.constant 0 : i32
    %c0_i32_1 = arith.constant 0 : i32
    %c0_i32_2 = arith.constant 0 : i32
    return %c0_i32, %c0_i32_0, %c0_i32_1 : i32, i32, i32
  }
  func.func @transform_5(%arg0: i32) -> (i32, i32, i32) {
    %c0_i32 = arith.constant 0 : i32
    %c0_i32_0 = arith.constant 0 : i32
    %c0_i32_1 = arith.constant 0 : i32
    %c0_i32_2 = arith.constant 0 : i32
    return %c0_i32, %c0_i32_0, %c0_i32_1 : i32, i32, i32
  }
  func.func @transform_6(%arg0: i32) -> (i32, i32) {
    %c0_i32 = arith.constant 0 : i32
    %c0_i32_0 = arith.constant 0 : i32
    %c0_i32_1 = arith.constant 0 : i32
    return %c0_i32, %c0_i32_0 : i32, i32
  }
  func.func @transform_7(%arg0: i32) -> (i32, i32) {
    %c0_i32 = arith.constant 0 : i32
    %c0_i32_0 = arith.constant 0 : i32
    %c0_i32_1 = arith.constant 0 : i32
    return %c0_i32, %c0_i32_0 : i32, i32
  }
  func.func @transform_8(%arg0: i32) -> (i32, i32) {
    %c0_i32 = arith.constant 0 : i32
    %c0_i32_0 = arith.constant 0 : i32
    return %arg0, %c0_i32 : i32, i32
  }
}

</mosaic_0001>

<llo_original>
// kernel: moe_sparse_forward.1
$region0: #{moe_sparse_forward.1}
  #allocation0 [shape = 'u32[]', space=smem, size = 0x4, offset = 0x4, fixed_abs, tag = 'smem constant byte address 0x4 - core index']
  #allocation1 [shape = 'u32[144,128]{1,0:T(1,128)}', space=vmem, size = 0x12000, scoped, tag = 'internal scratch']
  #allocation2 [shape = 'f32[128,1024]{1,0:T(8,128)}', space=vmem, size = 0x80000, scoped, tag = 'scratch operand']
  %s0 = inlined_call_operand.vmem [shape: f32[256,32], index: 0, kind: input, shape index: {}]
  %s1 = inlined_call_operand.vmem [shape: f32[32,128], index: 1, kind: input, shape index: {}]
  %s2 = inlined_call_operand.vmem [shape: f32[1,128], index: 2, kind: input, shape index: {}]
  %s3 = inlined_call_operand.vmem [shape: f32[2,8,128], index: 3, kind: input, shape index: {}]
  %s4 = inlined_call_operand.vmem [shape: bf16[2,128,256], index: 4, kind: input, shape index: {}]
  %s5 = inlined_call_operand.hbm [shape: bf16[2,256,1024], index: 5, kind: input, shape index: {}]
  %s6 = inlined_call_operand.vmem [shape: f32[128,16], index: 6, kind: input, shape index: {}]
  %s7 = inlined_call_operand.vmem [shape: f32[1,16], index: 7, kind: input, shape index: {}]
  %s8 = inlined_call_operand.vmem [shape: f32[256,16], index: 8, kind: output, shape index: {}]
  %s9 = sld [smem:[#allocation0]]
  $region76: #{moe_sparse_forward.1} parent=0
    _
  %s11 = ssub.s32 1, %s9
  %s12 = scalar_select 0, %s11, %s9
  $region1: #{moe_sparse_forward.1} parent=0
    #allocation3 [shape = 'u8[1048576]{0}', space=vmem, size = 0x100000, scoped, tag = 'input window, operand 5, single buffered']
    #allocation4 [shape = 's32[2]{0}', space=sflag, size = 0x8, scoped, tag = 'scoped memory for moe_sparse_forward.1']
    %13 = vsyncpa [#allocation4], 0
    loop: start=0, step=1, limit=4
    $region2: #{moe_sparse_forward.1} parent=1 // loop_pre_header
      _
    $region3: #{moe_sparse_forward.1} parent=1 // loop_header
      %s15 = sphi 0, %s19
      %p16 = scmp.ge.s32.totalorder %s15, 4
      %s25 = sphi 0, %s27
      %s28 = sphi 0, %s25
      %s29 = sphi 0, %s28
      %s45 = sphi 0, %s29
      %s49 = sphi 0, %s49
      %s51 = sphi 0, %s49
      %s52 = sphi 0, %s51
      %s66 = sphi 0, %s52
      %s70 = sphi 0, %s70
      %s72 = sphi 0, %s70
      %s73 = sphi 0, %s72
      %s87 = sphi 0, %s73
      %s91 = sphi 0, %s91
      %s93 = sphi 0, %s91
      %s94 = sphi 0, %s93
      %s108 = sphi 0, %s94
      %s112 = sphi 0, %s112
      %s114 = sphi 0, %s112
      %s115 = sphi 0, %s114
      %s129 = sphi 0, %s115
      %s133 = sphi 0, %s133
      %s135 = sphi 0, %s133
      %s136 = sphi 0, %s135
      %s150 = sphi 0, %s136
      %s154 = sphi 0, %s154
      %s156 = sphi 0, %s154
      %s157 = sphi 0, %s156
      %s171 = sphi 0, %s157
      %s175 = sphi 0, %s175
      %s177 = sphi 0, %s175
      %s178 = sphi 0, %s177
      %s192 = sphi 0, %s178
      %s198 = sphi 0, %s200
      %s201 = sphi 0, %s198
      %s202 = sphi 0, %s201
      %s218 = sphi 0, %s202
    $region4: #{moe_sparse_forward.1} parent=1 // loop_header_branch
      %18 = sbr.rel (%p16) target = $region8
    $region5: #{moe_sparse_forward.1} parent=1 // loop_body
      %s20 = ssub.s32 %s15, 1
      %s21 = ssub.s32 %s15, 2
      %s22 = sadd.s32 %s15, 1
      %s23 = ssub.s32 %s15, %s22
      %p24 = scmp.eq.s32.totalorder %s23, 0
      %s26 = sadd.s32 %s25, 1
      %s27 = scalar_select %p24, %s25, %s26
      %p30 = pneg %p24
      %p31 = scmp.eq.s32.totalorder %s15, 1
      %p32 = por %p30, %p31
      %p33 = scmp.ne.s32.totalorder %s25, %s28
      %p34 = scmp.eq.s32.totalorder %s15, 0
      %p35 = por %p33, %p34
      %p36 = scmp.ne.s32.totalorder %s25, %s28
      %p37 = scmp.eq.s32.totalorder %s20, 1
      %p38 = por %p36, %p37
      %p39 = scmp.ne.s32.totalorder %s28, %s29
      %p40 = scmp.eq.s32.totalorder %s20, 0
      %p41 = por %p39, %p40
      %p42 = scmp.ne.s32.totalorder %s28, %s29
      %p43 = scmp.eq.s32.totalorder %s21, 1
      %p44 = por %p42, %p43
      %p46 = scmp.ne.s32.totalorder %s29, %s45
      %p47 = scmp.eq.s32.totalorder %s21, 0
      %p48 = por %p46, %p47
      %s50 = sadd.s32 %s49, 1
      %p53 = scmp.eq.s32.totalorder %s15, 1
      %p54 = scmp.ne.s32.totalorder %s49, %s51
      %p55 = scmp.eq.s32.totalorder %s15, 0
      %p56 = por %p54, %p55
      %p57 = scmp.ne.s32.totalorder %s49, %s51
      %p58 = scmp.eq.s32.totalorder %s20, 1
      %p59 = por %p57, %p58
      %p60 = scmp.ne.s32.totalorder %s51, %s52
      %p61 = scmp.eq.s32.totalorder %s20, 0
      %p62 = por %p60, %p61
      %p63 = scmp.ne.s32.totalorder %s51, %s52
      %p64 = scmp.eq.s32.totalorder %s21, 1
      %p65 = por %p63, %p64
      %p67 = scmp.ne.s32.totalorder %s52, %s66
      %p68 = scmp.eq.s32.totalorder %s21, 0
      %p69 = por %p67, %p68
      %s71 = sadd.s32 %s70, 1
      %p74 = scmp.eq.s32.totalorder %s15, 1
      %p75 = scmp.ne.s32.totalorder %s70, %s72
      %p76 = scmp.eq.s32.totalorder %s15, 0
      %p77 = por %p75, %p76
      %p78 = scmp.ne.s32.totalorder %s70, %s72
      %p79 = scmp.eq.s32.totalorder %s20, 1
      %p80 = por %p78, %p79
      %p81 = scmp.ne.s32.totalorder %s72, %s73
      %p82 = scmp.eq.s32.totalorder %s20, 0
      %p83 = por %p81, %p82
      %p84 = scmp.ne.s32.totalorder %s72, %s73
      %p85 = scmp.eq.s32.totalorder %s21, 1
      %p86 = por %p84, %p85
      %p88 = scmp.ne.s32.totalorder %s73, %s87
      %p89 = scmp.eq.s32.totalorder %s21, 0
      %p90 = por %p88, %p89
      %s92 = sadd.s32 %s91, 1
      %p95 = scmp.eq.s32.totalorder %s15, 1
      %p96 = scmp.ne.s32.totalorder %s91, %s93
      %p97 = scmp.eq.s32.totalorder %s15, 0
      %p98 = por %p96, %p97
      %p99 = scmp.ne.s32.totalorder %s91, %s93
      %p100 = scmp.eq.s32.totalorder %s20, 1
      %p101 = por %p99, %p100
      %p102 = scmp.ne.s32.totalorder %s93, %s94
      %p103 = scmp.eq.s32.totalorder %s20, 0
      %p104 = por %p102, %p103
      %p105 = scmp.ne.s32.totalorder %s93, %s94
      %p106 = scmp.eq.s32.totalorder %s21, 1
      %p107 = por %p105, %p106
      %p109 = scmp.ne.s32.totalorder %s94, %s108
      %p110 = scmp.eq.s32.totalorder %s21, 0
      %p111 = por %p109, %p110
      %s113 = sadd.s32 %s112, 1
      %p116 = scmp.eq.s32.totalorder %s15, 1
      %p117 = scmp.ne.s32.totalorder %s112, %s114
      %p118 = scmp.eq.s32.totalorder %s15, 0
      %p119 = por %p117, %p118
      %p120 = scmp.ne.s32.totalorder %s112, %s114
      %p121 = scmp.eq.s32.totalorder %s20, 1
      %p122 = por %p120, %p121
      %p123 = scmp.ne.s32.totalorder %s114, %s115
      %p124 = scmp.eq.s32.totalorder %s20, 0
      %p125 = por %p123, %p124
      %p126 = scmp.ne.s32.totalorder %s114, %s115
      %p127 = scmp.eq.s32.totalorder %s21, 1
      %p128 = por %p126, %p127
      %p130 = scmp.ne.s32.totalorder %s115, %s129
      %p131 = scmp.eq.s32.totalorder %s21, 0
      %p132 = por %p130, %p131
      %s134 = sadd.s32 %s133, 1
      %p137 = scmp.eq.s32.totalorder %s15, 1
      %p138 = scmp.ne.s32.totalorder %s133, %s135
      %p139 = scmp.eq.s32.totalorder %s15, 0
      %p140 = por %p138, %p139
      %p141 = scmp.ne.s32.totalorder %s133, %s135
      %p142 = scmp.eq.s32.totalorder %s20, 1
      %p143 = por %p141, %p142
      %p144 = scmp.ne.s32.totalorder %s135, %s136
      %p145 = scmp.eq.s32.totalorder %s20, 0
      %p146 = por %p144, %p145
      %p147 = scmp.ne.s32.totalorder %s135, %s136
      %p148 = scmp.eq.s32.totalorder %s21, 1
      %p149 = por %p147, %p148
      %p151 = scmp.ne.s32.totalorder %s136, %s150
      %p152 = scmp.eq.s32.totalorder %s21, 0
      %p153 = por %p151, %p152
      %s155 = sadd.s32 %s154, 1
      %p158 = scmp.eq.s32.totalorder %s15, 1
      %p159 = scmp.ne.s32.totalorder %s154, %s156
      %p160 = scmp.eq.s32.totalorder %s15, 0
      %p161 = por %p159, %p160
      %p162 = scmp.ne.s32.totalorder %s154, %s156
      %p163 = scmp.eq.s32.totalorder %s20, 1
      %p164 = por %p162, %p163
      %p165 = scmp.ne.s32.totalorder %s156, %s157
      %p166 = scmp.eq.s32.totalorder %s20, 0
      %p167 = por %p165, %p166
      %p168 = scmp.ne.s32.totalorder %s156, %s157
      %p169 = scmp.eq.s32.totalorder %s21, 1
      %p170 = por %p168, %p169
      %p172 = scmp.ne.s32.totalorder %s157, %s171
      %p173 = scmp.eq.s32.totalorder %s21, 0
      %p174 = por %p172, %p173
      %s176 = sadd.s32 %s175, 1
      %p179 = scmp.eq.s32.totalorder %s15, 1
      %p180 = scmp.ne.s32.totalorder %s175, %s177
      %p181 = scmp.eq.s32.totalorder %s15, 0
      %p182 = por %p180, %p181
      %p183 = scmp.ne.s32.totalorder %s175, %s177
      %p184 = scmp.eq.s32.totalorder %s20, 1
      %p185 = por %p183, %p184
      %p186 = scmp.ne.s32.totalorder %s177, %s178
      %p187 = scmp.eq.s32.totalorder %s20, 0
      %p188 = por %p186, %p187
      %p189 = scmp.ne.s32.totalorder %s177, %s178
      %p190 = scmp.eq.s32.totalorder %s21, 1
      %p191 = por %p189, %p190
      %p193 = scmp.ne.s32.totalorder %s178, %s192
      %p194 = scmp.eq.s32.totalorder %s21, 0
      %p195 = por %p193, %p194
      %s196 = ssub.s32 %s15, %s22
      %p197 = scmp.eq.s32.totalorder %s196, 0
      %s199 = sadd.s32 %s198, 1
      %s200 = scalar_select %p197, %s198, %s199
      %p203 = pneg %p197
      %p204 = scmp.eq.s32.totalorder %s15, 1
      %p205 = por %p203, %p204
      %p206 = scmp.ne.s32.totalorder %s198, %s201
      %p207 = scmp.eq.s32.totalorder %s15, 0
      %p208 = por %p206, %p207
      %p209 = scmp.ne.s32.totalorder %s198, %s201
      %p210 = scmp.eq.s32.totalorder %s20, 1
      %p211 = por %p209, %p210
      %p212 = scmp.ne.s32.totalorder %s201, %s202
      %p213 = scmp.eq.s32.totalorder %s20, 0
      %p214 = por %p212, %p213
      %p215 = scmp.ne.s32.totalorder %s201, %s202
      %p216 = scmp.eq.s32.totalorder %s21, 1
      %p217 = por %p215, %p216
      %p219 = scmp.ne.s32.totalorder %s202, %s218
      %p220 = scmp.eq.s32.totalorder %s21, 0
      %p221 = por %p219, %p220
      %p222 = scmp.le.s32.totalorder 1, %s15
      %p223 = scmp.lt.s32.totalorder %s15, 3
      %p224 = pnand %p222, %p223
      %p225 = pneg %p224
      // Predicated region
      $region9: #{moe_sparse_forward.1} parent=5 // pred_check
        _
      $region10: #{moe_sparse_forward.1} parent=5 // pred_check_branch
        %227 = sbr.rel (%p224) target = $region12
      $region11: #{moe_sparse_forward.1} parent=5 // pred_region
        %s228 = ssub.s32 %s15, 1
        // Predicated region
        $region13: #{moe_sparse_forward.1} parent=11 // pred_check
          %p229 = pneg %p62
        $region14: #{moe_sparse_forward.1} parent=11 // pred_check_branch
          %231 = sbr.rel (%p229) target = $region16
        $region15: #{moe_sparse_forward.1} parent=11 // pred_region
          _
        $region16: #{moe_sparse_forward.1} parent=11 // pred_fallthru
          _
        // Predicated region
        $region17: #{moe_sparse_forward.1} parent=11 // pred_check
          %p232 = pneg %p83
        $region18: #{moe_sparse_forward.1} parent=11 // pred_check_branch
          %234 = sbr.rel (%p232) target = $region20
        $region19: #{moe_sparse_forward.1} parent=11 // pred_region
          _
        $region20: #{moe_sparse_forward.1} parent=11 // pred_fallthru
          _
        // Predicated region
        $region21: #{moe_sparse_forward.1} parent=11 // pred_check
          %p235 = pneg %p104
        $region22: #{moe_sparse_forward.1} parent=11 // pred_check_branch
          %237 = sbr.rel (%p235) target = $region24
        $region23: #{moe_sparse_forward.1} parent=11 // pred_region
          _
        $region24: #{moe_sparse_forward.1} parent=11 // pred_fallthru
          _
        // Predicated region
        $region25: #{moe_sparse_forward.1} parent=11 // pred_check
          %p238 = pneg %p125
        $region26: #{moe_sparse_forward.1} parent=11 // pred_check_branch
          %240 = sbr.rel (%p238) target = $region28
        $region27: #{moe_sparse_forward.1} parent=11 // pred_region
          _
        $region28: #{moe_sparse_forward.1} parent=11 // pred_fallthru
          _
        // Predicated region
        $region29: #{moe_sparse_forward.1} parent=11 // pred_check
          %p241 = pneg %p146
        $region30: #{moe_sparse_forward.1} parent=11 // pred_check_branch
          %243 = sbr.rel (%p241) target = $region32
        $region31: #{moe_sparse_forward.1} parent=11 // pred_region
          %s245 = ssub.s32 32768, 32768
          %246 = vsyncadd [#allocation4], %s245
          %s247 = sshll.u32 [#allocation3], 4
          %s248 = int_to_ptr.vmem [resolvable:$true] %s247
          %253 = dma.hbm_to_vmem [thread:$0]  %s5, 32768, %s248, [#allocation4], 512, 512, 32
        $region32: #{moe_sparse_forward.1} parent=11 // pred_fallthru
          _
        // Predicated region
        $region33: #{moe_sparse_forward.1} parent=11 // pred_check
          %p254 = pneg %p167
        $region34: #{moe_sparse_forward.1} parent=11 // pred_check_branch
          %256 = sbr.rel (%p254) target = $region36
        $region35: #{moe_sparse_forward.1} parent=11 // pred_region
          _
        $region36: #{moe_sparse_forward.1} parent=11 // pred_fallthru
          _
        // Predicated region
        $region37: #{moe_sparse_forward.1} parent=11 // pred_check
          %p257 = pneg %p188
        $region38: #{moe_sparse_forward.1} parent=11 // pred_check_branch
          %259 = sbr.rel (%p257) target = $region40
        $region39: #{moe_sparse_forward.1} parent=11 // pred_region
          _
        $region40: #{moe_sparse_forward.1} parent=11 // pred_fallthru
          _
      $region12: #{moe_sparse_forward.1} parent=5 // pred_fallthru
        _
      %p260 = scmp.lt.s32.totalorder %s15, 2
      // Predicated region
      $region41: #{moe_sparse_forward.1} parent=5 // pred_check
        %p261 = pneg %p260
      $region42: #{moe_sparse_forward.1} parent=5 // pred_check_branch
        %263 = sbr.rel (%p261) target = $region44
      $region43: #{moe_sparse_forward.1} parent=5 // pred_region
        // Predicated region
        $region45: #{moe_sparse_forward.1} parent=43 // pred_check
          %p264 = pneg %p35
        $region46: #{moe_sparse_forward.1} parent=43 // pred_check_branch
          %266 = sbr.rel (%p264) target = $region48
        $region47: #{moe_sparse_forward.1} parent=43 // pred_region
          %s267 = smul.u32 16, %s15
          %p268 = scmp.lt.s32.totalorder %s267, 31
          %s269 = scalar_select %p268, %s267, 31
          %s270 = smul.addr %s269, 8
          %s271 = scalar_lea.vmem %s0, %s270
          %s272 = smul.u32 16, %s15
        $region48: #{moe_sparse_forward.1} parent=43 // pred_fallthru
          _
      $region44: #{moe_sparse_forward.1} parent=5 // pred_fallthru
        _
      %p273 = scmp.le.s32.totalorder 1, %s15
      %p274 = scmp.lt.s32.totalorder %s15, 3
      %p275 = pnand %p273, %p274
      %p276 = pneg %p275
      // Predicated region
      $region49: #{moe_sparse_forward.1} parent=5 // pred_check
        _
      $region50: #{moe_sparse_forward.1} parent=5 // pred_check_branch
        %278 = sbr.rel (%p275) target = $region52
      $region51: #{moe_sparse_forward.1} parent=5 // pred_region
        %s279 = ssub.s32 %s15, 1
        // Predicated region
        $region53: #{moe_sparse_forward.1} parent=51 // pred_check
          %p280 = pneg %p146
        $region54: #{moe_sparse_forward.1} parent=51 // pred_check_branch
          %282 = sbr.rel (%p280) target = $region56
        $region55: #{moe_sparse_forward.1} parent=51 // pred_region
          %283 = dma.done [#allocation4], 32768
        $region56: #{moe_sparse_forward.1} parent=51 // pred_fallthru
          _
        %s284 = smul.u32 16, %s20
        %p285 = scmp.lt.s32.totalorder %s284, 31
        %s286 = scalar_select %p285, %s284, 31
        %s287 = smul.addr %s286, 8
        %s288 = scalar_lea.vmem %s0, %s287
        %p289 = pneg %p41
        %p290 = pneg %p38
        %p291 = pneg %p62
        %p292 = pneg %p59
        %p293 = pneg %p83
        %p294 = pneg %p80
        %p295 = pneg %p104
        %p296 = pneg %p101
        %p297 = pneg %p125
        %p298 = pneg %p122
        %p299 = pneg %p146
        %p300 = pneg %p143
        %p301 = pneg %p167
        %p302 = pneg %p164
        %p303 = pneg %p188
        %p304 = pneg %p185
        %p305 = pneg %p214
        %p306 = pneg %p211
        %s307 = smul.u32 16, %s20
        %p308 = scmp.lt.s32.totalorder %s307, 31
        %s309 = scalar_select %p308, %s307, 31
        %s310 = smul.addr %s309, 8
        %s311 = scalar_lea.vmem %s8, %s310
        %s312 = smul.u32 16, %s20
        %p313 = scmp.lt.s32.totalorder %s312, 31
        %s314 = scalar_select %p313, %s312, 31
        %s315 = smul.addr %s314, 8
        %s316 = scalar_lea.vmem %s0, %s315
        %s317 = smul.u32 16, %s20
        %s318 = smul.u32 16, %s20
        %p319 = scmp.lt.s32.totalorder %s318, 31
        %s320 = scalar_select %p319, %s318, 31
        %s321 = smul.addr %s320, 8
        %s322 = scalar_lea.vmem %s8, %s321
        %s323 = smul.u32 16, %s20
        %v325 = vld [vmem:[%s316] sm:$0xff]
        %v326 = vld [vmem:[%s316 + $0x8] sm:$0xff]
        %v327 = vld [vmem:[%s316 + $0x10] sm:$0xff]
        %v328 = vld [vmem:[%s316 + $0x18] sm:$0xff]
        %v329 = vld [vmem:[%s316 + $0x20] sm:$0xff]
        %v330 = vld [vmem:[%s316 + $0x28] sm:$0xff]
        %v331 = vld [vmem:[%s316 + $0x30] sm:$0xff]
        %v332 = vld [vmem:[%s316 + $0x38] sm:$0xff]
        %v333 = vld [vmem:[%s316 + $0x40] sm:$0xff]
        %v334 = vld [vmem:[%s316 + $0x48] sm:$0xff]
        %v335 = vld [vmem:[%s316 + $0x50] sm:$0xff]
        %v336 = vld [vmem:[%s316 + $0x58] sm:$0xff]
        %v337 = vld [vmem:[%s316 + $0x60] sm:$0xff]
        %v338 = vld [vmem:[%s316 + $0x68] sm:$0xff]
        %v339 = vld [vmem:[%s316 + $0x70] sm:$0xff]
        %v340 = vld [vmem:[%s316 + $0x78] sm:$0xff]
        %v341 = vld [vmem:[%s1] sm:$0xff]
        %v342 = vld [vmem:[%s1 + $0x8] sm:$0xff]
        %v343 = vld [vmem:[%s1 + $0x10] sm:$0xff]
        %v344 = vld [vmem:[%s1 + $0x18] sm:$0xff]
        %v345 = vld [vmem:[%s2] sm:$0x1]
        %v347 = vlaneseq
        %v348 = vshrl.u32 %v347, 7
        %v349 = vsub.s32 0, %v348
        %v350 = vrot.slane %v345, %v349
        %vm352 = vcmask 261120
        %v354 = vsel %vm352, %v325, 0
        %v357 = vsel %vm352, %v326, 0
        %v360 = vsel %vm352, %v327, 0
        %v363 = vsel %vm352, %v328, 0
        %v366 = vsel %vm352, %v329, 0
        %v369 = vsel %vm352, %v330, 0
        %v372 = vsel %vm352, %v331, 0
        %v375 = vsel %vm352, %v332, 0
        %v378 = vsel %vm352, %v333, 0
        %v381 = vsel %vm352, %v334, 0
        %v384 = vsel %vm352, %v335, 0
        %v387 = vsel %vm352, %v336, 0
        %v390 = vsel %vm352, %v337, 0
        %v393 = vsel %vm352, %v338, 0
        %v396 = vsel %vm352, %v339, 0
        %v399 = vsel %vm352, %v340, 0
        %401 = vmatprep.subr.mxu0 0.0
        %402 = vmatpush1.msra.mxu0 %v341
        %403 = vmatprep.subr.mxu0 0.0
        %404 = vmatpush1.msra.mxu0 %v342
        %405 = vmatprep.subr.mxu0 0.0
        %406 = vmatpush1.msra.mxu0 %v343
        %407 = vmatprep.subr.mxu0 0.0
        %408 = vmatpush1.msra.mxu0 %v344
        %409 = vmatprep.subr.mxu0 0.0
        %410 = vmatpush1.msra.mxu0 0.0
        %411 = vmatprep.subr.mxu0 0.0
        %412 = vmatpush1.msra.mxu0 0.0
        %413 = vmatprep.subr.mxu0 0.0
        %414 = vmatpush1.msra.mxu0 0.0
        %415 = vmatprep.subr.mxu0 0.0
        %416 = vmatpush1.msra.mxu0 0.0
        %417 = vmatprep.subr.mxu0 0.0
        %418 = vmatpush1.msra.mxu0 0.0
        %419 = vmatprep.subr.mxu0 0.0
        %420 = vmatpush1.msra.mxu0 0.0
        %421 = vmatprep.subr.mxu0 0.0
        %422 = vmatpush1.msra.mxu0 0.0
        %423 = vmatprep.subr.mxu0 0.0
        %424 = vmatpush1.msra.mxu0 0.0
        %425 = vmatprep.subr.mxu0 0.0
        %426 = vmatpush1.msra.mxu0 0.0
        %427 = vmatprep.subr.mxu0 0.0
        %428 = vmatpush1.msra.mxu0 0.0
        %429 = vmatprep.subr.mxu0 0.0
        %430 = vmatpush1.msra.mxu0 0.0
        %431 = vmatprep.subr.mxu0 0.0
        %432 = vmatpush1.msra.mxu0 0.0
        %433 = vmatprep.subr.mxu0 0.0
        %434 = vmatpush1.msra.mxu0 0.0
        %435 = vmatprep.subr.mxu0 0.0
        %436 = vmatpush1.msra.mxu0 0.0
        %437 = vmatprep.subr.mxu0 0.0
        %438 = vmatpush1.msra.mxu0 0.0
        %439 = vmatprep.subr.mxu0 0.0
        %440 = vmatpush1.msra.mxu0 0.0
        %441 = vmatprep.subr.mxu0 0.0
        %442 = vmatpush1.msra.mxu0 0.0
        %443 = vmatprep.subr.mxu0 0.0
        %444 = vmatpush1.msra.mxu0 0.0
        %445 = vmatprep.subr.mxu0 0.0
        %446 = vmatpush1.msra.mxu0 0.0
        %447 = vmatprep.subr.mxu0 0.0
        %448 = vmatpush1.msra.mxu0 0.0
        %449 = vmatprep.subr.mxu0 0.0
        %450 = vmatpush1.msra.mxu0 0.0
        %451 = vmatprep.subr.mxu0 0.0
        %452 = vmatpush1.msra.mxu0 0.0
        %453 = vmatprep.subr.mxu0 0.0
        %454 = vmatpush1.msra.mxu0 0.0
        %455 = vmatprep.subr.mxu0 0.0
        %456 = vmatpush1.msra.mxu0 0.0
        %457 = vmatprep.subr.mxu0 0.0
        %458 = vmatpush1.msra.mxu0 0.0
        %459 = vmatprep.subr.mxu0 0.0
        %460 = vmatpush1.msra.mxu0 0.0
        %461 = vmatprep.subr.mxu0 0.0
        %462 = vmatpush1.msra.mxu0 0.0
        %463 = vmatprep.subr.mxu0 0.0
        %464 = vmatpush1.msra.mxu0 0.0
        %465 = vmatprep.mubr.f32.mxu0 0.0
        %466 = vmatmul.mubr.f32.gmra.mrb[0].mxu0 %v354
        %v467 = vpop.f32.mrb[0].mxu0
        %v468 = vadd.f32 %v350, %v467
        %v469 = vpop.f32.mrb[0].mxu0
        %470 = vmatprep.mubr.f32.mxu0 0.0
        %471 = vmatmul.mubr.f32.gmra.mrb[0].mxu0 %v357
        %v472 = vpop.f32.mrb[0].mxu0
        %v473 = vadd.f32 %v350, %v472
        %v474 = vpop.f32.mrb[0].mxu0
        %475 = vmatprep.mubr.f32.mxu0 0.0
        %476 = vmatmul.mubr.f32.gmra.mrb[0].mxu0 %v360
        %v477 = vpop.f32.mrb[0].mxu0
        %v478 = vadd.f32 %v350, %v477
        %v479 = vpop.f32.mrb[0].mxu0
        %480 = vmatprep.mubr.f32.mxu0 0.0
        %481 = vmatmul.mubr.f32.gmra.mrb[0].mxu0 %v363
        %v482 = vpop.f32.mrb[0].mxu0
        %v483 = vadd.f32 %v350, %v482
        %v484 = vpop.f32.mrb[0].mxu0
        %485 = vmatprep.mubr.f32.mxu0 0.0
        %486 = vmatmul.mubr.f32.gmra.mrb[0].mxu0 %v366
        %v487 = vpop.f32.mrb[0].mxu0
        %v488 = vadd.f32 %v350, %v487
        %v489 = vpop.f32.mrb[0].mxu0
        %490 = vmatprep.mubr.f32.mxu0 0.0
        %491 = vmatmul.mubr.f32.gmra.mrb[0].mxu0 %v369
        %v492 = vpop.f32.mrb[0].mxu0
        %v493 = vadd.f32 %v350, %v492
        %v494 = vpop.f32.mrb[0].mxu0
        %495 = vmatprep.mubr.f32.mxu0 0.0
        %496 = vmatmul.mubr.f32.gmra.mrb[0].mxu0 %v372
        %v497 = vpop.f32.mrb[0].mxu0
        %v498 = vadd.f32 %v350, %v497
        %v499 = vpop.f32.mrb[0].mxu0
        %500 = vmatprep.mubr.f32.mxu0 0.0
        %501 = vmatmul.mubr.f32.gmra.mrb[0].mxu0 %v375
        %v502 = vpop.f32.mrb[0].mxu0
        %v503 = vadd.f32 %v350, %v502
        %v504 = vpop.f32.mrb[0].mxu0
        %505 = vmatprep.mubr.f32.mxu0 0.0
        %506 = vmatmul.mubr.f32.gmra.mrb[0].mxu0 %v378
        %v507 = vpop.f32.mrb[0].mxu0
        %v508 = vadd.f32 %v350, %v507
        %v509 = vpop.f32.mrb[0].mxu0
        %510 = vmatprep.mubr.f32.mxu0 0.0
        %511 = vmatmul.mubr.f32.gmra.mrb[0].mxu0 %v381
        %v512 = vpop.f32.mrb[0].mxu0
        %v513 = vadd.f32 %v350, %v512
        %v514 = vpop.f32.mrb[0].mxu0
        %515 = vmatprep.mubr.f32.mxu0 0.0
        %516 = vmatmul.mubr.f32.gmra.mrb[0].mxu0 %v384
        %v517 = vpop.f32.mrb[0].mxu0
        %v518 = vadd.f32 %v350, %v517
        %v519 = vpop.f32.mrb[0].mxu0
        %520 = vmatprep.mubr.f32.mxu0 0.0
        %521 = vmatmul.mubr.f32.gmra.mrb[0].mxu0 %v387
        %v522 = vpop.f32.mrb[0].mxu0
        %v523 = vadd.f32 %v350, %v522
        %v524 = vpop.f32.mrb[0].mxu0
        %525 = vmatprep.mubr.f32.mxu0 0.0
        %526 = vmatmul.mubr.f32.gmra.mrb[0].mxu0 %v390
        %v527 = vpop.f32.mrb[0].mxu0
        %v528 = vadd.f32 %v350, %v527
        %v529 = vpop.f32.mrb[0].mxu0
        %530 = vmatprep.mubr.f32.mxu0 0.0
        %531 = vmatmul.mubr.f32.gmra.mrb[0].mxu0 %v393
        %v532 = vpop.f32.mrb[0].mxu0
        %v533 = vadd.f32 %v350, %v532
        %v534 = vpop.f32.mrb[0].mxu0
        %535 = vmatprep.mubr.f32.mxu0 0.0
        %536 = vmatmul.mubr.f32.gmra.mrb[0].mxu0 %v396
        %v537 = vpop.f32.mrb[0].mxu0
        %v538 = vadd.f32 %v350, %v537
        %v539 = vpop.f32.mrb[0].mxu0
        %540 = vmatprep.mubr.f32.mxu0 0.0
        %541 = vmatmul.mubr.f32.gmra.mrb[0].mxu0 %v399
        %v542 = vpop.f32.mrb[0].mxu0
        %v543 = vadd.f32 %v350, %v542
        %v544 = vpop.f32.mrb[0].mxu0
        %545 = vdwg.mxu0
        %v546 = vlaneseq
        %v547 = vand.u32 %v546, 127
        loop: start=0, step=1, limit=2
        $region57: #{moe_sparse_forward.1} parent=51 // loop_pre_header
          _
        $region58: #{moe_sparse_forward.1} parent=51 // loop_header
          %s549 = sphi 0, %s553
          %p550 = scmp.ge.s32.totalorder %s549, 2
          %v554 = vphi %v468, %v5010
          %v555 = vphi %v473, %v5011
          %v556 = vphi %v478, %v5012
          %v557 = vphi %v483, %v5013
          %v558 = vphi %v488, %v5014
          %v559 = vphi %v493, %v5015
          %v560 = vphi %v498, %v5016
          %v561 = vphi %v503, %v5017
          %v562 = vphi %v508, %v5018
          %v563 = vphi %v513, %v5019
          %v564 = vphi %v518, %v5020
          %v565 = vphi %v523, %v5021
          %v566 = vphi %v528, %v5022
          %v567 = vphi %v533, %v5023
          %v568 = vphi %v538, %v5024
          %v569 = vphi %v543, %v5025
        $region59: #{moe_sparse_forward.1} parent=51 // loop_header_branch
          %552 = sbr.rel (%p550) target = $region63
        $region60: #{moe_sparse_forward.1} parent=51 // loop_body
          %s570 = smul.u32 %s549, 8
          %s571 = scalar_lea.vmem %s3, %s570
          %v572 = vld [vmem:[%s571] sm:$0xff]
          %573 = vmatprep.subr.mxu0 0.0
          %574 = vmatpush1.xpose.msra.mxu0 %v572
          %575 = vmatprep.subr.mxu0 0.0
          %576 = vmatpush1.xpose.msra.mxu0 0.0
          %577 = vmatprep.subr.mxu0 0.0
          %578 = vmatpush1.xpose.msra.mxu0 0.0
          %579 = vmatprep.subr.mxu0 0.0
          %580 = vmatpush1.xpose.msra.mxu0 0.0
          %581 = vmatprep.subr.mxu0 0.0
          %582 = vmatpush1.xpose.msra.mxu0 0.0
          %583 = vmatprep.subr.mxu0 0.0
          %584 = vmatpush1.xpose.msra.mxu0 0.0
          %585 = vmatprep.subr.mxu0 0.0
          %586 = vmatpush1.xpose.msra.mxu0 0.0
          %587 = vmatprep.subr.mxu0 0.0
          %588 = vmatpush1.xpose.msra.mxu0 0.0
          %589 = vmatprep.subr.mxu0 0.0
          %590 = vmatpush1.xpose.msra.mxu0 0.0
          %591 = vmatprep.subr.mxu0 0.0
          %592 = vmatpush1.xpose.msra.mxu0 0.0
          %593 = vmatprep.subr.mxu0 0.0
          %594 = vmatpush1.xpose.msra.mxu0 0.0
          %595 = vmatprep.subr.mxu0 0.0
          %596 = vmatpush1.xpose.msra.mxu0 0.0
          %597 = vmatprep.subr.mxu0 0.0
          %598 = vmatpush1.xpose.msra.mxu0 0.0
          %599 = vmatprep.subr.mxu0 0.0
          %600 = vmatpush1.xpose.msra.mxu0 0.0
          %601 = vmatprep.subr.mxu0 0.0
          %602 = vmatpush1.xpose.msra.mxu0 0.0
          %603 = vmatprep.subr.mxu0 0.0
          %604 = vmatpush1.xpose.msra.mxu0 0.0
          %605 = vmatprep.subr.mxu0 0.0
          %606 = vmatpush1.xpose.msra.mxu0 0.0
          %607 = vmatprep.subr.mxu0 0.0
          %608 = vmatpush1.xpose.msra.mxu0 0.0
          %609 = vmatprep.subr.mxu0 0.0
          %610 = vmatpush1.xpose.msra.mxu0 0.0
          %611 = vmatprep.subr.mxu0 0.0
          %612 = vmatpush1.xpose.msra.mxu0 0.0
          %613 = vmatprep.subr.mxu0 0.0
          %614 = vmatpush1.xpose.msra.mxu0 0.0
          %615 = vmatprep.subr.mxu0 0.0
          %616 = vmatpush1.xpose.msra.mxu0 0.0
          %617 = vmatprep.subr.mxu0 0.0
          %618 = vmatpush1.xpose.msra.mxu0 0.0
          %619 = vmatprep.subr.mxu0 0.0
          %620 = vmatpush1.xpose.msra.mxu0 0.0
          %621 = vmatprep.subr.mxu0 0.0
          %622 = vmatpush1.xpose.msra.mxu0 0.0
          %623 = vmatprep.subr.mxu0 0.0
          %624 = vmatpush1.xpose.msra.mxu0 0.0
          %625 = vmatprep.subr.mxu0 0.0
          %626 = vmatpush1.xpose.msra.mxu0 0.0
          %627 = vmatprep.subr.mxu0 0.0
          %628 = vmatpush1.xpose.msra.mxu0 0.0
          %629 = vmatprep.subr.mxu0 0.0
          %630 = vmatpush1.xpose.msra.mxu0 0.0
          %631 = vmatprep.subr.mxu0 0.0
          %632 = vmatpush1.xpose.msra.mxu0 0.0
          %633 = vmatprep.subr.mxu0 0.0
          %634 = vmatpush1.xpose.msra.mxu0 0.0
          %635 = vmatprep.subr.mxu0 0.0
          %636 = vmatpush1.xpose.msra.mxu0 0.0
          %637 = vmatprep.mubr.f32.mxu0 0.0
          %638 = vmatmul.mubr.f32.gmra.mrb[0].mxu0 %v554
          %v639 = vpop.f32.mrb[0].mxu0
          %v640 = vadd.f32 0.0, %v639
          %v641 = vpop.f32.mrb[0].mxu0
          %642 = vmatprep.mubr.f32.mxu0 0.0
          %643 = vmatmul.mubr.f32.gmra.mrb[0].mxu0 %v555
          %v644 = vpop.f32.mrb[0].mxu0
          %v645 = vadd.f32 0.0, %v644
          %v646 = vpop.f32.mrb[0].mxu0
          %647 = vmatprep.mubr.f32.mxu0 0.0
          %648 = vmatmul.mubr.f32.gmra.mrb[0].mxu0 %v556
          %v649 = vpop.f32.mrb[0].mxu0
          %v650 = vadd.f32 0.0, %v649
          %v651 = vpop.f32.mrb[0].mxu0
          %652 = vmatprep.mubr.f32.mxu0 0.0
          %653 = vmatmul.mubr.f32.gmra.mrb[0].mxu0 %v557
          %v654 = vpop.f32.mrb[0].mxu0
          %v655 = vadd.f32 0.0, %v654
          %v656 = vpop.f32.mrb[0].mxu0
          %657 = vmatprep.mubr.f32.mxu0 0.0
          %658 = vmatmul.mubr.f32.gmra.mrb[0].mxu0 %v558
          %v659 = vpop.f32.mrb[0].mxu0
          %v660 = vadd.f32 0.0, %v659
          %v661 = vpop.f32.mrb[0].mxu0
          %662 = vmatprep.mubr.f32.mxu0 0.0
          %663 = vmatmul.mubr.f32.gmra.mrb[0].mxu0 %v559
          %v664 = vpop.f32.mrb[0].mxu0
          %v665 = vadd.f32 0.0, %v664
          %v666 = vpop.f32.mrb[0].mxu0
          %667 = vmatprep.mubr.f32.mxu0 0.0
          %668 = vmatmul.mubr.f32.gmra.mrb[0].mxu0 %v560
          %v669 = vpop.f32.mrb[0].mxu0
          %v670 = vadd.f32 0.0, %v669
          %v671 = vpop.f32.mrb[0].mxu0
          %672 = vmatprep.mubr.f32.mxu0 0.0
          %673 = vmatmul.mubr.f32.gmra.mrb[0].mxu0 %v561
          %v674 = vpop.f32.mrb[0].mxu0
          %v675 = vadd.f32 0.0, %v674
          %v676 = vpop.f32.mrb[0].mxu0
          %677 = vmatprep.mubr.f32.mxu0 0.0
          %678 = vmatmul.mubr.f32.gmra.mrb[0].mxu0 %v562
          %v679 = vpop.f32.mrb[0].mxu0
          %v680 = vadd.f32 0.0, %v679
          %v681 = vpop.f32.mrb[0].mxu0
          %682 = vmatprep.mubr.f32.mxu0 0.0
          %683 = vmatmul.mubr.f32.gmra.mrb[0].mxu0 %v563
          %v684 = vpop.f32.mrb[0].mxu0
          %v685 = vadd.f32 0.0, %v684
          %v686 = vpop.f32.mrb[0].mxu0
          %687 = vmatprep.mubr.f32.mxu0 0.0
          %688 = vmatmul.mubr.f32.gmra.mrb[0].mxu0 %v564
          %v689 = vpop.f32.mrb[0].mxu0
          %v690 = vadd.f32 0.0, %v689
          %v691 = vpop.f32.mrb[0].mxu0
          %692 = vmatprep.mubr.f32.mxu0 0.0
          %693 = vmatmul.mubr.f32.gmra.mrb[0].mxu0 %v565
          %v694 = vpop.f32.mrb[0].mxu0
          %v695 = vadd.f32 0.0, %v694
          %v696 = vpop.f32.mrb[0].mxu0
          %697 = vmatprep.mubr.f32.mxu0 0.0
          %698 = vmatmul.mubr.f32.gmra.mrb[0].mxu0 %v566
          %v699 = vpop.f32.mrb[0].mxu0
          %v700 = vadd.f32 0.0, %v699
          %v701 = vpop.f32.mrb[0].mxu0
          %702 = vmatprep.mubr.f32.mxu0 0.0
          %703 = vmatmul.mubr.f32.gmra.mrb[0].mxu0 %v567
          %v704 = vpop.f32.mrb[0].mxu0
          %v705 = vadd.f32 0.0, %v704
          %v706 = vpop.f32.mrb[0].mxu0
          %707 = vmatprep.mubr.f32.mxu0 0.0
          %708 = vmatmul.mubr.f32.gmra.mrb[0].mxu0 %v568
          %v709 = vpop.f32.mrb[0].mxu0
          %v710 = vadd.f32 0.0, %v709
          %v711 = vpop.f32.mrb[0].mxu0
          %712 = vmatprep.mubr.f32.mxu0 0.0
          %713 = vmatmul.mubr.f32.gmra.mrb[0].mxu0 %v569
          %v714 = vpop.f32.mrb[0].mxu0
          %v715 = vadd.f32 0.0, %v714
          %v716 = vpop.f32.mrb[0].mxu0
          %717 = vdwg.mxu0
          %vm718 = vcmask 64512
          %v719 = vsel %vm718, %v640, -inf
          %720 = vmax.xlane.f32.xlu0 %v719
          %v721 = vpop.xlane.xlu0 %720
          %v722 = vsel %vm718, %v645, -inf
          %723 = vmax.xlane.f32.xlu0 %v722
          %v724 = vpop.xlane.xlu0 %723
          %v725 = vsel %vm718, %v650, -inf
          %726 = vmax.xlane.f32.xlu0 %v725
          %v727 = vpop.xlane.xlu0 %726
          %v728 = vsel %vm718, %v655, -inf
          %729 = vmax.xlane.f32.xlu0 %v728
          %v730 = vpop.xlane.xlu0 %729
          %v731 = vsel %vm718, %v660, -inf
          %732 = vmax.xlane.f32.xlu0 %v731
          %v733 = vpop.xlane.xlu0 %732
          %v734 = vsel %vm718, %v665, -inf
          %735 = vmax.xlane.f32.xlu0 %v734
          %v736 = vpop.xlane.xlu0 %735
          %v737 = vsel %vm718, %v670, -inf
          %738 = vmax.xlane.f32.xlu0 %v737
          %v739 = vpop.xlane.xlu0 %738
          %v740 = vsel %vm718, %v675, -inf
          %741 = vmax.xlane.f32.xlu0 %v740
          %v742 = vpop.xlane.xlu0 %741
          %v743 = vsel %vm718, %v680, -inf
          %744 = vmax.xlane.f32.xlu0 %v743
          %v745 = vpop.xlane.xlu0 %744
          %v746 = vsel %vm718, %v685, -inf
          %747 = vmax.xlane.f32.xlu0 %v746
          %v748 = vpop.xlane.xlu0 %747
          %v749 = vsel %vm718, %v690, -inf
          %750 = vmax.xlane.f32.xlu0 %v749
          %v751 = vpop.xlane.xlu0 %750
          %v752 = vsel %vm718, %v695, -inf
          %753 = vmax.xlane.f32.xlu0 %v752
          %v754 = vpop.xlane.xlu0 %753
          %v755 = vsel %vm718, %v700, -inf
          %756 = vmax.xlane.f32.xlu0 %v755
          %v757 = vpop.xlane.xlu0 %756
          %v758 = vsel %vm718, %v705, -inf
          %759 = vmax.xlane.f32.xlu0 %v758
          %v760 = vpop.xlane.xlu0 %759
          %v761 = vsel %vm718, %v710, -inf
          %762 = vmax.xlane.f32.xlu0 %v761
          %v763 = vpop.xlane.xlu0 %762
          %v764 = vsel %vm718, %v715, -inf
          %765 = vmax.xlane.f32.xlu0 %v764
          %v766 = vpop.xlane.xlu0 %765
          %vm767 = vcmp.eq.f32.partialorder %v640, %v721
          %vm768 = vcmp.eq.f32.partialorder %v645, %v724
          %vm769 = vcmp.eq.f32.partialorder %v650, %v727
          %vm770 = vcmp.eq.f32.partialorder %v655, %v730
          %vm771 = vcmp.eq.f32.partialorder %v660, %v733
          %vm772 = vcmp.eq.f32.partialorder %v665, %v736
          %vm773 = vcmp.eq.f32.partialorder %v670, %v739
          %vm774 = vcmp.eq.f32.partialorder %v675, %v742
          %vm775 = vcmp.eq.f32.partialorder %v680, %v745
          %vm776 = vcmp.eq.f32.partialorder %v685, %v748
          %vm777 = vcmp.eq.f32.partialorder %v690, %v751
          %vm778 = vcmp.eq.f32.partialorder %v695, %v754
          %vm779 = vcmp.eq.f32.partialorder %v700, %v757
          %vm780 = vcmp.eq.f32.partialorder %v705, %v760
          %vm781 = vcmp.eq.f32.partialorder %v710, %v763
          %vm782 = vcmp.eq.f32.partialorder %v715, %v766
          %v783 = vsel %vm767, %v547, 8
          %v784 = vsel %vm768, %v547, 8
          %v785 = vsel %vm769, %v547, 8
          %v786 = vsel %vm770, %v547, 8
          %v787 = vsel %vm771, %v547, 8
          %v788 = vsel %vm772, %v547, 8
          %v789 = vsel %vm773, %v547, 8
          %v790 = vsel %vm774, %v547, 8
          %v791 = vsel %vm775, %v547, 8
          %v792 = vsel %vm776, %v547, 8
          %v793 = vsel %vm777, %v547, 8
          %v794 = vsel %vm778, %v547, 8
          %v795 = vsel %vm779, %v547, 8
          %v796 = vsel %vm780, %v547, 8
          %v797 = vsel %vm781, %v547, 8
          %v798 = vsel %vm782, %v547, 8
          %v799 = vsel %vm718, %v783, 2147483647
          %v800 = vand.u32 %v799, 65535
          %v801 = vshra.s32 %v799, 16
          %v802 = vcvt.s32.f32 %v800
          %v803 = vcvt.s32.f32 %v801
          %804 = vmin.xlane.f32.xlu0 %v803
          %v805 = vpop.xlane.xlu0 %804
          %vm806 = vcmp.eq.f32.partialorder %v803, %v805
          %v807 = vsel %vm806, %v802, inf
          %808 = vmin.xlane.f32.xlu0 %v807
          %v809 = vpop.xlane.xlu0 %808
          %v810 = vcvt.f32.s32 %v809
          %v811 = vcvt.f32.s32 %v805
          %v812 = vshll.u32 %v811, 16
          %v813 = vadd.s32 %v812, %v810
          %v814 = vsel %vm718, %v784, 2147483647
          %v815 = vand.u32 %v814, 65535
          %v816 = vshra.s32 %v814, 16
          %v817 = vcvt.s32.f32 %v815
          %v818 = vcvt.s32.f32 %v816
          %819 = vmin.xlane.f32.xlu0 %v818
          %v820 = vpop.xlane.xlu0 %819
          %vm821 = vcmp.eq.f32.partialorder %v818, %v820
          %v822 = vsel %vm821, %v817, inf
          %823 = vmin.xlane.f32.xlu0 %v822
          %v824 = vpop.xlane.xlu0 %823
          %v825 = vcvt.f32.s32 %v824
          %v826 = vcvt.f32.s32 %v820
          %v827 = vshll.u32 %v826, 16
          %v828 = vadd.s32 %v827, %v825
          %v829 = vsel %vm718, %v785, 2147483647
          %v830 = vand.u32 %v829, 65535
          %v831 = vshra.s32 %v829, 16
          %v832 = vcvt.s32.f32 %v830
          %v833 = vcvt.s32.f32 %v831
          %834 = vmin.xlane.f32.xlu0 %v833
          %v835 = vpop.xlane.xlu0 %834
          %vm836 = vcmp.eq.f32.partialorder %v833, %v835
          %v837 = vsel %vm836, %v832, inf
          %838 = vmin.xlane.f32.xlu0 %v837
          %v839 = vpop.xlane.xlu0 %838
          %v840 = vcvt.f32.s32 %v839
          %v841 = vcvt.f32.s32 %v835
          %v842 = vshll.u32 %v841, 16
          %v843 = vadd.s32 %v842, %v840
          %v844 = vsel %vm718, %v786, 2147483647
          %v845 = vand.u32 %v844, 65535
          %v846 = vshra.s32 %v844, 16
          %v847 = vcvt.s32.f32 %v845
          %v848 = vcvt.s32.f32 %v846
          %849 = vmin.xlane.f32.xlu0 %v848
          %v850 = vpop.xlane.xlu0 %849
          %vm851 = vcmp.eq.f32.partialorder %v848, %v850
          %v852 = vsel %vm851, %v847, inf
          %853 = vmin.xlane.f32.xlu0 %v852
          %v854 = vpop.xlane.xlu0 %853
          %v855 = vcvt.f32.s32 %v854
          %v856 = vcvt.f32.s32 %v850
          %v857 = vshll.u32 %v856, 16
          %v858 = vadd.s32 %v857, %v855
          %v859 = vsel %vm718, %v787, 2147483647
          %v860 = vand.u32 %v859, 65535
          %v861 = vshra.s32 %v859, 16
          %v862 = vcvt.s32.f32 %v860
          %v863 = vcvt.s32.f32 %v861
          %864 = vmin.xlane.f32.xlu0 %v863
          %v865 = vpop.xlane.xlu0 %864
          %vm866 = vcmp.eq.f32.partialorder %v863, %v865
          %v867 = vsel %vm866, %v862, inf
          %868 = vmin.xlane.f32.xlu0 %v867
          %v869 = vpop.xlane.xlu0 %868
          %v870 = vcvt.f32.s32 %v869
          %v871 = vcvt.f32.s32 %v865
          %v872 = vshll.u32 %v871, 16
          %v873 = vadd.s32 %v872, %v870
          %v874 = vsel %vm718, %v788, 2147483647
          %v875 = vand.u32 %v874, 65535
          %v876 = vshra.s32 %v874, 16
          %v877 = vcvt.s32.f32 %v875
          %v878 = vcvt.s32.f32 %v876
          %879 = vmin.xlane.f32.xlu0 %v878
          %v880 = vpop.xlane.xlu0 %879
          %vm881 = vcmp.eq.f32.partialorder %v878, %v880
          %v882 = vsel %vm881, %v877, inf
          %883 = vmin.xlane.f32.xlu0 %v882
          %v884 = vpop.xlane.xlu0 %883
          %v885 = vcvt.f32.s32 %v884
          %v886 = vcvt.f32.s32 %v880
          %v887 = vshll.u32 %v886, 16
          %v888 = vadd.s32 %v887, %v885
          %v889 = vsel %vm718, %v789, 2147483647
          %v890 = vand.u32 %v889, 65535
          %v891 = vshra.s32 %v889, 16
          %v892 = vcvt.s32.f32 %v890
          %v893 = vcvt.s32.f32 %v891
          %894 = vmin.xlane.f32.xlu0 %v893
          %v895 = vpop.xlane.xlu0 %894
          %vm896 = vcmp.eq.f32.partialorder %v893, %v895
          %v897 = vsel %vm896, %v892, inf
          %898 = vmin.xlane.f32.xlu0 %v897
          %v899 = vpop.xlane.xlu0 %898
          %v900 = vcvt.f32.s32 %v899
          %v901 = vcvt.f32.s32 %v895
          %v902 = vshll.u32 %v901, 16
          %v903 = vadd.s32 %v902, %v900
          %v904 = vsel %vm718, %v790, 2147483647
          %v905 = vand.u32 %v904, 65535
          %v906 = vshra.s32 %v904, 16
          %v907 = vcvt.s32.f32 %v905
          %v908 = vcvt.s32.f32 %v906
          %909 = vmin.xlane.f32.xlu0 %v908
          %v910 = vpop.xlane.xlu0 %909
          %vm911 = vcmp.eq.f32.partialorder %v908, %v910
          %v912 = vsel %vm911, %v907, inf
          %913 = vmin.xlane.f32.xlu0 %v912
          %v914 = vpop.xlane.xlu0 %913
          %v915 = vcvt.f32.s32 %v914
          %v916 = vcvt.f32.s32 %v910
          %v917 = vshll.u32 %v916, 16
          %v918 = vadd.s32 %v917, %v915
          %v919 = vsel %vm718, %v791, 2147483647
          %v920 = vand.u32 %v919, 65535
          %v921 = vshra.s32 %v919, 16
          %v922 = vcvt.s32.f32 %v920
          %v923 = vcvt.s32.f32 %v921
          %924 = vmin.xlane.f32.xlu0 %v923
          %v925 = vpop.xlane.xlu0 %924
          %vm926 = vcmp.eq.f32.partialorder %v923, %v925
          %v927 = vsel %vm926, %v922, inf
          %928 = vmin.xlane.f32.xlu0 %v927
          %v929 = vpop.xlane.xlu0 %928
          %v930 = vcvt.f32.s32 %v929
          %v931 = vcvt.f32.s32 %v925
          %v932 = vshll.u32 %v931, 16
          %v933 = vadd.s32 %v932, %v930
          %v934 = vsel %vm718, %v792, 2147483647
          %v935 = vand.u32 %v934, 65535
          %v936 = vshra.s32 %v934, 16
          %v937 = vcvt.s32.f32 %v935
          %v938 = vcvt.s32.f32 %v936
          %939 = vmin.xlane.f32.xlu0 %v938
          %v940 = vpop.xlane.xlu0 %939
          %vm941 = vcmp.eq.f32.partialorder %v938, %v940
          %v942 = vsel %vm941, %v937, inf
          %943 = vmin.xlane.f32.xlu0 %v942
          %v944 = vpop.xlane.xlu0 %943
          %v945 = vcvt.f32.s32 %v944
          %v946 = vcvt.f32.s32 %v940
          %v947 = vshll.u32 %v946, 16
          %v948 = vadd.s32 %v947, %v945
          %v949 = vsel %vm718, %v793, 2147483647
          %v950 = vand.u32 %v949, 65535
          %v951 = vshra.s32 %v949, 16
          %v952 = vcvt.s32.f32 %v950
          %v953 = vcvt.s32.f32 %v951
          %954 = vmin.xlane.f32.xlu0 %v953
          %v955 = vpop.xlane.xlu0 %954
          %vm956 = vcmp.eq.f32.partialorder %v953, %v955
          %v957 = vsel %vm956, %v952, inf
          %958 = vmin.xlane.f32.xlu0 %v957
          %v959 = vpop.xlane.xlu0 %958
          %v960 = vcvt.f32.s32 %v959
          %v961 = vcvt.f32.s32 %v955
          %v962 = vshll.u32 %v961, 16
          %v963 = vadd.s32 %v962, %v960
          %v964 = vsel %vm718, %v794, 2147483647
          %v965 = vand.u32 %v964, 65535
          %v966 = vshra.s32 %v964, 16
          %v967 = vcvt.s32.f32 %v965
          %v968 = vcvt.s32.f32 %v966
          %969 = vmin.xlane.f32.xlu0 %v968
          %v970 = vpop.xlane.xlu0 %969
          %vm971 = vcmp.eq.f32.partialorder %v968, %v970
          %v972 = vsel %vm971, %v967, inf
          %973 = vmin.xlane.f32.xlu0 %v972
          %v974 = vpop.xlane.xlu0 %973
          %v975 = vcvt.f32.s32 %v974
          %v976 = vcvt.f32.s32 %v970
          %v977 = vshll.u32 %v976, 16
          %v978 = vadd.s32 %v977, %v975
          %v979 = vsel %vm718, %v795, 2147483647
          %v980 = vand.u32 %v979, 65535
          %v981 = vshra.s32 %v979, 16
          %v982 = vcvt.s32.f32 %v980
          %v983 = vcvt.s32.f32 %v981
          %984 = vmin.xlane.f32.xlu0 %v983
          %v985 = vpop.xlane.xlu0 %984
          %vm986 = vcmp.eq.f32.partialorder %v983, %v985
          %v987 = vsel %vm986, %v982, inf
          %988 = vmin.xlane.f32.xlu0 %v987
          %v989 = vpop.xlane.xlu0 %988
          %v990 = vcvt.f32.s32 %v989
          %v991 = vcvt.f32.s32 %v985
          %v992 = vshll.u32 %v991, 16
          %v993 = vadd.s32 %v992, %v990
          %v994 = vsel %vm718, %v796, 2147483647
          %v995 = vand.u32 %v994, 65535
          %v996 = vshra.s32 %v994, 16
          %v997 = vcvt.s32.f32 %v995
          %v998 = vcvt.s32.f32 %v996
          %999 = vmin.xlane.f32.xlu0 %v998
          %v1000 = vpop.xlane.xlu0 %999
          %vm1001 = vcmp.eq.f32.partialorder %v998, %v1000
          %v1002 = vsel %vm1001, %v997, inf
          %1003 = vmin.xlane.f32.xlu0 %v1002
          %v1004 = vpop.xlane.xlu0 %1003
          %v1005 = vcvt.f32.s32 %v1004
          %v1006 = vcvt.f32.s32 %v1000
          %v1007 = vshll.u32 %v1006, 16
          %v1008 = vadd.s32 %v1007, %v1005
          %v1009 = vsel %vm718, %v797, 2147483647
          %v1010 = vand.u32 %v1009, 65535
          %v1011 = vshra.s32 %v1009, 16
          %v1012 = vcvt.s32.f32 %v1010
          %v1013 = vcvt.s32.f32 %v1011
          %1014 = vmin.xlane.f32.xlu0 %v1013
          %v1015 = vpop.xlane.xlu0 %1014
          %vm1016 = vcmp.eq.f32.partialorder %v1013, %v1015
          %v1017 = vsel %vm1016, %v1012, inf
          %1018 = vmin.xlane.f32.xlu0 %v1017
          %v1019 = vpop.xlane.xlu0 %1018
          %v1020 = vcvt.f32.s32 %v1019
          %v1021 = vcvt.f32.s32 %v1015
          %v1022 = vshll.u32 %v1021, 16
          %v1023 = vadd.s32 %v1022, %v1020
          %v1024 = vsel %vm718, %v798, 2147483647
          %v1025 = vand.u32 %v1024, 65535
          %v1026 = vshra.s32 %v1024, 16
          %v1027 = vcvt.s32.f32 %v1025
          %v1028 = vcvt.s32.f32 %v1026
          %1029 = vmin.xlane.f32.xlu0 %v1028
          %v1030 = vpop.xlane.xlu0 %1029
          %vm1031 = vcmp.eq.f32.partialorder %v1028, %v1030
          %v1032 = vsel %vm1031, %v1027, inf
          %1033 = vmin.xlane.f32.xlu0 %v1032
          %v1034 = vpop.xlane.xlu0 %1033
          %v1035 = vcvt.f32.s32 %v1034
          %v1036 = vcvt.f32.s32 %v1030
          %v1037 = vshll.u32 %v1036, 16
          %v1038 = vadd.s32 %v1037, %v1035
          %vm1039 = vcmp.eq.s32.totalorder %v547, %v813
          %vm1040 = vcmp.eq.s32.totalorder %v547, %v828
          %vm1041 = vcmp.eq.s32.totalorder %v547, %v843
          %vm1042 = vcmp.eq.s32.totalorder %v547, %v858
          %vm1043 = vcmp.eq.s32.totalorder %v547, %v873
          %vm1044 = vcmp.eq.s32.totalorder %v547, %v888
          %vm1045 = vcmp.eq.s32.totalorder %v547, %v903
          %vm1046 = vcmp.eq.s32.totalorder %v547, %v918
          %vm1047 = vcmp.eq.s32.totalorder %v547, %v933
          %vm1048 = vcmp.eq.s32.totalorder %v547, %v948
          %vm1049 = vcmp.eq.s32.totalorder %v547, %v963
          %vm1050 = vcmp.eq.s32.totalorder %v547, %v978
          %vm1051 = vcmp.eq.s32.totalorder %v547, %v993
          %vm1052 = vcmp.eq.s32.totalorder %v547, %v1008
          %vm1053 = vcmp.eq.s32.totalorder %v547, %v1023
          %vm1054 = vcmp.eq.s32.totalorder %v547, %v1038
          %v1055 = vsel %vm1039, -1e+30, %v640
          %v1056 = vsel %vm1040, -1e+30, %v645
          %v1057 = vsel %vm1041, -1e+30, %v650
          %v1058 = vsel %vm1042, -1e+30, %v655
          %v1059 = vsel %vm1043, -1e+30, %v660
          %v1060 = vsel %vm1044, -1e+30, %v665
          %v1061 = vsel %vm1045, -1e+30, %v670
          %v1062 = vsel %vm1046, -1e+30, %v675
          %v1063 = vsel %vm1047, -1e+30, %v680
          %v1064 = vsel %vm1048, -1e+30, %v685
          %v1065 = vsel %vm1049, -1e+30, %v690
          %v1066 = vsel %vm1050, -1e+30, %v695
          %v1067 = vsel %vm1051, -1e+30, %v700
          %v1068 = vsel %vm1052, -1e+30, %v705
          %v1069 = vsel %vm1053, -1e+30, %v710
          %v1070 = vsel %vm1054, -1e+30, %v715
          %v1071 = vsel %vm718, %v1055, -inf
          %1072 = vmax.xlane.f32.xlu0 %v1071
          %v1073 = vpop.xlane.xlu0 %1072
          %v1074 = vsel %vm718, %v1056, -inf
          %1075 = vmax.xlane.f32.xlu0 %v1074
          %v1076 = vpop.xlane.xlu0 %1075
          %v1077 = vsel %vm718, %v1057, -inf
          %1078 = vmax.xlane.f32.xlu0 %v1077
          %v1079 = vpop.xlane.xlu0 %1078
          %v1080 = vsel %vm718, %v1058, -inf
          %1081 = vmax.xlane.f32.xlu0 %v1080
          %v1082 = vpop.xlane.xlu0 %1081
          %v1083 = vsel %vm718, %v1059, -inf
          %1084 = vmax.xlane.f32.xlu0 %v1083
          %v1085 = vpop.xlane.xlu0 %1084
          %v1086 = vsel %vm718, %v1060, -inf
          %1087 = vmax.xlane.f32.xlu0 %v1086
          %v1088 = vpop.xlane.xlu0 %1087
          %v1089 = vsel %vm718, %v1061, -inf
          %1090 = vmax.xlane.f32.xlu0 %v1089
          %v1091 = vpop.xlane.xlu0 %1090
          %v1092 = vsel %vm718, %v1062, -inf
          %1093 = vmax.xlane.f32.xlu0 %v1092
          %v1094 = vpop.xlane.xlu0 %1093
          %v1095 = vsel %vm718, %v1063, -inf
          %1096 = vmax.xlane.f32.xlu0 %v1095
          %v1097 = vpop.xlane.xlu0 %1096
          %v1098 = vsel %vm718, %v1064, -inf
          %1099 = vmax.xlane.f32.xlu0 %v1098
          %v1100 = vpop.xlane.xlu0 %1099
          %v1101 = vsel %vm718, %v1065, -inf
          %1102 = vmax.xlane.f32.xlu0 %v1101
          %v1103 = vpop.xlane.xlu0 %1102
          %v1104 = vsel %vm718, %v1066, -inf
          %1105 = vmax.xlane.f32.xlu0 %v1104
          %v1106 = vpop.xlane.xlu0 %1105
          %v1107 = vsel %vm718, %v1067, -inf
          %1108 = vmax.xlane.f32.xlu0 %v1107
          %v1109 = vpop.xlane.xlu0 %1108
          %v1110 = vsel %vm718, %v1068, -inf
          %1111 = vmax.xlane.f32.xlu0 %v1110
          %v1112 = vpop.xlane.xlu0 %1111
          %v1113 = vsel %vm718, %v1069, -inf
          %1114 = vmax.xlane.f32.xlu0 %v1113
          %v1115 = vpop.xlane.xlu0 %1114
          %v1116 = vsel %vm718, %v1070, -inf
          %1117 = vmax.xlane.f32.xlu0 %v1116
          %v1118 = vpop.xlane.xlu0 %1117
          %vm1119 = vcmp.eq.f32.partialorder %v1055, %v1073
          %vm1120 = vcmp.eq.f32.partialorder %v1056, %v1076
          %vm1121 = vcmp.eq.f32.partialorder %v1057, %v1079
          %vm1122 = vcmp.eq.f32.partialorder %v1058, %v1082
          %vm1123 = vcmp.eq.f32.partialorder %v1059, %v1085
          %vm1124 = vcmp.eq.f32.partialorder %v1060, %v1088
          %vm1125 = vcmp.eq.f32.partialorder %v1061, %v1091
          %vm1126 = vcmp.eq.f32.partialorder %v1062, %v1094
          %vm1127 = vcmp.eq.f32.partialorder %v1063, %v1097
          %vm1128 = vcmp.eq.f32.partialorder %v1064, %v1100
          %vm1129 = vcmp.eq.f32.partialorder %v1065, %v1103
          %vm1130 = vcmp.eq.f32.partialorder %v1066, %v1106
          %vm1131 = vcmp.eq.f32.partialorder %v1067, %v1109
          %vm1132 = vcmp.eq.f32.partialorder %v1068, %v1112
          %vm1133 = vcmp.eq.f32.partialorder %v1069, %v1115
          %vm1134 = vcmp.eq.f32.partialorder %v1070, %v1118
          %v1135 = vsel %vm1119, %v547, 8
          %v1136 = vsel %vm1120, %v547, 8
          %v1137 = vsel %vm1121, %v547, 8
          %v1138 = vsel %vm1122, %v547, 8
          %v1139 = vsel %vm1123, %v547, 8
          %v1140 = vsel %vm1124, %v547, 8
          %v1141 = vsel %vm1125, %v547, 8
          %v1142 = vsel %vm1126, %v547, 8
          %v1143 = vsel %vm1127, %v547, 8
          %v1144 = vsel %vm1128, %v547, 8
          %v1145 = vsel %vm1129, %v547, 8
          %v1146 = vsel %vm1130, %v547, 8
          %v1147 = vsel %vm1131, %v547, 8
          %v1148 = vsel %vm1132, %v547, 8
          %v1149 = vsel %vm1133, %v547, 8
          %v1150 = vsel %vm1134, %v547, 8
          %v1151 = vsel %vm718, %v1135, 2147483647
          %v1152 = vand.u32 %v1151, 65535
          %v1153 = vshra.s32 %v1151, 16
          %v1154 = vcvt.s32.f32 %v1152
          %v1155 = vcvt.s32.f32 %v1153
          %1156 = vmin.xlane.f32.xlu0 %v1155
          %v1157 = vpop.xlane.xlu0 %1156
          %vm1158 = vcmp.eq.f32.partialorder %v1155, %v1157
          %v1159 = vsel %vm1158, %v1154, inf
          %1160 = vmin.xlane.f32.xlu0 %v1159
          %v1161 = vpop.xlane.xlu0 %1160
          %v1162 = vcvt.f32.s32 %v1161
          %v1163 = vcvt.f32.s32 %v1157
          %v1164 = vshll.u32 %v1163, 16
          %v1165 = vadd.s32 %v1164, %v1162
          %v1166 = vsel %vm718, %v1136, 2147483647
          %v1167 = vand.u32 %v1166, 65535
          %v1168 = vshra.s32 %v1166, 16
          %v1169 = vcvt.s32.f32 %v1167
          %v1170 = vcvt.s32.f32 %v1168
          %1171 = vmin.xlane.f32.xlu0 %v1170
          %v1172 = vpop.xlane.xlu0 %1171
          %vm1173 = vcmp.eq.f32.partialorder %v1170, %v1172
          %v1174 = vsel %vm1173, %v1169, inf
          %1175 = vmin.xlane.f32.xlu0 %v1174
          %v1176 = vpop.xlane.xlu0 %1175
          %v1177 = vcvt.f32.s32 %v1176
          %v1178 = vcvt.f32.s32 %v1172
          %v1179 = vshll.u32 %v1178, 16
          %v1180 = vadd.s32 %v1179, %v1177
          %v1181 = vsel %vm718, %v1137, 2147483647
          %v1182 = vand.u32 %v1181, 65535
          %v1183 = vshra.s32 %v1181, 16
          %v1184 = vcvt.s32.f32 %v1182
          %v1185 = vcvt.s32.f32 %v1183
          %1186 = vmin.xlane.f32.xlu0 %v1185
          %v1187 = vpop.xlane.xlu0 %1186
          %vm1188 = vcmp.eq.f32.partialorder %v1185, %v1187
          %v1189 = vsel %vm1188, %v1184, inf
          %1190 = vmin.xlane.f32.xlu0 %v1189
          %v1191 = vpop.xlane.xlu0 %1190
          %v1192 = vcvt.f32.s32 %v1191
          %v1193 = vcvt.f32.s32 %v1187
          %v1194 = vshll.u32 %v1193, 16
          %v1195 = vadd.s32 %v1194, %v1192
          %v1196 = vsel %vm718, %v1138, 2147483647
          %v1197 = vand.u32 %v1196, 65535
          %v1198 = vshra.s32 %v1196, 16
          %v1199 = vcvt.s32.f32 %v1197
          %v1200 = vcvt.s32.f32 %v1198
          %1201 = vmin.xlane.f32.xlu0 %v1200
          %v1202 = vpop.xlane.xlu0 %1201
          %vm1203 = vcmp.eq.f32.partialorder %v1200, %v1202
          %v1204 = vsel %vm1203, %v1199, inf
          %1205 = vmin.xlane.f32.xlu0 %v1204
          %v1206 = vpop.xlane.xlu0 %1205
          %v1207 = vcvt.f32.s32 %v1206
          %v1208 = vcvt.f32.s32 %v1202
          %v1209 = vshll.u32 %v1208, 16
          %v1210 = vadd.s32 %v1209, %v1207
          %v1211 = vsel %vm718, %v1139, 2147483647
          %v1212 = vand.u32 %v1211, 65535
          %v1213 = vshra.s32 %v1211, 16
          %v1214 = vcvt.s32.f32 %v1212
          %v1215 = vcvt.s32.f32 %v1213
          %1216 = vmin.xlane.f32.xlu0 %v1215
          %v1217 = vpop.xlane.xlu0 %1216
          %vm1218 = vcmp.eq.f32.partialorder %v1215, %v1217
          %v1219 = vsel %vm1218, %v1214, inf
          %1220 = vmin.xlane.f32.xlu0 %v1219
          %v1221 = vpop.xlane.xlu0 %1220
          %v1222 = vcvt.f32.s32 %v1221
          %v1223 = vcvt.f32.s32 %v1217
          %v1224 = vshll.u32 %v1223, 16
          %v1225 = vadd.s32 %v1224, %v1222
          %v1226 = vsel %vm718, %v1140, 2147483647
          %v1227 = vand.u32 %v1226, 65535
          %v1228 = vshra.s32 %v1226, 16
          %v1229 = vcvt.s32.f32 %v1227
          %v1230 = vcvt.s32.f32 %v1228
          %1231 = vmin.xlane.f32.xlu0 %v1230
          %v1232 = vpop.xlane.xlu0 %1231
          %vm1233 = vcmp.eq.f32.partialorder %v1230, %v1232
          %v1234 = vsel %vm1233, %v1229, inf
          %1235 = vmin.xlane.f32.xlu0 %v1234
          %v1236 = vpop.xlane.xlu0 %1235
          %v1237 = vcvt.f32.s32 %v1236
          %v1238 = vcvt.f32.s32 %v1232
          %v1239 = vshll.u32 %v1238, 16
          %v1240 = vadd.s32 %v1239, %v1237
          %v1241 = vsel %vm718, %v1141, 2147483647
          %v1242 = vand.u32 %v1241, 65535
          %v1243 = vshra.s32 %v1241, 16
          %v1244 = vcvt.s32.f32 %v1242
          %v1245 = vcvt.s32.f32 %v1243
          %1246 = vmin.xlane.f32.xlu0 %v1245
          %v1247 = vpop.xlane.xlu0 %1246
          %vm1248 = vcmp.eq.f32.partialorder %v1245, %v1247
          %v1249 = vsel %vm1248, %v1244, inf
          %1250 = vmin.xlane.f32.xlu0 %v1249
          %v1251 = vpop.xlane.xlu0 %1250
          %v1252 = vcvt.f32.s32 %v1251
          %v1253 = vcvt.f32.s32 %v1247
          %v1254 = vshll.u32 %v1253, 16
          %v1255 = vadd.s32 %v1254, %v1252
          %v1256 = vsel %vm718, %v1142, 2147483647
          %v1257 = vand.u32 %v1256, 65535
          %v1258 = vshra.s32 %v1256, 16
          %v1259 = vcvt.s32.f32 %v1257
          %v1260 = vcvt.s32.f32 %v1258
          %1261 = vmin.xlane.f32.xlu0 %v1260
          %v1262 = vpop.xlane.xlu0 %1261
          %vm1263 = vcmp.eq.f32.partialorder %v1260, %v1262
          %v1264 = vsel %vm1263, %v1259, inf
          %1265 = vmin.xlane.f32.xlu0 %v1264
          %v1266 = vpop.xlane.xlu0 %1265
          %v1267 = vcvt.f32.s32 %v1266
          %v1268 = vcvt.f32.s32 %v1262
          %v1269 = vshll.u32 %v1268, 16
          %v1270 = vadd.s32 %v1269, %v1267
          %v1271 = vsel %vm718, %v1143, 2147483647
          %v1272 = vand.u32 %v1271, 65535
          %v1273 = vshra.s32 %v1271, 16
          %v1274 = vcvt.s32.f32 %v1272
          %v1275 = vcvt.s32.f32 %v1273
          %1276 = vmin.xlane.f32.xlu0 %v1275
          %v1277 = vpop.xlane.xlu0 %1276
          %vm1278 = vcmp.eq.f32.partialorder %v1275, %v1277
          %v1279 = vsel %vm1278, %v1274, inf
          %1280 = vmin.xlane.f32.xlu0 %v1279
          %v1281 = vpop.xlane.xlu0 %1280
          %v1282 = vcvt.f32.s32 %v1281
          %v1283 = vcvt.f32.s32 %v1277
          %v1284 = vshll.u32 %v1283, 16
          %v1285 = vadd.s32 %v1284, %v1282
          %v1286 = vsel %vm718, %v1144, 2147483647
          %v1287 = vand.u32 %v1286, 65535
          %v1288 = vshra.s32 %v1286, 16
          %v1289 = vcvt.s32.f32 %v1287
          %v1290 = vcvt.s32.f32 %v1288
          %1291 = vmin.xlane.f32.xlu0 %v1290
          %v1292 = vpop.xlane.xlu0 %1291
          %vm1293 = vcmp.eq.f32.partialorder %v1290, %v1292
          %v1294 = vsel %vm1293, %v1289, inf
          %1295 = vmin.xlane.f32.xlu0 %v1294
          %v1296 = vpop.xlane.xlu0 %1295
          %v1297 = vcvt.f32.s32 %v1296
          %v1298 = vcvt.f32.s32 %v1292
          %v1299 = vshll.u32 %v1298, 16
          %v1300 = vadd.s32 %v1299, %v1297
          %v1301 = vsel %vm718, %v1145, 2147483647
          %v1302 = vand.u32 %v1301, 65535
          %v1303 = vshra.s32 %v1301, 16
          %v1304 = vcvt.s32.f32 %v1302
          %v1305 = vcvt.s32.f32 %v1303
          %1306 = vmin.xlane.f32.xlu0 %v1305
          %v1307 = vpop.xlane.xlu0 %1306
          %vm1308 = vcmp.eq.f32.partialorder %v1305, %v1307
          %v1309 = vsel %vm1308, %v1304, inf
          %1310 = vmin.xlane.f32.xlu0 %v1309
          %v1311 = vpop.xlane.xlu0 %1310
          %v1312 = vcvt.f32.s32 %v1311
          %v1313 = vcvt.f32.s32 %v1307
          %v1314 = vshll.u32 %v1313, 16
          %v1315 = vadd.s32 %v1314, %v1312
          %v1316 = vsel %vm718, %v1146, 2147483647
          %v1317 = vand.u32 %v1316, 65535
          %v1318 = vshra.s32 %v1316, 16
          %v1319 = vcvt.s32.f32 %v1317
          %v1320 = vcvt.s32.f32 %v1318
          %1321 = vmin.xlane.f32.xlu0 %v1320
          %v1322 = vpop.xlane.xlu0 %1321
          %vm1323 = vcmp.eq.f32.partialorder %v1320, %v1322
          %v1324 = vsel %vm1323, %v1319, inf
          %1325 = vmin.xlane.f32.xlu0 %v1324
          %v1326 = vpop.xlane.xlu0 %1325
          %v1327 = vcvt.f32.s32 %v1326
          %v1328 = vcvt.f32.s32 %v1322
          %v1329 = vshll.u32 %v1328, 16
          %v1330 = vadd.s32 %v1329, %v1327
          %v1331 = vsel %vm718, %v1147, 2147483647
          %v1332 = vand.u32 %v1331, 65535
          %v1333 = vshra.s32 %v1331, 16
          %v1334 = vcvt.s32.f32 %v1332
          %v1335 = vcvt.s32.f32 %v1333
          %1336 = vmin.xlane.f32.xlu0 %v1335
          %v1337 = vpop.xlane.xlu0 %1336
          %vm1338 = vcmp.eq.f32.partialorder %v1335, %v1337
          %v1339 = vsel %vm1338, %v1334, inf
          %1340 = vmin.xlane.f32.xlu0 %v1339
          %v1341 = vpop.xlane.xlu0 %1340
          %v1342 = vcvt.f32.s32 %v1341
          %v1343 = vcvt.f32.s32 %v1337
          %v1344 = vshll.u32 %v1343, 16
          %v1345 = vadd.s32 %v1344, %v1342
          %v1346 = vsel %vm718, %v1148, 2147483647
          %v1347 = vand.u32 %v1346, 65535
          %v1348 = vshra.s32 %v1346, 16
          %v1349 = vcvt.s32.f32 %v1347
          %v1350 = vcvt.s32.f32 %v1348
          %1351 = vmin.xlane.f32.xlu0 %v1350
          %v1352 = vpop.xlane.xlu0 %1351
          %vm1353 = vcmp.eq.f32.partialorder %v1350, %v1352
          %v1354 = vsel %vm1353, %v1349, inf
          %1355 = vmin.xlane.f32.xlu0 %v1354
          %v1356 = vpop.xlane.xlu0 %1355
          %v1357 = vcvt.f32.s32 %v1356
          %v1358 = vcvt.f32.s32 %v1352
          %v1359 = vshll.u32 %v1358, 16
          %v1360 = vadd.s32 %v1359, %v1357
          %v1361 = vsel %vm718, %v1149, 2147483647
          %v1362 = vand.u32 %v1361, 65535
          %v1363 = vshra.s32 %v1361, 16
          %v1364 = vcvt.s32.f32 %v1362
          %v1365 = vcvt.s32.f32 %v1363
          %1366 = vmin.xlane.f32.xlu0 %v1365
          %v1367 = vpop.xlane.xlu0 %1366
          %vm1368 = vcmp.eq.f32.partialorder %v1365, %v1367
          %v1369 = vsel %vm1368, %v1364, inf
          %1370 = vmin.xlane.f32.xlu0 %v1369
          %v1371 = vpop.xlane.xlu0 %1370
          %v1372 = vcvt.f32.s32 %v1371
          %v1373 = vcvt.f32.s32 %v1367
          %v1374 = vshll.u32 %v1373, 16
          %v1375 = vadd.s32 %v1374, %v1372
          %v1376 = vsel %vm718, %v1150, 2147483647
          %v1377 = vand.u32 %v1376, 65535
          %v1378 = vshra.s32 %v1376, 16
          %v1379 = vcvt.s32.f32 %v1377
          %v1380 = vcvt.s32.f32 %v1378
          %1381 = vmin.xlane.f32.xlu0 %v1380
          %v1382 = vpop.xlane.xlu0 %1381
          %vm1383 = vcmp.eq.f32.partialorder %v1380, %v1382
          %v1384 = vsel %vm1383, %v1379, inf
          %1385 = vmin.xlane.f32.xlu0 %v1384
          %v1386 = vpop.xlane.xlu0 %1385
          %v1387 = vcvt.f32.s32 %v1386
          %v1388 = vcvt.f32.s32 %v1382
          %v1389 = vshll.u32 %v1388, 16
          %v1390 = vadd.s32 %v1389, %v1387
          %vm1391 = vcmp.eq.s32.totalorder %v547, %v1165
          %vm1392 = vcmp.eq.s32.totalorder %v547, %v1180
          %vm1393 = vcmp.eq.s32.totalorder %v547, %v1195
          %vm1394 = vcmp.eq.s32.totalorder %v547, %v1210
          %vm1395 = vcmp.eq.s32.totalorder %v547, %v1225
          %vm1396 = vcmp.eq.s32.totalorder %v547, %v1240
          %vm1397 = vcmp.eq.s32.totalorder %v547, %v1255
          %vm1398 = vcmp.eq.s32.totalorder %v547, %v1270
          %vm1399 = vcmp.eq.s32.totalorder %v547, %v1285
          %vm1400 = vcmp.eq.s32.totalorder %v547, %v1300
          %vm1401 = vcmp.eq.s32.totalorder %v547, %v1315
          %vm1402 = vcmp.eq.s32.totalorder %v547, %v1330
          %vm1403 = vcmp.eq.s32.totalorder %v547, %v1345
          %vm1404 = vcmp.eq.s32.totalorder %v547, %v1360
          %vm1405 = vcmp.eq.s32.totalorder %v547, %v1375
          %vm1406 = vcmp.eq.s32.totalorder %v547, %v1390
          %vm1407 = vmor %vm1039, %vm1391
          %vm1408 = vmor %vm1040, %vm1392
          %vm1409 = vmor %vm1041, %vm1393
          %vm1410 = vmor %vm1042, %vm1394
          %vm1411 = vmor %vm1043, %vm1395
          %vm1412 = vmor %vm1044, %vm1396
          %vm1413 = vmor %vm1045, %vm1397
          %vm1414 = vmor %vm1046, %vm1398
          %vm1415 = vmor %vm1047, %vm1399
          %vm1416 = vmor %vm1048, %vm1400
          %vm1417 = vmor %vm1049, %vm1401
          %vm1418 = vmor %vm1050, %vm1402
          %vm1419 = vmor %vm1051, %vm1403
          %vm1420 = vmor %vm1052, %vm1404
          %vm1421 = vmor %vm1053, %vm1405
          %vm1422 = vmor %vm1054, %vm1406
          %v1423 = vsel %vm1391, -1e+30, %v1055
          %v1424 = vsel %vm1392, -1e+30, %v1056
          %v1425 = vsel %vm1393, -1e+30, %v1057
          %v1426 = vsel %vm1394, -1e+30, %v1058
          %v1427 = vsel %vm1395, -1e+30, %v1059
          %v1428 = vsel %vm1396, -1e+30, %v1060
          %v1429 = vsel %vm1397, -1e+30, %v1061
          %v1430 = vsel %vm1398, -1e+30, %v1062
          %v1431 = vsel %vm1399, -1e+30, %v1063
          %v1432 = vsel %vm1400, -1e+30, %v1064
          %v1433 = vsel %vm1401, -1e+30, %v1065
          %v1434 = vsel %vm1402, -1e+30, %v1066
          %v1435 = vsel %vm1403, -1e+30, %v1067
          %v1436 = vsel %vm1404, -1e+30, %v1068
          %v1437 = vsel %vm1405, -1e+30, %v1069
          %v1438 = vsel %vm1406, -1e+30, %v1070
          %v1439 = vsel %vm718, %v1423, -inf
          %1440 = vmax.xlane.f32.xlu0 %v1439
          %v1441 = vpop.xlane.xlu0 %1440
          %v1442 = vsel %vm718, %v1424, -inf
          %1443 = vmax.xlane.f32.xlu0 %v1442
          %v1444 = vpop.xlane.xlu0 %1443
          %v1445 = vsel %vm718, %v1425, -inf
          %1446 = vmax.xlane.f32.xlu0 %v1445
          %v1447 = vpop.xlane.xlu0 %1446
          %v1448 = vsel %vm718, %v1426, -inf
          %1449 = vmax.xlane.f32.xlu0 %v1448
          %v1450 = vpop.xlane.xlu0 %1449
          %v1451 = vsel %vm718, %v1427, -inf
          %1452 = vmax.xlane.f32.xlu0 %v1451
          %v1453 = vpop.xlane.xlu0 %1452
          %v1454 = vsel %vm718, %v1428, -inf
          %1455 = vmax.xlane.f32.xlu0 %v1454
          %v1456 = vpop.xlane.xlu0 %1455
          %v1457 = vsel %vm718, %v1429, -inf
          %1458 = vmax.xlane.f32.xlu0 %v1457
          %v1459 = vpop.xlane.xlu0 %1458
          %v1460 = vsel %vm718, %v1430, -inf
          %1461 = vmax.xlane.f32.xlu0 %v1460
          %v1462 = vpop.xlane.xlu0 %1461
          %v1463 = vsel %vm718, %v1431, -inf
          %1464 = vmax.xlane.f32.xlu0 %v1463
          %v1465 = vpop.xlane.xlu0 %1464
          %v1466 = vsel %vm718, %v1432, -inf
          %1467 = vmax.xlane.f32.xlu0 %v1466
          %v1468 = vpop.xlane.xlu0 %1467
          %v1469 = vsel %vm718, %v1433, -inf
          %1470 = vmax.xlane.f32.xlu0 %v1469
          %v1471 = vpop.xlane.xlu0 %1470
          %v1472 = vsel %vm718, %v1434, -inf
          %1473 = vmax.xlane.f32.xlu0 %v1472
          %v1474 = vpop.xlane.xlu0 %1473
          %v1475 = vsel %vm718, %v1435, -inf
          %1476 = vmax.xlane.f32.xlu0 %v1475
          %v1477 = vpop.xlane.xlu0 %1476
          %v1478 = vsel %vm718, %v1436, -inf
          %1479 = vmax.xlane.f32.xlu0 %v1478
          %v1480 = vpop.xlane.xlu0 %1479
          %v1481 = vsel %vm718, %v1437, -inf
          %1482 = vmax.xlane.f32.xlu0 %v1481
          %v1483 = vpop.xlane.xlu0 %1482
          %v1484 = vsel %vm718, %v1438, -inf
          %1485 = vmax.xlane.f32.xlu0 %v1484
          %v1486 = vpop.xlane.xlu0 %1485
          %vm1487 = vcmp.eq.f32.partialorder %v1423, %v1441
          %vm1488 = vcmp.eq.f32.partialorder %v1424, %v1444
          %vm1489 = vcmp.eq.f32.partialorder %v1425, %v1447
          %vm1490 = vcmp.eq.f32.partialorder %v1426, %v1450
          %vm1491 = vcmp.eq.f32.partialorder %v1427, %v1453
          %vm1492 = vcmp.eq.f32.partialorder %v1428, %v1456
          %vm1493 = vcmp.eq.f32.partialorder %v1429, %v1459
          %vm1494 = vcmp.eq.f32.partialorder %v1430, %v1462
          %vm1495 = vcmp.eq.f32.partialorder %v1431, %v1465
          %vm1496 = vcmp.eq.f32.partialorder %v1432, %v1468
          %vm1497 = vcmp.eq.f32.partialorder %v1433, %v1471
          %vm1498 = vcmp.eq.f32.partialorder %v1434, %v1474
          %vm1499 = vcmp.eq.f32.partialorder %v1435, %v1477
          %vm1500 = vcmp.eq.f32.partialorder %v1436, %v1480
          %vm1501 = vcmp.eq.f32.partialorder %v1437, %v1483
          %vm1502 = vcmp.eq.f32.partialorder %v1438, %v1486
          %v1503 = vsel %vm1487, %v547, 8
          %v1504 = vsel %vm1488, %v547, 8
          %v1505 = vsel %vm1489, %v547, 8
          %v1506 = vsel %vm1490, %v547, 8
          %v1507 = vsel %vm1491, %v547, 8
          %v1508 = vsel %vm1492, %v547, 8
          %v1509 = vsel %vm1493, %v547, 8
          %v1510 = vsel %vm1494, %v547, 8
          %v1511 = vsel %vm1495, %v547, 8
          %v1512 = vsel %vm1496, %v547, 8
          %v1513 = vsel %vm1497, %v547, 8
          %v1514 = vsel %vm1498, %v547, 8
          %v1515 = vsel %vm1499, %v547, 8
          %v1516 = vsel %vm1500, %v547, 8
          %v1517 = vsel %vm1501, %v547, 8
          %v1518 = vsel %vm1502, %v547, 8
          %v1519 = vsel %vm718, %v1503, 2147483647
          %v1520 = vand.u32 %v1519, 65535
          %v1521 = vshra.s32 %v1519, 16
          %v1522 = vcvt.s32.f32 %v1520
          %v1523 = vcvt.s32.f32 %v1521
          %1524 = vmin.xlane.f32.xlu0 %v1523
          %v1525 = vpop.xlane.xlu0 %1524
          %vm1526 = vcmp.eq.f32.partialorder %v1523, %v1525
          %v1527 = vsel %vm1526, %v1522, inf
          %1528 = vmin.xlane.f32.xlu0 %v1527
          %v1529 = vpop.xlane.xlu0 %1528
          %v1530 = vcvt.f32.s32 %v1529
          %v1531 = vcvt.f32.s32 %v1525
          %v1532 = vshll.u32 %v1531, 16
          %v1533 = vadd.s32 %v1532, %v1530
          %v1534 = vsel %vm718, %v1504, 2147483647
          %v1535 = vand.u32 %v1534, 65535
          %v1536 = vshra.s32 %v1534, 16
          %v1537 = vcvt.s32.f32 %v1535
          %v1538 = vcvt.s32.f32 %v1536
          %1539 = vmin.xlane.f32.xlu0 %v1538
          %v1540 = vpop.xlane.xlu0 %1539
          %vm1541 = vcmp.eq.f32.partialorder %v1538, %v1540
          %v1542 = vsel %vm1541, %v1537, inf
          %1543 = vmin.xlane.f32.xlu0 %v1542
          %v1544 = vpop.xlane.xlu0 %1543
          %v1545 = vcvt.f32.s32 %v1544
          %v1546 = vcvt.f32.s32 %v1540
          %v1547 = vshll.u32 %v1546, 16
          %v1548 = vadd.s32 %v1547, %v1545
          %v1549 = vsel %vm718, %v1505, 2147483647
          %v1550 = vand.u32 %v1549, 65535
          %v1551 = vshra.s32 %v1549, 16
          %v1552 = vcvt.s32.f32 %v1550
          %v1553 = vcvt.s32.f32 %v1551
          %1554 = vmin.xlane.f32.xlu0 %v1553
          %v1555 = vpop.xlane.xlu0 %1554
          %vm1556 = vcmp.eq.f32.partialorder %v1553, %v1555
          %v1557 = vsel %vm1556, %v1552, inf
          %1558 = vmin.xlane.f32.xlu0 %v1557
          %v1559 = vpop.xlane.xlu0 %1558
          %v1560 = vcvt.f32.s32 %v1559
          %v1561 = vcvt.f32.s32 %v1555
          %v1562 = vshll.u32 %v1561, 16
          %v1563 = vadd.s32 %v1562, %v1560
          %v1564 = vsel %vm718, %v1506, 2147483647
          %v1565 = vand.u32 %v1564, 65535
          %v1566 = vshra.s32 %v1564, 16
          %v1567 = vcvt.s32.f32 %v1565
          %v1568 = vcvt.s32.f32 %v1566
          %1569 = vmin.xlane.f32.xlu0 %v1568
          %v1570 = vpop.xlane.xlu0 %1569
          %vm1571 = vcmp.eq.f32.partialorder %v1568, %v1570
          %v1572 = vsel %vm1571, %v1567, inf
          %1573 = vmin.xlane.f32.xlu0 %v1572
          %v1574 = vpop.xlane.xlu0 %1573
          %v1575 = vcvt.f32.s32 %v1574
          %v1576 = vcvt.f32.s32 %v1570
          %v1577 = vshll.u32 %v1576, 16
          %v1578 = vadd.s32 %v1577, %v1575
          %v1579 = vsel %vm718, %v1507, 2147483647
          %v1580 = vand.u32 %v1579, 65535
          %v1581 = vshra.s32 %v1579, 16
          %v1582 = vcvt.s32.f32 %v1580
          %v1583 = vcvt.s32.f32 %v1581
          %1584 = vmin.xlane.f32.xlu0 %v1583
          %v1585 = vpop.xlane.xlu0 %1584
          %vm1586 = vcmp.eq.f32.partialorder %v1583, %v1585
          %v1587 = vsel %vm1586, %v1582, inf
          %1588 = vmin.xlane.f32.xlu0 %v1587
          %v1589 = vpop.xlane.xlu0 %1588
          %v1590 = vcvt.f32.s32 %v1589
          %v1591 = vcvt.f32.s32 %v1585
          %v1592 = vshll.u32 %v1591, 16
          %v1593 = vadd.s32 %v1592, %v1590
          %v1594 = vsel %vm718, %v1508, 2147483647
          %v1595 = vand.u32 %v1594, 65535
          %v1596 = vshra.s32 %v1594, 16
          %v1597 = vcvt.s32.f32 %v1595
          %v1598 = vcvt.s32.f32 %v1596
          %1599 = vmin.xlane.f32.xlu0 %v1598
          %v1600 = vpop.xlane.xlu0 %1599
          %vm1601 = vcmp.eq.f32.partialorder %v1598, %v1600
          %v1602 = vsel %vm1601, %v1597, inf
          %1603 = vmin.xlane.f32.xlu0 %v1602
          %v1604 = vpop.xlane.xlu0 %1603
          %v1605 = vcvt.f32.s32 %v1604
          %v1606 = vcvt.f32.s32 %v1600
          %v1607 = vshll.u32 %v1606, 16
          %v1608 = vadd.s32 %v1607, %v1605
          %v1609 = vsel %vm718, %v1509, 2147483647
          %v1610 = vand.u32 %v1609, 65535
          %v1611 = vshra.s32 %v1609, 16
          %v1612 = vcvt.s32.f32 %v1610
          %v1613 = vcvt.s32.f32 %v1611
          %1614 = vmin.xlane.f32.xlu0 %v1613
          %v1615 = vpop.xlane.xlu0 %1614
          %vm1616 = vcmp.eq.f32.partialorder %v1613, %v1615
          %v1617 = vsel %vm1616, %v1612, inf
          %1618 = vmin.xlane.f32.xlu0 %v1617
          %v1619 = vpop.xlane.xlu0 %1618
          %v1620 = vcvt.f32.s32 %v1619
          %v1621 = vcvt.f32.s32 %v1615
          %v1622 = vshll.u32 %v1621, 16
          %v1623 = vadd.s32 %v1622, %v1620
          %v1624 = vsel %vm718, %v1510, 2147483647
          %v1625 = vand.u32 %v1624, 65535
          %v1626 = vshra.s32 %v1624, 16
          %v1627 = vcvt.s32.f32 %v1625
          %v1628 = vcvt.s32.f32 %v1626
          %1629 = vmin.xlane.f32.xlu0 %v1628
          %v1630 = vpop.xlane.xlu0 %1629
          %vm1631 = vcmp.eq.f32.partialorder %v1628, %v1630
          %v1632 = vsel %vm1631, %v1627, inf
          %1633 = vmin.xlane.f32.xlu0 %v1632
          %v1634 = vpop.xlane.xlu0 %1633
          %v1635 = vcvt.f32.s32 %v1634
          %v1636 = vcvt.f32.s32 %v1630
          %v1637 = vshll.u32 %v1636, 16
          %v1638 = vadd.s32 %v1637, %v1635
          %v1639 = vsel %vm718, %v1511, 2147483647
          %v1640 = vand.u32 %v1639, 65535
          %v1641 = vshra.s32 %v1639, 16
          %v1642 = vcvt.s32.f32 %v1640
          %v1643 = vcvt.s32.f32 %v1641
          %1644 = vmin.xlane.f32.xlu0 %v1643
          %v1645 = vpop.xlane.xlu0 %1644
          %vm1646 = vcmp.eq.f32.partialorder %v1643, %v1645
          %v1647 = vsel %vm1646, %v1642, inf
          %1648 = vmin.xlane.f32.xlu0 %v1647
          %v1649 = vpop.xlane.xlu0 %1648
          %v1650 = vcvt.f32.s32 %v1649
          %v1651 = vcvt.f32.s32 %v1645
          %v1652 = vshll.u32 %v1651, 16
          %v1653 = vadd.s32 %v1652, %v1650
          %v1654 = vsel %vm718, %v1512, 2147483647
          %v1655 = vand.u32 %v1654, 65535
          %v1656 = vshra.s32 %v1654, 16
          %v1657 = vcvt.s32.f32 %v1655
          %v1658 = vcvt.s32.f32 %v1656
          %1659 = vmin.xlane.f32.xlu0 %v1658
          %v1660 = vpop.xlane.xlu0 %1659
          %vm1661 = vcmp.eq.f32.partialorder %v1658, %v1660
          %v1662 = vsel %vm1661, %v1657, inf
          %1663 = vmin.xlane.f32.xlu0 %v1662
          %v1664 = vpop.xlane.xlu0 %1663
          %v1665 = vcvt.f32.s32 %v1664
          %v1666 = vcvt.f32.s32 %v1660
          %v1667 = vshll.u32 %v1666, 16
          %v1668 = vadd.s32 %v1667, %v1665
          %v1669 = vsel %vm718, %v1513, 2147483647
          %v1670 = vand.u32 %v1669, 65535
          %v1671 = vshra.s32 %v1669, 16
          %v1672 = vcvt.s32.f32 %v1670
          %v1673 = vcvt.s32.f32 %v1671
          %1674 = vmin.xlane.f32.xlu0 %v1673
          %v1675 = vpop.xlane.xlu0 %1674
          %vm1676 = vcmp.eq.f32.partialorder %v1673, %v1675
          %v1677 = vsel %vm1676, %v1672, inf
          %1678 = vmin.xlane.f32.xlu0 %v1677
          %v1679 = vpop.xlane.xlu0 %1678
          %v1680 = vcvt.f32.s32 %v1679
          %v1681 = vcvt.f32.s32 %v1675
          %v1682 = vshll.u32 %v1681, 16
          %v1683 = vadd.s32 %v1682, %v1680
          %v1684 = vsel %vm718, %v1514, 2147483647
          %v1685 = vand.u32 %v1684, 65535
          %v1686 = vshra.s32 %v1684, 16
          %v1687 = vcvt.s32.f32 %v1685
          %v1688 = vcvt.s32.f32 %v1686
          %1689 = vmin.xlane.f32.xlu0 %v1688
          %v1690 = vpop.xlane.xlu0 %1689
          %vm1691 = vcmp.eq.f32.partialorder %v1688, %v1690
          %v1692 = vsel %vm1691, %v1687, inf
          %1693 = vmin.xlane.f32.xlu0 %v1692
          %v1694 = vpop.xlane.xlu0 %1693
          %v1695 = vcvt.f32.s32 %v1694
          %v1696 = vcvt.f32.s32 %v1690
          %v1697 = vshll.u32 %v1696, 16
          %v1698 = vadd.s32 %v1697, %v1695
          %v1699 = vsel %vm718, %v1515, 2147483647
          %v1700 = vand.u32 %v1699, 65535
          %v1701 = vshra.s32 %v1699, 16
          %v1702 = vcvt.s32.f32 %v1700
          %v1703 = vcvt.s32.f32 %v1701
          %1704 = vmin.xlane.f32.xlu0 %v1703
          %v1705 = vpop.xlane.xlu0 %1704
          %vm1706 = vcmp.eq.f32.partialorder %v1703, %v1705
          %v1707 = vsel %vm1706, %v1702, inf
          %1708 = vmin.xlane.f32.xlu0 %v1707
          %v1709 = vpop.xlane.xlu0 %1708
          %v1710 = vcvt.f32.s32 %v1709
          %v1711 = vcvt.f32.s32 %v1705
          %v1712 = vshll.u32 %v1711, 16
          %v1713 = vadd.s32 %v1712, %v1710
          %v1714 = vsel %vm718, %v1516, 2147483647
          %v1715 = vand.u32 %v1714, 65535
          %v1716 = vshra.s32 %v1714, 16
          %v1717 = vcvt.s32.f32 %v1715
          %v1718 = vcvt.s32.f32 %v1716
          %1719 = vmin.xlane.f32.xlu0 %v1718
          %v1720 = vpop.xlane.xlu0 %1719
          %vm1721 = vcmp.eq.f32.partialorder %v1718, %v1720
          %v1722 = vsel %vm1721, %v1717, inf
          %1723 = vmin.xlane.f32.xlu0 %v1722
          %v1724 = vpop.xlane.xlu0 %1723
          %v1725 = vcvt.f32.s32 %v1724
          %v1726 = vcvt.f32.s32 %v1720
          %v1727 = vshll.u32 %v1726, 16
          %v1728 = vadd.s32 %v1727, %v1725
          %v1729 = vsel %vm718, %v1517, 2147483647
          %v1730 = vand.u32 %v1729, 65535
          %v1731 = vshra.s32 %v1729, 16
          %v1732 = vcvt.s32.f32 %v1730
          %v1733 = vcvt.s32.f32 %v1731
          %1734 = vmin.xlane.f32.xlu0 %v1733
          %v1735 = vpop.xlane.xlu0 %1734
          %vm1736 = vcmp.eq.f32.partialorder %v1733, %v1735
          %v1737 = vsel %vm1736, %v1732, inf
          %1738 = vmin.xlane.f32.xlu0 %v1737
          %v1739 = vpop.xlane.xlu0 %1738
          %v1740 = vcvt.f32.s32 %v1739
          %v1741 = vcvt.f32.s32 %v1735
          %v1742 = vshll.u32 %v1741, 16
          %v1743 = vadd.s32 %v1742, %v1740
          %v1744 = vsel %vm718, %v1518, 2147483647
          %v1745 = vand.u32 %v1744, 65535
          %v1746 = vshra.s32 %v1744, 16
          %v1747 = vcvt.s32.f32 %v1745
          %v1748 = vcvt.s32.f32 %v1746
          %1749 = vmin.xlane.f32.xlu0 %v1748
          %v1750 = vpop.xlane.xlu0 %1749
          %vm1751 = vcmp.eq.f32.partialorder %v1748, %v1750
          %v1752 = vsel %vm1751, %v1747, inf
          %1753 = vmin.xlane.f32.xlu0 %v1752
          %v1754 = vpop.xlane.xlu0 %1753
          %v1755 = vcvt.f32.s32 %v1754
          %v1756 = vcvt.f32.s32 %v1750
          %v1757 = vshll.u32 %v1756, 16
          %v1758 = vadd.s32 %v1757, %v1755
          %vm1759 = vcmp.eq.s32.totalorder %v547, %v1533
          %vm1760 = vcmp.eq.s32.totalorder %v547, %v1548
          %vm1761 = vcmp.eq.s32.totalorder %v547, %v1563
          %vm1762 = vcmp.eq.s32.totalorder %v547, %v1578
          %vm1763 = vcmp.eq.s32.totalorder %v547, %v1593
          %vm1764 = vcmp.eq.s32.totalorder %v547, %v1608
          %vm1765 = vcmp.eq.s32.totalorder %v547, %v1623
          %vm1766 = vcmp.eq.s32.totalorder %v547, %v1638
          %vm1767 = vcmp.eq.s32.totalorder %v547, %v1653
          %vm1768 = vcmp.eq.s32.totalorder %v547, %v1668
          %vm1769 = vcmp.eq.s32.totalorder %v547, %v1683
          %vm1770 = vcmp.eq.s32.totalorder %v547, %v1698
          %vm1771 = vcmp.eq.s32.totalorder %v547, %v1713
          %vm1772 = vcmp.eq.s32.totalorder %v547, %v1728
          %vm1773 = vcmp.eq.s32.totalorder %v547, %v1743
          %vm1774 = vcmp.eq.s32.totalorder %v547, %v1758
          %vm1775 = vmor %vm1407, %vm1759
          %vm1776 = vmor %vm1408, %vm1760
          %vm1777 = vmor %vm1409, %vm1761
          %vm1778 = vmor %vm1410, %vm1762
          %vm1779 = vmor %vm1411, %vm1763
          %vm1780 = vmor %vm1412, %vm1764
          %vm1781 = vmor %vm1413, %vm1765
          %vm1782 = vmor %vm1414, %vm1766
          %vm1783 = vmor %vm1415, %vm1767
          %vm1784 = vmor %vm1416, %vm1768
          %vm1785 = vmor %vm1417, %vm1769
          %vm1786 = vmor %vm1418, %vm1770
          %vm1787 = vmor %vm1419, %vm1771
          %vm1788 = vmor %vm1420, %vm1772
          %vm1789 = vmor %vm1421, %vm1773
          %vm1790 = vmor %vm1422, %vm1774
          %v1791 = vsel %vm1759, -1e+30, %v1423
          %v1792 = vsel %vm1760, -1e+30, %v1424
          %v1793 = vsel %vm1761, -1e+30, %v1425
          %v1794 = vsel %vm1762, -1e+30, %v1426
          %v1795 = vsel %vm1763, -1e+30, %v1427
          %v1796 = vsel %vm1764, -1e+30, %v1428
          %v1797 = vsel %vm1765, -1e+30, %v1429
          %v1798 = vsel %vm1766, -1e+30, %v1430
          %v1799 = vsel %vm1767, -1e+30, %v1431
          %v1800 = vsel %vm1768, -1e+30, %v1432
          %v1801 = vsel %vm1769, -1e+30, %v1433
          %v1802 = vsel %vm1770, -1e+30, %v1434
          %v1803 = vsel %vm1771, -1e+30, %v1435
          %v1804 = vsel %vm1772, -1e+30, %v1436
          %v1805 = vsel %vm1773, -1e+30, %v1437
          %v1806 = vsel %vm1774, -1e+30, %v1438
          %v1807 = vsel %vm718, %v1791, -inf
          %1808 = vmax.xlane.f32.xlu0 %v1807
          %v1809 = vpop.xlane.xlu0 %1808
          %v1810 = vsel %vm718, %v1792, -inf
          %1811 = vmax.xlane.f32.xlu0 %v1810
          %v1812 = vpop.xlane.xlu0 %1811
          %v1813 = vsel %vm718, %v1793, -inf
          %1814 = vmax.xlane.f32.xlu0 %v1813
          %v1815 = vpop.xlane.xlu0 %1814
          %v1816 = vsel %vm718, %v1794, -inf
          %1817 = vmax.xlane.f32.xlu0 %v1816
          %v1818 = vpop.xlane.xlu0 %1817
          %v1819 = vsel %vm718, %v1795, -inf
          %1820 = vmax.xlane.f32.xlu0 %v1819
          %v1821 = vpop.xlane.xlu0 %1820
          %v1822 = vsel %vm718, %v1796, -inf
          %1823 = vmax.xlane.f32.xlu0 %v1822
          %v1824 = vpop.xlane.xlu0 %1823
          %v1825 = vsel %vm718, %v1797, -inf
          %1826 = vmax.xlane.f32.xlu0 %v1825
          %v1827 = vpop.xlane.xlu0 %1826
          %v1828 = vsel %vm718, %v1798, -inf
          %1829 = vmax.xlane.f32.xlu0 %v1828
          %v1830 = vpop.xlane.xlu0 %1829
          %v1831 = vsel %vm718, %v1799, -inf
          %1832 = vmax.xlane.f32.xlu0 %v1831
          %v1833 = vpop.xlane.xlu0 %1832
          %v1834 = vsel %vm718, %v1800, -inf
          %1835 = vmax.xlane.f32.xlu0 %v1834
          %v1836 = vpop.xlane.xlu0 %1835
          %v1837 = vsel %vm718, %v1801, -inf
          %1838 = vmax.xlane.f32.xlu0 %v1837
          %v1839 = vpop.xlane.xlu0 %1838
          %v1840 = vsel %vm718, %v1802, -inf
          %1841 = vmax.xlane.f32.xlu0 %v1840
          %v1842 = vpop.xlane.xlu0 %1841
          %v1843 = vsel %vm718, %v1803, -inf
          %1844 = vmax.xlane.f32.xlu0 %v1843
          %v1845 = vpop.xlane.xlu0 %1844
          %v1846 = vsel %vm718, %v1804, -inf
          %1847 = vmax.xlane.f32.xlu0 %v1846
          %v1848 = vpop.xlane.xlu0 %1847
          %v1849 = vsel %vm718, %v1805, -inf
          %1850 = vmax.xlane.f32.xlu0 %v1849
          %v1851 = vpop.xlane.xlu0 %1850
          %v1852 = vsel %vm718, %v1806, -inf
          %1853 = vmax.xlane.f32.xlu0 %v1852
          %v1854 = vpop.xlane.xlu0 %1853
          %vm1855 = vcmp.eq.f32.partialorder %v1791, %v1809
          %vm1856 = vcmp.eq.f32.partialorder %v1792, %v1812
          %vm1857 = vcmp.eq.f32.partialorder %v1793, %v1815
          %vm1858 = vcmp.eq.f32.partialorder %v1794, %v1818
          %vm1859 = vcmp.eq.f32.partialorder %v1795, %v1821
          %vm1860 = vcmp.eq.f32.partialorder %v1796, %v1824
          %vm1861 = vcmp.eq.f32.partialorder %v1797, %v1827
          %vm1862 = vcmp.eq.f32.partialorder %v1798, %v1830
          %vm1863 = vcmp.eq.f32.partialorder %v1799, %v1833
          %vm1864 = vcmp.eq.f32.partialorder %v1800, %v1836
          %vm1865 = vcmp.eq.f32.partialorder %v1801, %v1839
          %vm1866 = vcmp.eq.f32.partialorder %v1802, %v1842
          %vm1867 = vcmp.eq.f32.partialorder %v1803, %v1845
          %vm1868 = vcmp.eq.f32.partialorder %v1804, %v1848
          %vm1869 = vcmp.eq.f32.partialorder %v1805, %v1851
          %vm1870 = vcmp.eq.f32.partialorder %v1806, %v1854
          %v1871 = vsel %vm1855, %v547, 8
          %v1872 = vsel %vm1856, %v547, 8
          %v1873 = vsel %vm1857, %v547, 8
          %v1874 = vsel %vm1858, %v547, 8
          %v1875 = vsel %vm1859, %v547, 8
          %v1876 = vsel %vm1860, %v547, 8
          %v1877 = vsel %vm1861, %v547, 8
          %v1878 = vsel %vm1862, %v547, 8
          %v1879 = vsel %vm1863, %v547, 8
          %v1880 = vsel %vm1864, %v547, 8
          %v1881 = vsel %vm1865, %v547, 8
          %v1882 = vsel %vm1866, %v547, 8
          %v1883 = vsel %vm1867, %v547, 8
          %v1884 = vsel %vm1868, %v547, 8
          %v1885 = vsel %vm1869, %v547, 8
          %v1886 = vsel %vm1870, %v547, 8
          %v1887 = vsel %vm718, %v1871, 2147483647
          %v1888 = vand.u32 %v1887, 65535
          %v1889 = vshra.s32 %v1887, 16
          %v1890 = vcvt.s32.f32 %v1888
          %v1891 = vcvt.s32.f32 %v1889
          %1892 = vmin.xlane.f32.xlu0 %v1891
          %v1893 = vpop.xlane.xlu0 %1892
          %vm1894 = vcmp.eq.f32.partialorder %v1891, %v1893
          %v1895 = vsel %vm1894, %v1890, inf
          %1896 = vmin.xlane.f32.xlu0 %v1895
          %v1897 = vpop.xlane.xlu0 %1896
          %v1898 = vcvt.f32.s32 %v1897
          %v1899 = vcvt.f32.s32 %v1893
          %v1900 = vshll.u32 %v1899, 16
          %v1901 = vadd.s32 %v1900, %v1898
          %v1902 = vsel %vm718, %v1872, 2147483647
          %v1903 = vand.u32 %v1902, 65535
          %v1904 = vshra.s32 %v1902, 16
          %v1905 = vcvt.s32.f32 %v1903
          %v1906 = vcvt.s32.f32 %v1904
          %1907 = vmin.xlane.f32.xlu0 %v1906
          %v1908 = vpop.xlane.xlu0 %1907
          %vm1909 = vcmp.eq.f32.partialorder %v1906, %v1908
          %v1910 = vsel %vm1909, %v1905, inf
          %1911 = vmin.xlane.f32.xlu0 %v1910
          %v1912 = vpop.xlane.xlu0 %1911
          %v1913 = vcvt.f32.s32 %v1912
          %v1914 = vcvt.f32.s32 %v1908
          %v1915 = vshll.u32 %v1914, 16
          %v1916 = vadd.s32 %v1915, %v1913
          %v1917 = vsel %vm718, %v1873, 2147483647
          %v1918 = vand.u32 %v1917, 65535
          %v1919 = vshra.s32 %v1917, 16
          %v1920 = vcvt.s32.f32 %v1918
          %v1921 = vcvt.s32.f32 %v1919
          %1922 = vmin.xlane.f32.xlu0 %v1921
          %v1923 = vpop.xlane.xlu0 %1922
          %vm1924 = vcmp.eq.f32.partialorder %v1921, %v1923
          %v1925 = vsel %vm1924, %v1920, inf
          %1926 = vmin.xlane.f32.xlu0 %v1925
          %v1927 = vpop.xlane.xlu0 %1926
          %v1928 = vcvt.f32.s32 %v1927
          %v1929 = vcvt.f32.s32 %v1923
          %v1930 = vshll.u32 %v1929, 16
          %v1931 = vadd.s32 %v1930, %v1928
          %v1932 = vsel %vm718, %v1874, 2147483647
          %v1933 = vand.u32 %v1932, 65535
          %v1934 = vshra.s32 %v1932, 16
          %v1935 = vcvt.s32.f32 %v1933
          %v1936 = vcvt.s32.f32 %v1934
          %1937 = vmin.xlane.f32.xlu0 %v1936
          %v1938 = vpop.xlane.xlu0 %1937
          %vm1939 = vcmp.eq.f32.partialorder %v1936, %v1938
          %v1940 = vsel %vm1939, %v1935, inf
          %1941 = vmin.xlane.f32.xlu0 %v1940
          %v1942 = vpop.xlane.xlu0 %1941
          %v1943 = vcvt.f32.s32 %v1942
          %v1944 = vcvt.f32.s32 %v1938
          %v1945 = vshll.u32 %v1944, 16
          %v1946 = vadd.s32 %v1945, %v1943
          %v1947 = vsel %vm718, %v1875, 2147483647
          %v1948 = vand.u32 %v1947, 65535
          %v1949 = vshra.s32 %v1947, 16
          %v1950 = vcvt.s32.f32 %v1948
          %v1951 = vcvt.s32.f32 %v1949
          %1952 = vmin.xlane.f32.xlu0 %v1951
          %v1953 = vpop.xlane.xlu0 %1952
          %vm1954 = vcmp.eq.f32.partialorder %v1951, %v1953
          %v1955 = vsel %vm1954, %v1950, inf
          %1956 = vmin.xlane.f32.xlu0 %v1955
          %v1957 = vpop.xlane.xlu0 %1956
          %v1958 = vcvt.f32.s32 %v1957
          %v1959 = vcvt.f32.s32 %v1953
          %v1960 = vshll.u32 %v1959, 16
          %v1961 = vadd.s32 %v1960, %v1958
          %v1962 = vsel %vm718, %v1876, 2147483647
          %v1963 = vand.u32 %v1962, 65535
          %v1964 = vshra.s32 %v1962, 16
          %v1965 = vcvt.s32.f32 %v1963
          %v1966 = vcvt.s32.f32 %v1964
          %1967 = vmin.xlane.f32.xlu0 %v1966
          %v1968 = vpop.xlane.xlu0 %1967
          %vm1969 = vcmp.eq.f32.partialorder %v1966, %v1968
          %v1970 = vsel %vm1969, %v1965, inf
          %1971 = vmin.xlane.f32.xlu0 %v1970
          %v1972 = vpop.xlane.xlu0 %1971
          %v1973 = vcvt.f32.s32 %v1972
          %v1974 = vcvt.f32.s32 %v1968
          %v1975 = vshll.u32 %v1974, 16
          %v1976 = vadd.s32 %v1975, %v1973
          %v1977 = vsel %vm718, %v1877, 2147483647
          %v1978 = vand.u32 %v1977, 65535
          %v1979 = vshra.s32 %v1977, 16
          %v1980 = vcvt.s32.f32 %v1978
          %v1981 = vcvt.s32.f32 %v1979
          %1982 = vmin.xlane.f32.xlu0 %v1981
          %v1983 = vpop.xlane.xlu0 %1982
          %vm1984 = vcmp.eq.f32.partialorder %v1981, %v1983
          %v1985 = vsel %vm1984, %v1980, inf
          %1986 = vmin.xlane.f32.xlu0 %v1985
          %v1987 = vpop.xlane.xlu0 %1986
          %v1988 = vcvt.f32.s32 %v1987
          %v1989 = vcvt.f32.s32 %v1983
          %v1990 = vshll.u32 %v1989, 16
          %v1991 = vadd.s32 %v1990, %v1988
          %v1992 = vsel %vm718, %v1878, 2147483647
          %v1993 = vand.u32 %v1992, 65535
          %v1994 = vshra.s32 %v1992, 16
          %v1995 = vcvt.s32.f32 %v1993
          %v1996 = vcvt.s32.f32 %v1994
          %1997 = vmin.xlane.f32.xlu0 %v1996
          %v1998 = vpop.xlane.xlu0 %1997
          %vm1999 = vcmp.eq.f32.partialorder %v1996, %v1998
          %v2000 = vsel %vm1999, %v1995, inf
          %2001 = vmin.xlane.f32.xlu0 %v2000
          %v2002 = vpop.xlane.xlu0 %2001
          %v2003 = vcvt.f32.s32 %v2002
          %v2004 = vcvt.f32.s32 %v1998
          %v2005 = vshll.u32 %v2004, 16
          %v2006 = vadd.s32 %v2005, %v2003
          %v2007 = vsel %vm718, %v1879, 2147483647
          %v2008 = vand.u32 %v2007, 65535
          %v2009 = vshra.s32 %v2007, 16
          %v2010 = vcvt.s32.f32 %v2008
          %v2011 = vcvt.s32.f32 %v2009
          %2012 = vmin.xlane.f32.xlu0 %v2011
          %v2013 = vpop.xlane.xlu0 %2012
          %vm2014 = vcmp.eq.f32.partialorder %v2011, %v2013
          %v2015 = vsel %vm2014, %v2010, inf
          %2016 = vmin.xlane.f32.xlu0 %v2015
          %v2017 = vpop.xlane.xlu0 %2016
          %v2018 = vcvt.f32.s32 %v2017
          %v2019 = vcvt.f32.s32 %v2013
          %v2020 = vshll.u32 %v2019, 16
          %v2021 = vadd.s32 %v2020, %v2018
          %v2022 = vsel %vm718, %v1880, 2147483647
          %v2023 = vand.u32 %v2022, 65535
          %v2024 = vshra.s32 %v2022, 16
          %v2025 = vcvt.s32.f32 %v2023
          %v2026 = vcvt.s32.f32 %v2024
          %2027 = vmin.xlane.f32.xlu0 %v2026
          %v2028 = vpop.xlane.xlu0 %2027
          %vm2029 = vcmp.eq.f32.partialorder %v2026, %v2028
          %v2030 = vsel %vm2029, %v2025, inf
          %2031 = vmin.xlane.f32.xlu0 %v2030
          %v2032 = vpop.xlane.xlu0 %2031
          %v2033 = vcvt.f32.s32 %v2032
          %v2034 = vcvt.f32.s32 %v2028
          %v2035 = vshll.u32 %v2034, 16
          %v2036 = vadd.s32 %v2035, %v2033
          %v2037 = vsel %vm718, %v1881, 2147483647
          %v2038 = vand.u32 %v2037, 65535
          %v2039 = vshra.s32 %v2037, 16
          %v2040 = vcvt.s32.f32 %v2038
          %v2041 = vcvt.s32.f32 %v2039
          %2042 = vmin.xlane.f32.xlu0 %v2041
          %v2043 = vpop.xlane.xlu0 %2042
          %vm2044 = vcmp.eq.f32.partialorder %v2041, %v2043
          %v2045 = vsel %vm2044, %v2040, inf
          %2046 = vmin.xlane.f32.xlu0 %v2045
          %v2047 = vpop.xlane.xlu0 %2046
          %v2048 = vcvt.f32.s32 %v2047
          %v2049 = vcvt.f32.s32 %v2043
          %v2050 = vshll.u32 %v2049, 16
          %v2051 = vadd.s32 %v2050, %v2048
          %v2052 = vsel %vm718, %v1882, 2147483647
          %v2053 = vand.u32 %v2052, 65535
          %v2054 = vshra.s32 %v2052, 16
          %v2055 = vcvt.s32.f32 %v2053
          %v2056 = vcvt.s32.f32 %v2054
          %2057 = vmin.xlane.f32.xlu0 %v2056
          %v2058 = vpop.xlane.xlu0 %2057
          %vm2059 = vcmp.eq.f32.partialorder %v2056, %v2058
          %v2060 = vsel %vm2059, %v2055, inf
          %2061 = vmin.xlane.f32.xlu0 %v2060
          %v2062 = vpop.xlane.xlu0 %2061
          %v2063 = vcvt.f32.s32 %v2062
          %v2064 = vcvt.f32.s32 %v2058
          %v2065 = vshll.u32 %v2064, 16
          %v2066 = vadd.s32 %v2065, %v2063
          %v2067 = vsel %vm718, %v1883, 2147483647
          %v2068 = vand.u32 %v2067, 65535
          %v2069 = vshra.s32 %v2067, 16
          %v2070 = vcvt.s32.f32 %v2068
          %v2071 = vcvt.s32.f32 %v2069
          %2072 = vmin.xlane.f32.xlu0 %v2071
          %v2073 = vpop.xlane.xlu0 %2072
          %vm2074 = vcmp.eq.f32.partialorder %v2071, %v2073
          %v2075 = vsel %vm2074, %v2070, inf
          %2076 = vmin.xlane.f32.xlu0 %v2075
          %v2077 = vpop.xlane.xlu0 %2076
          %v2078 = vcvt.f32.s32 %v2077
          %v2079 = vcvt.f32.s32 %v2073
          %v2080 = vshll.u32 %v2079, 16
          %v2081 = vadd.s32 %v2080, %v2078
          %v2082 = vsel %vm718, %v1884, 2147483647
          %v2083 = vand.u32 %v2082, 65535
          %v2084 = vshra.s32 %v2082, 16
          %v2085 = vcvt.s32.f32 %v2083
          %v2086 = vcvt.s32.f32 %v2084
          %2087 = vmin.xlane.f32.xlu0 %v2086
          %v2088 = vpop.xlane.xlu0 %2087
          %vm2089 = vcmp.eq.f32.partialorder %v2086, %v2088
          %v2090 = vsel %vm2089, %v2085, inf
          %2091 = vmin.xlane.f32.xlu0 %v2090
          %v2092 = vpop.xlane.xlu0 %2091
          %v2093 = vcvt.f32.s32 %v2092
          %v2094 = vcvt.f32.s32 %v2088
          %v2095 = vshll.u32 %v2094, 16
          %v2096 = vadd.s32 %v2095, %v2093
          %v2097 = vsel %vm718, %v1885, 2147483647
          %v2098 = vand.u32 %v2097, 65535
          %v2099 = vshra.s32 %v2097, 16
          %v2100 = vcvt.s32.f32 %v2098
          %v2101 = vcvt.s32.f32 %v2099
          %2102 = vmin.xlane.f32.xlu0 %v2101
          %v2103 = vpop.xlane.xlu0 %2102
          %vm2104 = vcmp.eq.f32.partialorder %v2101, %v2103
          %v2105 = vsel %vm2104, %v2100, inf
          %2106 = vmin.xlane.f32.xlu0 %v2105
          %v2107 = vpop.xlane.xlu0 %2106
          %v2108 = vcvt.f32.s32 %v2107
          %v2109 = vcvt.f32.s32 %v2103
          %v2110 = vshll.u32 %v2109, 16
          %v2111 = vadd.s32 %v2110, %v2108
          %v2112 = vsel %vm718, %v1886, 2147483647
          %v2113 = vand.u32 %v2112, 65535
          %v2114 = vshra.s32 %v2112, 16
          %v2115 = vcvt.s32.f32 %v2113
          %v2116 = vcvt.s32.f32 %v2114
          %2117 = vmin.xlane.f32.xlu0 %v2116
          %v2118 = vpop.xlane.xlu0 %2117
          %vm2119 = vcmp.eq.f32.partialorder %v2116, %v2118
          %v2120 = vsel %vm2119, %v2115, inf
          %2121 = vmin.xlane.f32.xlu0 %v2120
          %v2122 = vpop.xlane.xlu0 %2121
          %v2123 = vcvt.f32.s32 %v2122
          %v2124 = vcvt.f32.s32 %v2118
          %v2125 = vshll.u32 %v2124, 16
          %v2126 = vadd.s32 %v2125, %v2123
          %vm2127 = vcmp.eq.s32.totalorder %v547, %v1901
          %vm2128 = vcmp.eq.s32.totalorder %v547, %v1916
          %vm2129 = vcmp.eq.s32.totalorder %v547, %v1931
          %vm2130 = vcmp.eq.s32.totalorder %v547, %v1946
          %vm2131 = vcmp.eq.s32.totalorder %v547, %v1961
          %vm2132 = vcmp.eq.s32.totalorder %v547, %v1976
          %vm2133 = vcmp.eq.s32.totalorder %v547, %v1991
          %vm2134 = vcmp.eq.s32.totalorder %v547, %v2006
          %vm2135 = vcmp.eq.s32.totalorder %v547, %v2021
          %vm2136 = vcmp.eq.s32.totalorder %v547, %v2036
          %vm2137 = vcmp.eq.s32.totalorder %v547, %v2051
          %vm2138 = vcmp.eq.s32.totalorder %v547, %v2066
          %vm2139 = vcmp.eq.s32.totalorder %v547, %v2081
          %vm2140 = vcmp.eq.s32.totalorder %v547, %v2096
          %vm2141 = vcmp.eq.s32.totalorder %v547, %v2111
          %vm2142 = vcmp.eq.s32.totalorder %v547, %v2126
          %vm2143 = vmor %vm1775, %vm2127
          %vm2144 = vmor %vm1776, %vm2128
          %vm2145 = vmor %vm1777, %vm2129
          %vm2146 = vmor %vm1778, %vm2130
          %vm2147 = vmor %vm1779, %vm2131
          %vm2148 = vmor %vm1780, %vm2132
          %vm2149 = vmor %vm1781, %vm2133
          %vm2150 = vmor %vm1782, %vm2134
          %vm2151 = vmor %vm1783, %vm2135
          %vm2152 = vmor %vm1784, %vm2136
          %vm2153 = vmor %vm1785, %vm2137
          %vm2154 = vmor %vm1786, %vm2138
          %vm2155 = vmor %vm1787, %vm2139
          %vm2156 = vmor %vm1788, %vm2140
          %vm2157 = vmor %vm1789, %vm2141
          %vm2158 = vmor %vm1790, %vm2142
          %v2159 = vsel %vm2143, %v640, -1e+30
          %v2160 = vsel %vm2144, %v645, -1e+30
          %v2161 = vsel %vm2145, %v650, -1e+30
          %v2162 = vsel %vm2146, %v655, -1e+30
          %v2163 = vsel %vm2147, %v660, -1e+30
          %v2164 = vsel %vm2148, %v665, -1e+30
          %v2165 = vsel %vm2149, %v670, -1e+30
          %v2166 = vsel %vm2150, %v675, -1e+30
          %v2167 = vsel %vm2151, %v680, -1e+30
          %v2168 = vsel %vm2152, %v685, -1e+30
          %v2169 = vsel %vm2153, %v690, -1e+30
          %v2170 = vsel %vm2154, %v695, -1e+30
          %v2171 = vsel %vm2155, %v700, -1e+30
          %v2172 = vsel %vm2156, %v705, -1e+30
          %v2173 = vsel %vm2157, %v710, -1e+30
          %v2174 = vsel %vm2158, %v715, -1e+30
          %v2175 = vsel %vm718, %v2159, -inf
          %2176 = vmax.xlane.f32.xlu0 %v2175
          %v2177 = vpop.xlane.xlu0 %2176
          %v2178 = vsel %vm718, %v2160, -inf
          %2179 = vmax.xlane.f32.xlu0 %v2178
          %v2180 = vpop.xlane.xlu0 %2179
          %v2181 = vsel %vm718, %v2161, -inf
          %2182 = vmax.xlane.f32.xlu0 %v2181
          %v2183 = vpop.xlane.xlu0 %2182
          %v2184 = vsel %vm718, %v2162, -inf
          %2185 = vmax.xlane.f32.xlu0 %v2184
          %v2186 = vpop.xlane.xlu0 %2185
          %v2187 = vsel %vm718, %v2163, -inf
          %2188 = vmax.xlane.f32.xlu0 %v2187
          %v2189 = vpop.xlane.xlu0 %2188
          %v2190 = vsel %vm718, %v2164, -inf
          %2191 = vmax.xlane.f32.xlu0 %v2190
          %v2192 = vpop.xlane.xlu0 %2191
          %v2193 = vsel %vm718, %v2165, -inf
          %2194 = vmax.xlane.f32.xlu0 %v2193
          %v2195 = vpop.xlane.xlu0 %2194
          %v2196 = vsel %vm718, %v2166, -inf
          %2197 = vmax.xlane.f32.xlu0 %v2196
          %v2198 = vpop.xlane.xlu0 %2197
          %v2199 = vsel %vm718, %v2167, -inf
          %2200 = vmax.xlane.f32.xlu0 %v2199
          %v2201 = vpop.xlane.xlu0 %2200
          %v2202 = vsel %vm718, %v2168, -inf
          %2203 = vmax.xlane.f32.xlu0 %v2202
          %v2204 = vpop.xlane.xlu0 %2203
          %v2205 = vsel %vm718, %v2169, -inf
          %2206 = vmax.xlane.f32.xlu0 %v2205
          %v2207 = vpop.xlane.xlu0 %2206
          %v2208 = vsel %vm718, %v2170, -inf
          %2209 = vmax.xlane.f32.xlu0 %v2208
          %v2210 = vpop.xlane.xlu0 %2209
          %v2211 = vsel %vm718, %v2171, -inf
          %2212 = vmax.xlane.f32.xlu0 %v2211
          %v2213 = vpop.xlane.xlu0 %2212
          %v2214 = vsel %vm718, %v2172, -inf
          %2215 = vmax.xlane.f32.xlu0 %v2214
          %v2216 = vpop.xlane.xlu0 %2215
          %v2217 = vsel %vm718, %v2173, -inf
          %2218 = vmax.xlane.f32.xlu0 %v2217
          %v2219 = vpop.xlane.xlu0 %2218
          %v2220 = vsel %vm718, %v2174, -inf
          %2221 = vmax.xlane.f32.xlu0 %v2220
          %v2222 = vpop.xlane.xlu0 %2221
          %v2223 = vsub.f32 %v2159, %v2177
          %v2224 = vsub.f32 %v2160, %v2180
          %v2225 = vsub.f32 %v2161, %v2183
          %v2226 = vsub.f32 %v2162, %v2186
          %v2227 = vsub.f32 %v2163, %v2189
          %v2228 = vsub.f32 %v2164, %v2192
          %v2229 = vsub.f32 %v2165, %v2195
          %v2230 = vsub.f32 %v2166, %v2198
          %v2231 = vsub.f32 %v2167, %v2201
          %v2232 = vsub.f32 %v2168, %v2204
          %v2233 = vsub.f32 %v2169, %v2207
          %v2234 = vsub.f32 %v2170, %v2210
          %v2235 = vsub.f32 %v2171, %v2213
          %v2236 = vsub.f32 %v2172, %v2216
          %v2237 = vsub.f32 %v2173, %v2219
          %v2238 = vsub.f32 %v2174, %v2222
          %v2239 = vmul.f32 %v2223, 1.442695
          %v2240 = vpow.pop %v2239
          %v2241 = vmul.f32 %v2224, 1.442695
          %v2242 = vpow.pop %v2241
          %v2243 = vmul.f32 %v2225, 1.442695
          %v2244 = vpow.pop %v2243
          %v2245 = vmul.f32 %v2226, 1.442695
          %v2246 = vpow.pop %v2245
          %v2247 = vmul.f32 %v2227, 1.442695
          %v2248 = vpow.pop %v2247
          %v2249 = vmul.f32 %v2228, 1.442695
          %v2250 = vpow.pop %v2249
          %v2251 = vmul.f32 %v2229, 1.442695
          %v2252 = vpow.pop %v2251
          %v2253 = vmul.f32 %v2230, 1.442695
          %v2254 = vpow.pop %v2253
          %v2255 = vmul.f32 %v2231, 1.442695
          %v2256 = vpow.pop %v2255
          %v2257 = vmul.f32 %v2232, 1.442695
          %v2258 = vpow.pop %v2257
          %v2259 = vmul.f32 %v2233, 1.442695
          %v2260 = vpow.pop %v2259
          %v2261 = vmul.f32 %v2234, 1.442695
          %v2262 = vpow.pop %v2261
          %v2263 = vmul.f32 %v2235, 1.442695
          %v2264 = vpow.pop %v2263
          %v2265 = vmul.f32 %v2236, 1.442695
          %v2266 = vpow.pop %v2265
          %v2267 = vmul.f32 %v2237, 1.442695
          %v2268 = vpow.pop %v2267
          %v2269 = vmul.f32 %v2238, 1.442695
          %v2270 = vpow.pop %v2269
          %v2271 = vsel %vm2143, %v2240, 0.0
          %v2272 = vsel %vm2144, %v2242, 0.0
          %v2273 = vsel %vm2145, %v2244, 0.0
          %v2274 = vsel %vm2146, %v2246, 0.0
          %v2275 = vsel %vm2147, %v2248, 0.0
          %v2276 = vsel %vm2148, %v2250, 0.0
          %v2277 = vsel %vm2149, %v2252, 0.0
          %v2278 = vsel %vm2150, %v2254, 0.0
          %v2279 = vsel %vm2151, %v2256, 0.0
          %v2280 = vsel %vm2152, %v2258, 0.0
          %v2281 = vsel %vm2153, %v2260, 0.0
          %v2282 = vsel %vm2154, %v2262, 0.0
          %v2283 = vsel %vm2155, %v2264, 0.0
          %v2284 = vsel %vm2156, %v2266, 0.0
          %v2285 = vsel %vm2157, %v2268, 0.0
          %v2286 = vsel %vm2158, %v2270, 0.0
          %v2287 = vsel %vm718, %v2271, 0.0
          %2288 = vadd.xlane.f32.xlu0 %v2287
          %v2289 = vpop.xlane.xlu0 %2288
          %v2290 = vsel %vm718, %v2272, 0.0
          %2291 = vadd.xlane.f32.xlu0 %v2290
          %v2292 = vpop.xlane.xlu0 %2291
          %v2293 = vsel %vm718, %v2273, 0.0
          %2294 = vadd.xlane.f32.xlu0 %v2293
          %v2295 = vpop.xlane.xlu0 %2294
          %v2296 = vsel %vm718, %v2274, 0.0
          %2297 = vadd.xlane.f32.xlu0 %v2296
          %v2298 = vpop.xlane.xlu0 %2297
          %v2299 = vsel %vm718, %v2275, 0.0
          %2300 = vadd.xlane.f32.xlu0 %v2299
          %v2301 = vpop.xlane.xlu0 %2300
          %v2302 = vsel %vm718, %v2276, 0.0
          %2303 = vadd.xlane.f32.xlu0 %v2302
          %v2304 = vpop.xlane.xlu0 %2303
          %v2305 = vsel %vm718, %v2277, 0.0
          %2306 = vadd.xlane.f32.xlu0 %v2305
          %v2307 = vpop.xlane.xlu0 %2306
          %v2308 = vsel %vm718, %v2278, 0.0
          %2309 = vadd.xlane.f32.xlu0 %v2308
          %v2310 = vpop.xlane.xlu0 %2309
          %v2311 = vsel %vm718, %v2279, 0.0
          %2312 = vadd.xlane.f32.xlu0 %v2311
          %v2313 = vpop.xlane.xlu0 %2312
          %v2314 = vsel %vm718, %v2280, 0.0
          %2315 = vadd.xlane.f32.xlu0 %v2314
          %v2316 = vpop.xlane.xlu0 %2315
          %v2317 = vsel %vm718, %v2281, 0.0
          %2318 = vadd.xlane.f32.xlu0 %v2317
          %v2319 = vpop.xlane.xlu0 %2318
          %v2320 = vsel %vm718, %v2282, 0.0
          %2321 = vadd.xlane.f32.xlu0 %v2320
          %v2322 = vpop.xlane.xlu0 %2321
          %v2323 = vsel %vm718, %v2283, 0.0
          %2324 = vadd.xlane.f32.xlu0 %v2323
          %v2325 = vpop.xlane.xlu0 %2324
          %v2326 = vsel %vm718, %v2284, 0.0
          %2327 = vadd.xlane.f32.xlu0 %v2326
          %v2328 = vpop.xlane.xlu0 %2327
          %v2329 = vsel %vm718, %v2285, 0.0
          %2330 = vadd.xlane.f32.xlu0 %v2329
          %v2331 = vpop.xlane.xlu0 %2330
          %v2332 = vsel %vm718, %v2286, 0.0
          %2333 = vadd.xlane.f32.xlu0 %v2332
          %v2334 = vpop.xlane.xlu0 %2333
          %v2335 = vrcp.pop %v2289
          %v2336 = vrcp.pop %v2292
          %v2337 = vrcp.pop %v2295
          %v2338 = vrcp.pop %v2298
          %v2339 = vrcp.pop %v2301
          %v2340 = vrcp.pop %v2304
          %v2341 = vrcp.pop %v2307
          %v2342 = vrcp.pop %v2310
          %v2343 = vrcp.pop %v2313
          %v2344 = vrcp.pop %v2316
          %v2345 = vrcp.pop %v2319
          %v2346 = vrcp.pop %v2322
          %v2347 = vrcp.pop %v2325
          %v2348 = vrcp.pop %v2328
          %v2349 = vrcp.pop %v2331
          %v2350 = vrcp.pop %v2334
          %v2351 = vmul.f32 %v2271, %v2335
          %v2352 = vmul.f32 %v2272, %v2336
          %v2353 = vmul.f32 %v2273, %v2337
          %v2354 = vmul.f32 %v2274, %v2338
          %v2355 = vmul.f32 %v2275, %v2339
          %v2356 = vmul.f32 %v2276, %v2340
          %v2357 = vmul.f32 %v2277, %v2341
          %v2358 = vmul.f32 %v2278, %v2342
          %v2359 = vmul.f32 %v2279, %v2343
          %v2360 = vmul.f32 %v2280, %v2344
          %v2361 = vmul.f32 %v2281, %v2345
          %v2362 = vmul.f32 %v2282, %v2346
          %v2363 = vmul.f32 %v2283, %v2347
          %v2364 = vmul.f32 %v2284, %v2348
          %v2365 = vmul.f32 %v2285, %v2349
          %v2366 = vmul.f32 %v2286, %v2350
          %v2367 = vpack.c.bf16 %v555, %v554
          %v2368 = vpack.c.bf16 %v557, %v556
          %v2369 = vpack.c.bf16 %v559, %v558
          %v2370 = vpack.c.bf16 %v561, %v560
          %v2371 = vpack.c.bf16 %v563, %v562
          %v2372 = vpack.c.bf16 %v565, %v564
          %v2373 = vpack.c.bf16 %v567, %v566
          %v2374 = vpack.c.bf16 %v569, %v568
          %s2375 = smul.u32 %s549, 32
          %s2376 = smul.addr %s2375, 4
          %s2377 = scalar_lea.vmem %s4, %s2376
          %v2378 = vld [vmem:[%s2377] sm:$0xff]
          %v2379 = vld [vmem:[%s2377 + $0x8] sm:$0xff]
          %v2380 = vld [vmem:[%s2377 + $0x10] sm:$0xff]
          %v2381 = vld [vmem:[%s2377 + $0x18] sm:$0xff]
          %v2382 = vld [vmem:[%s2377 + $0x20] sm:$0xff]
          %v2383 = vld [vmem:[%s2377 + $0x28] sm:$0xff]
          %v2384 = vld [vmem:[%s2377 + $0x30] sm:$0xff]
          %v2385 = vld [vmem:[%s2377 + $0x38] sm:$0xff]
          %v2386 = vld [vmem:[%s2377 + $0x40] sm:$0xff]
          %v2387 = vld [vmem:[%s2377 + $0x48] sm:$0xff]
          %v2388 = vld [vmem:[%s2377 + $0x50] sm:$0xff]
          %v2389 = vld [vmem:[%s2377 + $0x58] sm:$0xff]
          %v2390 = vld [vmem:[%s2377 + $0x60] sm:$0xff]
          %v2391 = vld [vmem:[%s2377 + $0x68] sm:$0xff]
          %v2392 = vld [vmem:[%s2377 + $0x70] sm:$0xff]
          %v2393 = vld [vmem:[%s2377 + $0x78] sm:$0xff]
          %v2410 = vunpack.c.l.b16 %v2378
          %v2411 = vunpack.c.h.b16 %v2378
          %v2412 = vunpack.c.l.b16 %v2379
          %v2413 = vunpack.c.h.b16 %v2379
          %v2414 = vunpack.c.l.b16 %v2380
          %v2415 = vunpack.c.h.b16 %v2380
          %v2416 = vunpack.c.l.b16 %v2381
          %v2417 = vunpack.c.h.b16 %v2381
          %v2418 = vunpack.c.l.b16 %v2382
          %v2419 = vunpack.c.h.b16 %v2382
          %v2420 = vunpack.c.l.b16 %v2383
          %v2421 = vunpack.c.h.b16 %v2383
          %v2422 = vunpack.c.l.b16 %v2384
          %v2423 = vunpack.c.h.b16 %v2384
          %v2424 = vunpack.c.l.b16 %v2385
          %v2425 = vunpack.c.h.b16 %v2385
          %v2426 = vunpack.c.l.b16 %v2386
          %v2427 = vunpack.c.h.b16 %v2386
          %v2428 = vunpack.c.l.b16 %v2387
          %v2429 = vunpack.c.h.b16 %v2387
          %v2430 = vunpack.c.l.b16 %v2388
          %v2431 = vunpack.c.h.b16 %v2388
          %v2432 = vunpack.c.l.b16 %v2389
          %v2433 = vunpack.c.h.b16 %v2389
          %v2434 = vunpack.c.l.b16 %v2390
          %v2435 = vunpack.c.h.b16 %v2390
          %v2436 = vunpack.c.l.b16 %v2391
          %v2437 = vunpack.c.h.b16 %v2391
          %v2438 = vunpack.c.l.b16 %v2392
          %v2439 = vunpack.c.h.b16 %v2392
          %v2440 = vunpack.c.l.b16 %v2393
          %v2441 = vunpack.c.h.b16 %v2393
          %v2442 = vpack.c.b16 %v2412, %v2410
          %v2443 = vpack.c.b16 %v2413, %v2411
          %v2444 = vpack.c.b16 %v2416, %v2414
          %v2445 = vpack.c.b16 %v2417, %v2415
          %v2446 = vpack.c.b16 %v2420, %v2418
          %v2447 = vpack.c.b16 %v2421, %v2419
          %v2448 = vpack.c.b16 %v2424, %v2422
          %v2449 = vpack.c.b16 %v2425, %v2423
          %v2450 = vpack.c.b16 %v2428, %v2426
          %v2451 = vpack.c.b16 %v2429, %v2427
          %v2452 = vpack.c.b16 %v2432, %v2430
          %v2453 = vpack.c.b16 %v2433, %v2431
          %v2454 = vpack.c.b16 %v2436, %v2434
          %v2455 = vpack.c.b16 %v2437, %v2435
          %v2456 = vpack.c.b16 %v2440, %v2438
          %v2457 = vpack.c.b16 %v2441, %v2439
          %2474 = vmatprep.subr.bf16.mxu0 %v2443
          %2475 = vmatpush1.bf16.msra.mxu0 %v2442
          %2476 = vmatprep.subr.bf16.mxu0 %v2445
          %2477 = vmatpush1.bf16.msra.mxu0 %v2444
          %2478 = vmatprep.subr.bf16.mxu0 %v2447
          %2479 = vmatpush1.bf16.msra.mxu0 %v2446
          %2480 = vmatprep.subr.bf16.mxu0 %v2449
          %2481 = vmatpush1.bf16.msra.mxu0 %v2448
          %2482 = vmatprep.subr.bf16.mxu0 %v2451
          %2483 = vmatpush1.bf16.msra.mxu0 %v2450
          %2484 = vmatprep.subr.bf16.mxu0 %v2453
          %2485 = vmatpush1.bf16.msra.mxu0 %v2452
          %2486 = vmatprep.subr.bf16.mxu0 %v2455
          %2487 = vmatpush1.bf16.msra.mxu0 %v2454
          %2488 = vmatprep.subr.bf16.mxu0 %v2457
          %2489 = vmatpush1.bf16.msra.mxu0 %v2456
          %2490 = vmatprep.subr.bf16.mxu0 0
          %2491 = vmatpush1.bf16.msra.mxu0 0
          %2492 = vmatprep.subr.bf16.mxu0 0
          %2493 = vmatpush1.bf16.msra.mxu0 0
          %2494 = vmatprep.subr.bf16.mxu0 0
          %2495 = vmatpush1.bf16.msra.mxu0 0
          %2496 = vmatprep.subr.bf16.mxu0 0
          %2497 = vmatpush1.bf16.msra.mxu0 0
          %2498 = vmatprep.subr.bf16.mxu0 0
          %2499 = vmatpush1.bf16.msra.mxu0 0
          %2500 = vmatprep.subr.bf16.mxu0 0
          %2501 = vmatpush1.bf16.msra.mxu0 0
          %2502 = vmatprep.subr.bf16.mxu0 0
          %2503 = vmatpush1.bf16.msra.mxu0 0
          %2504 = vmatprep.subr.bf16.mxu0 0
          %2505 = vmatpush1.bf16.msra.mxu0 0
          %2506 = vmatprep.mubr.bf16.mxu0 0
          %2507 = vmatmul.mubr.bf16.gmra.mrb[0].mxu0 %v2367
          %v2508 = vpop.f32.mrb[0].mxu0
          %v2509 = vadd.f32 0.0, %v2508
          %v2510 = vpop.f32.mrb[0].mxu0
          %v2511 = vadd.f32 0.0, %v2510
          %v2512 = vpop.f32.mrb[0].mxu0
          %v2513 = vadd.f32 0.0, %v2512
          %v2514 = vpop.f32.mrb[0].mxu0
          %v2515 = vadd.f32 0.0, %v2514
          %2516 = vmatprep.mubr.bf16.mxu0 0
          %2517 = vmatmul.mubr.bf16.gmra.mrb[0].mxu0 %v2368
          %v2518 = vpop.f32.mrb[0].mxu0
          %v2519 = vadd.f32 0.0, %v2518
          %v2520 = vpop.f32.mrb[0].mxu0
          %v2521 = vadd.f32 0.0, %v2520
          %v2522 = vpop.f32.mrb[0].mxu0
          %v2523 = vadd.f32 0.0, %v2522
          %v2524 = vpop.f32.mrb[0].mxu0
          %v2525 = vadd.f32 0.0, %v2524
          %2526 = vmatprep.mubr.bf16.mxu0 0
          %2527 = vmatmul.mubr.bf16.gmra.mrb[0].mxu0 %v2369
          %v2528 = vpop.f32.mrb[0].mxu0
          %v2529 = vadd.f32 0.0, %v2528
          %v2530 = vpop.f32.mrb[0].mxu0
          %v2531 = vadd.f32 0.0, %v2530
          %v2532 = vpop.f32.mrb[0].mxu0
          %v2533 = vadd.f32 0.0, %v2532
          %v2534 = vpop.f32.mrb[0].mxu0
          %v2535 = vadd.f32 0.0, %v2534
          %2536 = vmatprep.mubr.bf16.mxu0 0
          %2537 = vmatmul.mubr.bf16.gmra.mrb[0].mxu0 %v2370
          %v2538 = vpop.f32.mrb[0].mxu0
          %v2539 = vadd.f32 0.0, %v2538
          %v2540 = vpop.f32.mrb[0].mxu0
          %v2541 = vadd.f32 0.0, %v2540
          %v2542 = vpop.f32.mrb[0].mxu0
          %v2543 = vadd.f32 0.0, %v2542
          %v2544 = vpop.f32.mrb[0].mxu0
          %v2545 = vadd.f32 0.0, %v2544
          %2546 = vmatprep.mubr.bf16.mxu0 0
          %2547 = vmatmul.mubr.bf16.gmra.mrb[0].mxu0 %v2371
          %v2548 = vpop.f32.mrb[0].mxu0
          %v2549 = vadd.f32 0.0, %v2548
          %v2550 = vpop.f32.mrb[0].mxu0
          %v2551 = vadd.f32 0.0, %v2550
          %v2552 = vpop.f32.mrb[0].mxu0
          %v2553 = vadd.f32 0.0, %v2552
          %v2554 = vpop.f32.mrb[0].mxu0
          %v2555 = vadd.f32 0.0, %v2554
          %2556 = vmatprep.mubr.bf16.mxu0 0
          %2557 = vmatmul.mubr.bf16.gmra.mrb[0].mxu0 %v2372
          %v2558 = vpop.f32.mrb[0].mxu0
          %v2559 = vadd.f32 0.0, %v2558
          %v2560 = vpop.f32.mrb[0].mxu0
          %v2561 = vadd.f32 0.0, %v2560
          %v2562 = vpop.f32.mrb[0].mxu0
          %v2563 = vadd.f32 0.0, %v2562
          %v2564 = vpop.f32.mrb[0].mxu0
          %v2565 = vadd.f32 0.0, %v2564
          %2566 = vmatprep.mubr.bf16.mxu0 0
          %2567 = vmatmul.mubr.bf16.gmra.mrb[0].mxu0 %v2373
          %v2568 = vpop.f32.mrb[0].mxu0
          %v2569 = vadd.f32 0.0, %v2568
          %v2570 = vpop.f32.mrb[0].mxu0
          %v2571 = vadd.f32 0.0, %v2570
          %v2572 = vpop.f32.mrb[0].mxu0
          %v2573 = vadd.f32 0.0, %v2572
          %v2574 = vpop.f32.mrb[0].mxu0
          %v2575 = vadd.f32 0.0, %v2574
          %2576 = vmatprep.mubr.bf16.mxu0 0
          %2577 = vmatmul.mubr.bf16.gmra.mrb[0].mxu0 %v2374
          %v2578 = vpop.f32.mrb[0].mxu0
          %v2579 = vadd.f32 0.0, %v2578
          %v2580 = vpop.f32.mrb[0].mxu0
          %v2581 = vadd.f32 0.0, %v2580
          %v2582 = vpop.f32.mrb[0].mxu0
          %v2583 = vadd.f32 0.0, %v2582
          %v2584 = vpop.f32.mrb[0].mxu0
          %v2585 = vadd.f32 0.0, %v2584
          %2586 = vdwg.mxu0
          %v2587 = vmax.f32 %v2509, 0.0
          %v2588 = vmax.f32 %v2511, 0.0
          %v2589 = vmax.f32 %v2513, 0.0
          %v2590 = vmax.f32 %v2515, 0.0
          %v2591 = vmax.f32 %v2519, 0.0
          %v2592 = vmax.f32 %v2521, 0.0
          %v2593 = vmax.f32 %v2523, 0.0
          %v2594 = vmax.f32 %v2525, 0.0
          %v2595 = vmax.f32 %v2529, 0.0
          %v2596 = vmax.f32 %v2531, 0.0
          %v2597 = vmax.f32 %v2533, 0.0
          %v2598 = vmax.f32 %v2535, 0.0
          %v2599 = vmax.f32 %v2539, 0.0
          %v2600 = vmax.f32 %v2541, 0.0
          %v2601 = vmax.f32 %v2543, 0.0
          %v2602 = vmax.f32 %v2545, 0.0
          %v2603 = vmax.f32 %v2549, 0.0
          %v2604 = vmax.f32 %v2551, 0.0
          %v2605 = vmax.f32 %v2553, 0.0
          %v2606 = vmax.f32 %v2555, 0.0
          %v2607 = vmax.f32 %v2559, 0.0
          %v2608 = vmax.f32 %v2561, 0.0
          %v2609 = vmax.f32 %v2563, 0.0
          %v2610 = vmax.f32 %v2565, 0.0
          %v2611 = vmax.f32 %v2569, 0.0
          %v2612 = vmax.f32 %v2571, 0.0
          %v2613 = vmax.f32 %v2573, 0.0
          %v2614 = vmax.f32 %v2575, 0.0
          %v2615 = vmax.f32 %v2579, 0.0
          %v2616 = vmax.f32 %v2581, 0.0
          %v2617 = vmax.f32 %v2583, 0.0
          %v2618 = vmax.f32 %v2585, 0.0
          %v2619 = vpack.c.bf16 %v2589, %v2587
          %v2620 = vpack.c.bf16 %v2590, %v2588
          %v2621 = vpack.c.bf16 %v2593, %v2591
          %v2622 = vpack.c.bf16 %v2594, %v2592
          %v2623 = vpack.c.bf16 %v2597, %v2595
          %v2624 = vpack.c.bf16 %v2598, %v2596
          %v2625 = vpack.c.bf16 %v2601, %v2599
          %v2626 = vpack.c.bf16 %v2602, %v2600
          %v2627 = vpack.c.bf16 %v2605, %v2603
          %v2628 = vpack.c.bf16 %v2606, %v2604
          %v2629 = vpack.c.bf16 %v2609, %v2607
          %v2630 = vpack.c.bf16 %v2610, %v2608
          %v2631 = vpack.c.bf16 %v2613, %v2611
          %v2632 = vpack.c.bf16 %v2614, %v2612
          %v2633 = vpack.c.bf16 %v2617, %v2615
          %v2634 = vpack.c.bf16 %v2618, %v2616
          %s2635 = smul.u32 %s549, 256
          %s2636 = smul.addr %s2635, 4
          %s2637 = scalar_lea.vmem [#allocation3], %s2636
          %v2638 = vld [vmem:[%s2637] sm:$0xff]
          %v2639 = vld [vmem:[%s2637 + $0x8] sm:$0xff]
          %v2640 = vld [vmem:[%s2637 + $0x10] sm:$0xff]
          %v2641 = vld [vmem:[%s2637 + $0x18] sm:$0xff]
          %v2642 = vld [vmem:[%s2637 + $0x20] sm:$0xff]
          %v2643 = vld [vmem:[%s2637 + $0x28] sm:$0xff]
          %v2644 = vld [vmem:[%s2637 + $0x30] sm:$0xff]
          %v2645 = vld [vmem:[%s2637 + $0x38] sm:$0xff]
          %v2646 = vld [vmem:[%s2637 + $0x40] sm:$0xff]
          %v2647 = vld [vmem:[%s2637 + $0x48] sm:$0xff]
          %v2648 = vld [vmem:[%s2637 + $0x50] sm:$0xff]
          %v2649 = vld [vmem:[%s2637 + $0x58] sm:$0xff]
          %v2650 = vld [vmem:[%s2637 + $0x60] sm:$0xff]
          %v2651 = vld [vmem:[%s2637 + $0x68] sm:$0xff]
          %v2652 = vld [vmem:[%s2637 + $0x70] sm:$0xff]
          %v2653 = vld [vmem:[%s2637 + $0x78] sm:$0xff]
          %v2654 = vld [vmem:[%s2637 + $0x80] sm:$0xff]
          %v2655 = vld [vmem:[%s2637 + $0x88] sm:$0xff]
          %v2656 = vld [vmem:[%s2637 + $0x90] sm:$0xff]
          %v2657 = vld [vmem:[%s2637 + $0x98] sm:$0xff]
          %v2658 = vld [vmem:[%s2637 + $0xa0] sm:$0xff]
          %v2659 = vld [vmem:[%s2637 + $0xa8] sm:$0xff]
          %v2660 = vld [vmem:[%s2637 + $0xb0] sm:$0xff]
          %v2661 = vld [vmem:[%s2637 + $0xb8] sm:$0xff]
          %v2662 = vld [vmem:[%s2637 + $0xc0] sm:$0xff]
          %v2663 = vld [vmem:[%s2637 + $0xc8] sm:$0xff]
          %v2664 = vld [vmem:[%s2637 + $0xd0] sm:$0xff]
          %v2665 = vld [vmem:[%s2637 + $0xd8] sm:$0xff]
          %v2666 = vld [vmem:[%s2637 + $0xe0] sm:$0xff]
          %v2667 = vld [vmem:[%s2637 + $0xe8] sm:$0xff]
          %v2668 = vld [vmem:[%s2637 + $0xf0] sm:$0xff]
          %v2669 = vld [vmem:[%s2637 + $0xf8] sm:$0xff]
          %v2670 = vld [vmem:[%s2637 + $0x100] sm:$0xff]
          %v2671 = vld [vmem:[%s2637 + $0x108] sm:$0xff]
          %v2672 = vld [vmem:[%s2637 + $0x110] sm:$0xff]
          %v2673 = vld [vmem:[%s2637 + $0x118] sm:$0xff]
          %v2674 = vld [vmem:[%s2637 + $0x120] sm:$0xff]
          %v2675 = vld [vmem:[%s2637 + $0x128] sm:$0xff]
          %v2676 = vld [vmem:[%s2637 + $0x130] sm:$0xff]
          %v2677 = vld [vmem:[%s2637 + $0x138] sm:$0xff]
          %v2678 = vld [vmem:[%s2637 + $0x140] sm:$0xff]
          %v2679 = vld [vmem:[%s2637 + $0x148] sm:$0xff]
          %v2680 = vld [vmem:[%s2637 + $0x150] sm:$0xff]
          %v2681 = vld [vmem:[%s2637 + $0x158] sm:$0xff]
          %v2682 = vld [vmem:[%s2637 + $0x160] sm:$0xff]
          %v2683 = vld [vmem:[%s2637 + $0x168] sm:$0xff]
          %v2684 = vld [vmem:[%s2637 + $0x170] sm:$0xff]
          %v2685 = vld [vmem:[%s2637 + $0x178] sm:$0xff]
          %v2686 = vld [vmem:[%s2637 + $0x180] sm:$0xff]
          %v2687 = vld [vmem:[%s2637 + $0x188] sm:$0xff]
          %v2688 = vld [vmem:[%s2637 + $0x190] sm:$0xff]
          %v2689 = vld [vmem:[%s2637 + $0x198] sm:$0xff]
          %v2690 = vld [vmem:[%s2637 + $0x1a0] sm:$0xff]
          %v2691 = vld [vmem:[%s2637 + $0x1a8] sm:$0xff]
          %v2692 = vld [vmem:[%s2637 + $0x1b0] sm:$0xff]
          %v2693 = vld [vmem:[%s2637 + $0x1b8] sm:$0xff]
          %v2694 = vld [vmem:[%s2637 + $0x1c0] sm:$0xff]
          %v2695 = vld [vmem:[%s2637 + $0x1c8] sm:$0xff]
          %v2696 = vld [vmem:[%s2637 + $0x1d0] sm:$0xff]
          %v2697 = vld [vmem:[%s2637 + $0x1d8] sm:$0xff]
          %v2698 = vld [vmem:[%s2637 + $0x1e0] sm:$0xff]
          %v2699 = vld [vmem:[%s2637 + $0x1e8] sm:$0xff]
          %v2700 = vld [vmem:[%s2637 + $0x1f0] sm:$0xff]
          %v2701 = vld [vmem:[%s2637 + $0x1f8] sm:$0xff]
          %v2702 = vld [vmem:[%s2637 + $0x200] sm:$0xff]
          %v2703 = vld [vmem:[%s2637 + $0x208] sm:$0xff]
          %v2704 = vld [vmem:[%s2637 + $0x210] sm:$0xff]
          %v2705 = vld [vmem:[%s2637 + $0x218] sm:$0xff]
          %v2706 = vld [vmem:[%s2637 + $0x220] sm:$0xff]
          %v2707 = vld [vmem:[%s2637 + $0x228] sm:$0xff]
          %v2708 = vld [vmem:[%s2637 + $0x230] sm:$0xff]
          %v2709 = vld [vmem:[%s2637 + $0x238] sm:$0xff]
          %v2710 = vld [vmem:[%s2637 + $0x240] sm:$0xff]
          %v2711 = vld [vmem:[%s2637 + $0x248] sm:$0xff]
          %v2712 = vld [vmem:[%s2637 + $0x250] sm:$0xff]
          %v2713 = vld [vmem:[%s2637 + $0x258] sm:$0xff]
          %v2714 = vld [vmem:[%s2637 + $0x260] sm:$0xff]
          %v2715 = vld [vmem:[%s2637 + $0x268] sm:$0xff]
          %v2716 = vld [vmem:[%s2637 + $0x270] sm:$0xff]
          %v2717 = vld [vmem:[%s2637 + $0x278] sm:$0xff]
          %v2718 = vld [vmem:[%s2637 + $0x280] sm:$0xff]
          %v2719 = vld [vmem:[%s2637 + $0x288] sm:$0xff]
          %v2720 = vld [vmem:[%s2637 + $0x290] sm:$0xff]
          %v2721 = vld [vmem:[%s2637 + $0x298] sm:$0xff]
          %v2722 = vld [vmem:[%s2637 + $0x2a0] sm:$0xff]
          %v2723 = vld [vmem:[%s2637 + $0x2a8] sm:$0xff]
          %v2724 = vld [vmem:[%s2637 + $0x2b0] sm:$0xff]
          %v2725 = vld [vmem:[%s2637 + $0x2b8] sm:$0xff]
          %v2726 = vld [vmem:[%s2637 + $0x2c0] sm:$0xff]
          %v2727 = vld [vmem:[%s2637 + $0x2c8] sm:$0xff]
          %v2728 = vld [vmem:[%s2637 + $0x2d0] sm:$0xff]
          %v2729 = vld [vmem:[%s2637 + $0x2d8] sm:$0xff]
          %v2730 = vld [vmem:[%s2637 + $0x2e0] sm:$0xff]
          %v2731 = vld [vmem:[%s2637 + $0x2e8] sm:$0xff]
          %v2732 = vld [vmem:[%s2637 + $0x2f0] sm:$0xff]
          %v2733 = vld [vmem:[%s2637 + $0x2f8] sm:$0xff]
          %v2734 = vld [vmem:[%s2637 + $0x300] sm:$0xff]
          %v2735 = vld [vmem:[%s2637 + $0x308] sm:$0xff]
          %v2736 = vld [vmem:[%s2637 + $0x310] sm:$0xff]
          %v2737 = vld [vmem:[%s2637 + $0x318] sm:$0xff]
          %v2738 = vld [vmem:[%s2637 + $0x320] sm:$0xff]
          %v2739 = vld [vmem:[%s2637 + $0x328] sm:$0xff]
          %v2740 = vld [vmem:[%s2637 + $0x330] sm:$0xff]
          %v2741 = vld [vmem:[%s2637 + $0x338] sm:$0xff]
          %v2742 = vld [vmem:[%s2637 + $0x340] sm:$0xff]
          %v2743 = vld [vmem:[%s2637 + $0x348] sm:$0xff]
          %v2744 = vld [vmem:[%s2637 + $0x350] sm:$0xff]
          %v2745 = vld [vmem:[%s2637 + $0x358] sm:$0xff]
          %v2746 = vld [vmem:[%s2637 + $0x360] sm:$0xff]
          %v2747 = vld [vmem:[%s2637 + $0x368] sm:$0xff]
          %v2748 = vld [vmem:[%s2637 + $0x370] sm:$0xff]
          %v2749 = vld [vmem:[%s2637 + $0x378] sm:$0xff]
          %v2750 = vld [vmem:[%s2637 + $0x380] sm:$0xff]
          %v2751 = vld [vmem:[%s2637 + $0x388] sm:$0xff]
          %v2752 = vld [vmem:[%s2637 + $0x390] sm:$0xff]
          %v2753 = vld [vmem:[%s2637 + $0x398] sm:$0xff]
          %v2754 = vld [vmem:[%s2637 + $0x3a0] sm:$0xff]
          %v2755 = vld [vmem:[%s2637 + $0x3a8] sm:$0xff]
          %v2756 = vld [vmem:[%s2637 + $0x3b0] sm:$0xff]
          %v2757 = vld [vmem:[%s2637 + $0x3b8] sm:$0xff]
          %v2758 = vld [vmem:[%s2637 + $0x3c0] sm:$0xff]
          %v2759 = vld [vmem:[%s2637 + $0x3c8] sm:$0xff]
          %v2760 = vld [vmem:[%s2637 + $0x3d0] sm:$0xff]
          %v2761 = vld [vmem:[%s2637 + $0x3d8] sm:$0xff]
          %v2762 = vld [vmem:[%s2637 + $0x3e0] sm:$0xff]
          %v2763 = vld [vmem:[%s2637 + $0x3e8] sm:$0xff]
          %v2764 = vld [vmem:[%s2637 + $0x3f0] sm:$0xff]
          %v2765 = vld [vmem:[%s2637 + $0x3f8] sm:$0xff]
          %v2894 = vunpack.c.l.b16 %v2638
          %v2895 = vunpack.c.h.b16 %v2638
          %v2896 = vunpack.c.l.b16 %v2639
          %v2897 = vunpack.c.h.b16 %v2639
          %v2898 = vunpack.c.l.b16 %v2640
          %v2899 = vunpack.c.h.b16 %v2640
          %v2900 = vunpack.c.l.b16 %v2641
          %v2901 = vunpack.c.h.b16 %v2641
          %v2902 = vunpack.c.l.b16 %v2642
          %v2903 = vunpack.c.h.b16 %v2642
          %v2904 = vunpack.c.l.b16 %v2643
          %v2905 = vunpack.c.h.b16 %v2643
          %v2906 = vunpack.c.l.b16 %v2644
          %v2907 = vunpack.c.h.b16 %v2644
          %v2908 = vunpack.c.l.b16 %v2645
          %v2909 = vunpack.c.h.b16 %v2645
          %v2910 = vunpack.c.l.b16 %v2646
          %v2911 = vunpack.c.h.b16 %v2646
          %v2912 = vunpack.c.l.b16 %v2647
          %v2913 = vunpack.c.h.b16 %v2647
          %v2914 = vunpack.c.l.b16 %v2648
          %v2915 = vunpack.c.h.b16 %v2648
          %v2916 = vunpack.c.l.b16 %v2649
          %v2917 = vunpack.c.h.b16 %v2649
          %v2918 = vunpack.c.l.b16 %v2650
          %v2919 = vunpack.c.h.b16 %v2650
          %v2920 = vunpack.c.l.b16 %v2651
          %v2921 = vunpack.c.h.b16 %v2651
          %v2922 = vunpack.c.l.b16 %v2652
          %v2923 = vunpack.c.h.b16 %v2652
          %v2924 = vunpack.c.l.b16 %v2653
          %v2925 = vunpack.c.h.b16 %v2653
          %v2926 = vunpack.c.l.b16 %v2654
          %v2927 = vunpack.c.h.b16 %v2654
          %v2928 = vunpack.c.l.b16 %v2655
          %v2929 = vunpack.c.h.b16 %v2655
          %v2930 = vunpack.c.l.b16 %v2656
          %v2931 = vunpack.c.h.b16 %v2656
          %v2932 = vunpack.c.l.b16 %v2657
          %v2933 = vunpack.c.h.b16 %v2657
          %v2934 = vunpack.c.l.b16 %v2658
          %v2935 = vunpack.c.h.b16 %v2658
          %v2936 = vunpack.c.l.b16 %v2659
          %v2937 = vunpack.c.h.b16 %v2659
          %v2938 = vunpack.c.l.b16 %v2660
          %v2939 = vunpack.c.h.b16 %v2660
          %v2940 = vunpack.c.l.b16 %v2661
          %v2941 = vunpack.c.h.b16 %v2661
          %v2942 = vunpack.c.l.b16 %v2662
          %v2943 = vunpack.c.h.b16 %v2662
          %v2944 = vunpack.c.l.b16 %v2663
          %v2945 = vunpack.c.h.b16 %v2663
          %v2946 = vunpack.c.l.b16 %v2664
          %v2947 = vunpack.c.h.b16 %v2664
          %v2948 = vunpack.c.l.b16 %v2665
          %v2949 = vunpack.c.h.b16 %v2665
          %v2950 = vunpack.c.l.b16 %v2666
          %v2951 = vunpack.c.h.b16 %v2666
          %v2952 = vunpack.c.l.b16 %v2667
          %v2953 = vunpack.c.h.b16 %v2667
          %v2954 = vunpack.c.l.b16 %v2668
          %v2955 = vunpack.c.h.b16 %v2668
          %v2956 = vunpack.c.l.b16 %v2669
          %v2957 = vunpack.c.h.b16 %v2669
          %v2958 = vunpack.c.l.b16 %v2670
          %v2959 = vunpack.c.h.b16 %v2670
          %v2960 = vunpack.c.l.b16 %v2671
          %v2961 = vunpack.c.h.b16 %v2671
          %v2962 = vunpack.c.l.b16 %v2672
          %v2963 = vunpack.c.h.b16 %v2672
          %v2964 = vunpack.c.l.b16 %v2673
          %v2965 = vunpack.c.h.b16 %v2673
          %v2966 = vunpack.c.l.b16 %v2674
          %v2967 = vunpack.c.h.b16 %v2674
          %v2968 = vunpack.c.l.b16 %v2675
          %v2969 = vunpack.c.h.b16 %v2675
          %v2970 = vunpack.c.l.b16 %v2676
          %v2971 = vunpack.c.h.b16 %v2676
          %v2972 = vunpack.c.l.b16 %v2677
          %v2973 = vunpack.c.h.b16 %v2677
          %v2974 = vunpack.c.l.b16 %v2678
          %v2975 = vunpack.c.h.b16 %v2678
          %v2976 = vunpack.c.l.b16 %v2679
          %v2977 = vunpack.c.h.b16 %v2679
          %v2978 = vunpack.c.l.b16 %v2680
          %v2979 = vunpack.c.h.b16 %v2680
          %v2980 = vunpack.c.l.b16 %v2681
          %v2981 = vunpack.c.h.b16 %v2681
          %v2982 = vunpack.c.l.b16 %v2682
          %v2983 = vunpack.c.h.b16 %v2682
          %v2984 = vunpack.c.l.b16 %v2683
          %v2985 = vunpack.c.h.b16 %v2683
          %v2986 = vunpack.c.l.b16 %v2684
          %v2987 = vunpack.c.h.b16 %v2684
          %v2988 = vunpack.c.l.b16 %v2685
          %v2989 = vunpack.c.h.b16 %v2685
          %v2990 = vunpack.c.l.b16 %v2686
          %v2991 = vunpack.c.h.b16 %v2686
          %v2992 = vunpack.c.l.b16 %v2687
          %v2993 = vunpack.c.h.b16 %v2687
          %v2994 = vunpack.c.l.b16 %v2688
          %v2995 = vunpack.c.h.b16 %v2688
          %v2996 = vunpack.c.l.b16 %v2689
          %v2997 = vunpack.c.h.b16 %v2689
          %v2998 = vunpack.c.l.b16 %v2690
          %v2999 = vunpack.c.h.b16 %v2690
          %v3000 = vunpack.c.l.b16 %v2691
          %v3001 = vunpack.c.h.b16 %v2691
          %v3002 = vunpack.c.l.b16 %v2692
          %v3003 = vunpack.c.h.b16 %v2692
          %v3004 = vunpack.c.l.b16 %v2693
          %v3005 = vunpack.c.h.b16 %v2693
          %v3006 = vunpack.c.l.b16 %v2694
          %v3007 = vunpack.c.h.b16 %v2694
          %v3008 = vunpack.c.l.b16 %v2695
          %v3009 = vunpack.c.h.b16 %v2695
          %v3010 = vunpack.c.l.b16 %v2696
          %v3011 = vunpack.c.h.b16 %v2696
          %v3012 = vunpack.c.l.b16 %v2697
          %v3013 = vunpack.c.h.b16 %v2697
          %v3014 = vunpack.c.l.b16 %v2698
          %v3015 = vunpack.c.h.b16 %v2698
          %v3016 = vunpack.c.l.b16 %v2699
          %v3017 = vunpack.c.h.b16 %v2699
          %v3018 = vunpack.c.l.b16 %v2700
          %v3019 = vunpack.c.h.b16 %v2700
          %v3020 = vunpack.c.l.b16 %v2701
          %v3021 = vunpack.c.h.b16 %v2701
          %v3022 = vunpack.c.l.b16 %v2702
          %v3023 = vunpack.c.h.b16 %v2702
          %v3024 = vunpack.c.l.b16 %v2703
          %v3025 = vunpack.c.h.b16 %v2703
          %v3026 = vunpack.c.l.b16 %v2704
          %v3027 = vunpack.c.h.b16 %v2704
          %v3028 = vunpack.c.l.b16 %v2705
          %v3029 = vunpack.c.h.b16 %v2705
          %v3030 = vunpack.c.l.b16 %v2706
          %v3031 = vunpack.c.h.b16 %v2706
          %v3032 = vunpack.c.l.b16 %v2707
          %v3033 = vunpack.c.h.b16 %v2707
          %v3034 = vunpack.c.l.b16 %v2708
          %v3035 = vunpack.c.h.b16 %v2708
          %v3036 = vunpack.c.l.b16 %v2709
          %v3037 = vunpack.c.h.b16 %v2709
          %v3038 = vunpack.c.l.b16 %v2710
          %v3039 = vunpack.c.h.b16 %v2710
          %v3040 = vunpack.c.l.b16 %v2711
          %v3041 = vunpack.c.h.b16 %v2711
          %v3042 = vunpack.c.l.b16 %v2712
          %v3043 = vunpack.c.h.b16 %v2712
          %v3044 = vunpack.c.l.b16 %v2713
          %v3045 = vunpack.c.h.b16 %v2713
          %v3046 = vunpack.c.l.b16 %v2714
          %v3047 = vunpack.c.h.b16 %v2714
          %v3048 = vunpack.c.l.b16 %v2715
          %v3049 = vunpack.c.h.b16 %v2715
          %v3050 = vunpack.c.l.b16 %v2716
          %v3051 = vunpack.c.h.b16 %v2716
          %v3052 = vunpack.c.l.b16 %v2717
          %v3053 = vunpack.c.h.b16 %v2717
          %v3054 = vunpack.c.l.b16 %v2718
          %v3055 = vunpack.c.h.b16 %v2718
          %v3056 = vunpack.c.l.b16 %v2719
          %v3057 = vunpack.c.h.b16 %v2719
          %v3058 = vunpack.c.l.b16 %v2720
          %v3059 = vunpack.c.h.b16 %v2720
          %v3060 = vunpack.c.l.b16 %v2721
          %v3061 = vunpack.c.h.b16 %v2721
          %v3062 = vunpack.c.l.b16 %v2722
          %v3063 = vunpack.c.h.b16 %v2722
          %v3064 = vunpack.c.l.b16 %v2723
          %v3065 = vunpack.c.h.b16 %v2723
          %v3066 = vunpack.c.l.b16 %v2724
          %v3067 = vunpack.c.h.b16 %v2724
          %v3068 = vunpack.c.l.b16 %v2725
          %v3069 = vunpack.c.h.b16 %v2725
          %v3070 = vunpack.c.l.b16 %v2726
          %v3071 = vunpack.c.h.b16 %v2726
          %v3072 = vunpack.c.l.b16 %v2727
          %v3073 = vunpack.c.h.b16 %v2727
          %v3074 = vunpack.c.l.b16 %v2728
          %v3075 = vunpack.c.h.b16 %v2728
          %v3076 = vunpack.c.l.b16 %v2729
          %v3077 = vunpack.c.h.b16 %v2729
          %v3078 = vunpack.c.l.b16 %v2730
          %v3079 = vunpack.c.h.b16 %v2730
          %v3080 = vunpack.c.l.b16 %v2731
          %v3081 = vunpack.c.h.b16 %v2731
          %v3082 = vunpack.c.l.b16 %v2732
          %v3083 = vunpack.c.h.b16 %v2732
          %v3084 = vunpack.c.l.b16 %v2733
          %v3085 = vunpack.c.h.b16 %v2733
          %v3086 = vunpack.c.l.b16 %v2734
          %v3087 = vunpack.c.h.b16 %v2734
          %v3088 = vunpack.c.l.b16 %v2735
          %v3089 = vunpack.c.h.b16 %v2735
          %v3090 = vunpack.c.l.b16 %v2736
          %v3091 = vunpack.c.h.b16 %v2736
          %v3092 = vunpack.c.l.b16 %v2737
          %v3093 = vunpack.c.h.b16 %v2737
          %v3094 = vunpack.c.l.b16 %v2738
          %v3095 = vunpack.c.h.b16 %v2738
          %v3096 = vunpack.c.l.b16 %v2739
          %v3097 = vunpack.c.h.b16 %v2739
          %v3098 = vunpack.c.l.b16 %v2740
          %v3099 = vunpack.c.h.b16 %v2740
          %v3100 = vunpack.c.l.b16 %v2741
          %v3101 = vunpack.c.h.b16 %v2741
          %v3102 = vunpack.c.l.b16 %v2742
          %v3103 = vunpack.c.h.b16 %v2742
          %v3104 = vunpack.c.l.b16 %v2743
          %v3105 = vunpack.c.h.b16 %v2743
          %v3106 = vunpack.c.l.b16 %v2744
          %v3107 = vunpack.c.h.b16 %v2744
          %v3108 = vunpack.c.l.b16 %v2745
          %v3109 = vunpack.c.h.b16 %v2745
          %v3110 = vunpack.c.l.b16 %v2746
          %v3111 = vunpack.c.h.b16 %v2746
          %v3112 = vunpack.c.l.b16 %v2747
          %v3113 = vunpack.c.h.b16 %v2747
          %v3114 = vunpack.c.l.b16 %v2748
          %v3115 = vunpack.c.h.b16 %v2748
          %v3116 = vunpack.c.l.b16 %v2749
          %v3117 = vunpack.c.h.b16 %v2749
          %v3118 = vunpack.c.l.b16 %v2750
          %v3119 = vunpack.c.h.b16 %v2750
          %v3120 = vunpack.c.l.b16 %v2751
          %v3121 = vunpack.c.h.b16 %v2751
          %v3122 = vunpack.c.l.b16 %v2752
          %v3123 = vunpack.c.h.b16 %v2752
          %v3124 = vunpack.c.l.b16 %v2753
          %v3125 = vunpack.c.h.b16 %v2753
          %v3126 = vunpack.c.l.b16 %v2754
          %v3127 = vunpack.c.h.b16 %v2754
          %v3128 = vunpack.c.l.b16 %v2755
          %v3129 = vunpack.c.h.b16 %v2755
          %v3130 = vunpack.c.l.b16 %v2756
          %v3131 = vunpack.c.h.b16 %v2756
          %v3132 = vunpack.c.l.b16 %v2757
          %v3133 = vunpack.c.h.b16 %v2757
          %v3134 = vunpack.c.l.b16 %v2758
          %v3135 = vunpack.c.h.b16 %v2758
          %v3136 = vunpack.c.l.b16 %v2759
          %v3137 = vunpack.c.h.b16 %v2759
          %v3138 = vunpack.c.l.b16 %v2760
          %v3139 = vunpack.c.h.b16 %v2760
          %v3140 = vunpack.c.l.b16 %v2761
          %v3141 = vunpack.c.h.b16 %v2761
          %v3142 = vunpack.c.l.b16 %v2762
          %v3143 = vunpack.c.h.b16 %v2762
          %v3144 = vunpack.c.l.b16 %v2763
          %v3145 = vunpack.c.h.b16 %v2763
          %v3146 = vunpack.c.l.b16 %v2764
          %v3147 = vunpack.c.h.b16 %v2764
          %v3148 = vunpack.c.l.b16 %v2765
          %v3149 = vunpack.c.h.b16 %v2765
          %v3150 = vpack.c.b16 %v2902, %v2894
          %v3151 = vpack.c.b16 %v2903, %v2895
          %v3152 = vpack.c.b16 %v2904, %v2896
          %v3153 = vpack.c.b16 %v2905, %v2897
          %v3154 = vpack.c.b16 %v2906, %v2898
          %v3155 = vpack.c.b16 %v2907, %v2899
          %v3156 = vpack.c.b16 %v2908, %v2900
          %v3157 = vpack.c.b16 %v2909, %v2901
          %v3158 = vpack.c.b16 %v2918, %v2910
          %v3159 = vpack.c.b16 %v2919, %v2911
          %v3160 = vpack.c.b16 %v2920, %v2912
          %v3161 = vpack.c.b16 %v2921, %v2913
          %v3162 = vpack.c.b16 %v2922, %v2914
          %v3163 = vpack.c.b16 %v2923, %v2915
          %v3164 = vpack.c.b16 %v2924, %v2916
          %v3165 = vpack.c.b16 %v2925, %v2917
          %v3166 = vpack.c.b16 %v2934, %v2926
          %v3167 = vpack.c.b16 %v2935, %v2927
          %v3168 = vpack.c.b16 %v2936, %v2928
          %v3169 = vpack.c.b16 %v2937, %v2929
          %v3170 = vpack.c.b16 %v2938, %v2930
          %v3171 = vpack.c.b16 %v2939, %v2931
          %v3172 = vpack.c.b16 %v2940, %v2932
          %v3173 = vpack.c.b16 %v2941, %v2933
          %v3174 = vpack.c.b16 %v2950, %v2942
          %v3175 = vpack.c.b16 %v2951, %v2943
          %v3176 = vpack.c.b16 %v2952, %v2944
          %v3177 = vpack.c.b16 %v2953, %v2945
          %v3178 = vpack.c.b16 %v2954, %v2946
          %v3179 = vpack.c.b16 %v2955, %v2947
          %v3180 = vpack.c.b16 %v2956, %v2948
          %v3181 = vpack.c.b16 %v2957, %v2949
          %v3182 = vpack.c.b16 %v2966, %v2958
          %v3183 = vpack.c.b16 %v2967, %v2959
          %v3184 = vpack.c.b16 %v2968, %v2960
          %v3185 = vpack.c.b16 %v2969, %v2961
          %v3186 = vpack.c.b16 %v2970, %v2962
          %v3187 = vpack.c.b16 %v2971, %v2963
          %v3188 = vpack.c.b16 %v2972, %v2964
          %v3189 = vpack.c.b16 %v2973, %v2965
          %v3190 = vpack.c.b16 %v2982, %v2974
          %v3191 = vpack.c.b16 %v2983, %v2975
          %v3192 = vpack.c.b16 %v2984, %v2976
          %v3193 = vpack.c.b16 %v2985, %v2977
          %v3194 = vpack.c.b16 %v2986, %v2978
          %v3195 = vpack.c.b16 %v2987, %v2979
          %v3196 = vpack.c.b16 %v2988, %v2980
          %v3197 = vpack.c.b16 %v2989, %v2981
          %v3198 = vpack.c.b16 %v2998, %v2990
          %v3199 = vpack.c.b16 %v2999, %v2991
          %v3200 = vpack.c.b16 %v3000, %v2992
          %v3201 = vpack.c.b16 %v3001, %v2993
          %v3202 = vpack.c.b16 %v3002, %v2994
          %v3203 = vpack.c.b16 %v3003, %v2995
          %v3204 = vpack.c.b16 %v3004, %v2996
          %v3205 = vpack.c.b16 %v3005, %v2997
          %v3206 = vpack.c.b16 %v3014, %v3006
          %v3207 = vpack.c.b16 %v3015, %v3007
          %v3208 = vpack.c.b16 %v3016, %v3008
          %v3209 = vpack.c.b16 %v3017, %v3009
          %v3210 = vpack.c.b16 %v3018, %v3010
          %v3211 = vpack.c.b16 %v3019, %v3011
          %v3212 = vpack.c.b16 %v3020, %v3012
          %v3213 = vpack.c.b16 %v3021, %v3013
          %v3214 = vpack.c.b16 %v3030, %v3022
          %v3215 = vpack.c.b16 %v3031, %v3023
          %v3216 = vpack.c.b16 %v3032, %v3024
          %v3217 = vpack.c.b16 %v3033, %v3025
          %v3218 = vpack.c.b16 %v3034, %v3026
          %v3219 = vpack.c.b16 %v3035, %v3027
          %v3220 = vpack.c.b16 %v3036, %v3028
          %v3221 = vpack.c.b16 %v3037, %v3029
          %v3222 = vpack.c.b16 %v3046, %v3038
          %v3223 = vpack.c.b16 %v3047, %v3039
          %v3224 = vpack.c.b16 %v3048, %v3040
          %v3225 = vpack.c.b16 %v3049, %v3041
          %v3226 = vpack.c.b16 %v3050, %v3042
          %v3227 = vpack.c.b16 %v3051, %v3043
          %v3228 = vpack.c.b16 %v3052, %v3044
          %v3229 = vpack.c.b16 %v3053, %v3045
          %v3230 = vpack.c.b16 %v3062, %v3054
          %v3231 = vpack.c.b16 %v3063, %v3055
          %v3232 = vpack.c.b16 %v3064, %v3056
          %v3233 = vpack.c.b16 %v3065, %v3057
          %v3234 = vpack.c.b16 %v3066, %v3058
          %v3235 = vpack.c.b16 %v3067, %v3059
          %v3236 = vpack.c.b16 %v3068, %v3060
          %v3237 = vpack.c.b16 %v3069, %v3061
          %v3238 = vpack.c.b16 %v3078, %v3070
          %v3239 = vpack.c.b16 %v3079, %v3071
          %v3240 = vpack.c.b16 %v3080, %v3072
          %v3241 = vpack.c.b16 %v3081, %v3073
          %v3242 = vpack.c.b16 %v3082, %v3074
          %v3243 = vpack.c.b16 %v3083, %v3075
          %v3244 = vpack.c.b16 %v3084, %v3076
          %v3245 = vpack.c.b16 %v3085, %v3077
          %v3246 = vpack.c.b16 %v3094, %v3086
          %v3247 = vpack.c.b16 %v3095, %v3087
          %v3248 = vpack.c.b16 %v3096, %v3088
          %v3249 = vpack.c.b16 %v3097, %v3089
          %v3250 = vpack.c.b16 %v3098, %v3090
          %v3251 = vpack.c.b16 %v3099, %v3091
          %v3252 = vpack.c.b16 %v3100, %v3092
          %v3253 = vpack.c.b16 %v3101, %v3093
          %v3254 = vpack.c.b16 %v3110, %v3102
          %v3255 = vpack.c.b16 %v3111, %v3103
          %v3256 = vpack.c.b16 %v3112, %v3104
          %v3257 = vpack.c.b16 %v3113, %v3105
          %v3258 = vpack.c.b16 %v3114, %v3106
          %v3259 = vpack.c.b16 %v3115, %v3107
          %v3260 = vpack.c.b16 %v3116, %v3108
          %v3261 = vpack.c.b16 %v3117, %v3109
          %v3262 = vpack.c.b16 %v3126, %v3118
          %v3263 = vpack.c.b16 %v3127, %v3119
          %v3264 = vpack.c.b16 %v3128, %v3120
          %v3265 = vpack.c.b16 %v3129, %v3121
          %v3266 = vpack.c.b16 %v3130, %v3122
          %v3267 = vpack.c.b16 %v3131, %v3123
          %v3268 = vpack.c.b16 %v3132, %v3124
          %v3269 = vpack.c.b16 %v3133, %v3125
          %v3270 = vpack.c.b16 %v3142, %v3134
          %v3271 = vpack.c.b16 %v3143, %v3135
          %v3272 = vpack.c.b16 %v3144, %v3136
          %v3273 = vpack.c.b16 %v3145, %v3137
          %v3274 = vpack.c.b16 %v3146, %v3138
          %v3275 = vpack.c.b16 %v3147, %v3139
          %v3276 = vpack.c.b16 %v3148, %v3140
          %v3277 = vpack.c.b16 %v3149, %v3141
          %3406 = vmatprep.subr.bf16.mxu0 %v3151
          %3407 = vmatpush1.bf16.msra.mxu0 %v3150
          %3408 = vmatprep.subr.bf16.mxu0 %v3159
          %3409 = vmatpush1.bf16.msra.mxu0 %v3158
          %3410 = vmatprep.subr.bf16.mxu0 %v3167
          %3411 = vmatpush1.bf16.msra.mxu0 %v3166
          %3412 = vmatprep.subr.bf16.mxu0 %v3175
          %3413 = vmatpush1.bf16.msra.mxu0 %v3174
          %3414 = vmatprep.subr.bf16.mxu0 %v3183
          %3415 = vmatpush1.bf16.msra.mxu0 %v3182
          %3416 = vmatprep.subr.bf16.mxu0 %v3191
          %3417 = vmatpush1.bf16.msra.mxu0 %v3190
          %3418 = vmatprep.subr.bf16.mxu0 %v3199
          %3419 = vmatpush1.bf16.msra.mxu0 %v3198
          %3420 = vmatprep.subr.bf16.mxu0 %v3207
          %3421 = vmatpush1.bf16.msra.mxu0 %v3206
          %3422 = vmatprep.subr.bf16.mxu0 %v3215
          %3423 = vmatpush1.bf16.msra.mxu0 %v3214
          %3424 = vmatprep.subr.bf16.mxu0 %v3223
          %3425 = vmatpush1.bf16.msra.mxu0 %v3222
          %3426 = vmatprep.subr.bf16.mxu0 %v3231
          %3427 = vmatpush1.bf16.msra.mxu0 %v3230
          %3428 = vmatprep.subr.bf16.mxu0 %v3239
          %3429 = vmatpush1.bf16.msra.mxu0 %v3238
          %3430 = vmatprep.subr.bf16.mxu0 %v3247
          %3431 = vmatpush1.bf16.msra.mxu0 %v3246
          %3432 = vmatprep.subr.bf16.mxu0 %v3255
          %3433 = vmatpush1.bf16.msra.mxu0 %v3254
          %3434 = vmatprep.subr.bf16.mxu0 %v3263
          %3435 = vmatpush1.bf16.msra.mxu0 %v3262
          %3436 = vmatprep.subr.bf16.mxu0 %v3271
          %3437 = vmatpush1.bf16.msra.mxu0 %v3270
          %3438 = vmatprep.mubr.bf16.mxu0 %v2620
          %3439 = vmatmul.mubr.bf16.gmra.mrb[0].mxu0 %v2619
          %v3440 = vpop.f32.mrb[0].mxu0
          %v3441 = vadd.f32 0.0, %v3440
          %v3442 = vpop.f32.mrb[0].mxu0
          %v3443 = vadd.f32 0.0, %v3442
          %v3444 = vpop.f32.mrb[0].mxu0
          %v3445 = vadd.f32 0.0, %v3444
          %v3446 = vpop.f32.mrb[0].mxu0
          %v3447 = vadd.f32 0.0, %v3446
          %3448 = vmatprep.mubr.bf16.mxu0 %v2622
          %3449 = vmatmul.mubr.bf16.gmra.mrb[0].mxu0 %v2621
          %v3450 = vpop.f32.mrb[0].mxu0
          %v3451 = vadd.f32 0.0, %v3450
          %v3452 = vpop.f32.mrb[0].mxu0
          %v3453 = vadd.f32 0.0, %v3452
          %v3454 = vpop.f32.mrb[0].mxu0
          %v3455 = vadd.f32 0.0, %v3454
          %v3456 = vpop.f32.mrb[0].mxu0
          %v3457 = vadd.f32 0.0, %v3456
          %3458 = vmatprep.mubr.bf16.mxu0 %v2624
          %3459 = vmatmul.mubr.bf16.gmra.mrb[0].mxu0 %v2623
          %v3460 = vpop.f32.mrb[0].mxu0
          %v3461 = vadd.f32 0.0, %v3460
          %v3462 = vpop.f32.mrb[0].mxu0
          %v3463 = vadd.f32 0.0, %v3462
          %v3464 = vpop.f32.mrb[0].mxu0
          %v3465 = vadd.f32 0.0, %v3464
          %v3466 = vpop.f32.mrb[0].mxu0
          %v3467 = vadd.f32 0.0, %v3466
          %3468 = vmatprep.mubr.bf16.mxu0 %v2626
          %3469 = vmatmul.mubr.bf16.gmra.mrb[0].mxu0 %v2625
          %v3470 = vpop.f32.mrb[0].mxu0
          %v3471 = vadd.f32 0.0, %v3470
          %v3472 = vpop.f32.mrb[0].mxu0
          %v3473 = vadd.f32 0.0, %v3472
          %v3474 = vpop.f32.mrb[0].mxu0
          %v3475 = vadd.f32 0.0, %v3474
          %v3476 = vpop.f32.mrb[0].mxu0
          %v3477 = vadd.f32 0.0, %v3476
          %3478 = vmatprep.mubr.bf16.mxu0 %v2628
          %3479 = vmatmul.mubr.bf16.gmra.mrb[0].mxu0 %v2627
          %v3480 = vpop.f32.mrb[0].mxu0
          %v3481 = vadd.f32 0.0, %v3480
          %v3482 = vpop.f32.mrb[0].mxu0
          %v3483 = vadd.f32 0.0, %v3482
          %v3484 = vpop.f32.mrb[0].mxu0
          %v3485 = vadd.f32 0.0, %v3484
          %v3486 = vpop.f32.mrb[0].mxu0
          %v3487 = vadd.f32 0.0, %v3486
          %3488 = vmatprep.mubr.bf16.mxu0 %v2630
          %3489 = vmatmul.mubr.bf16.gmra.mrb[0].mxu0 %v2629
          %v3490 = vpop.f32.mrb[0].mxu0
          %v3491 = vadd.f32 0.0, %v3490
          %v3492 = vpop.f32.mrb[0].mxu0
          %v3493 = vadd.f32 0.0, %v3492
          %v3494 = vpop.f32.mrb[0].mxu0
          %v3495 = vadd.f32 0.0, %v3494
          %v3496 = vpop.f32.mrb[0].mxu0
          %v3497 = vadd.f32 0.0, %v3496
          %3498 = vmatprep.mubr.bf16.mxu0 %v2632
          %3499 = vmatmul.mubr.bf16.gmra.mrb[0].mxu0 %v2631
          %v3500 = vpop.f32.mrb[0].mxu0
          %v3501 = vadd.f32 0.0, %v3500
          %v3502 = vpop.f32.mrb[0].mxu0
          %v3503 = vadd.f32 0.0, %v3502
          %v3504 = vpop.f32.mrb[0].mxu0
          %v3505 = vadd.f32 0.0, %v3504
          %v3506 = vpop.f32.mrb[0].mxu0
          %v3507 = vadd.f32 0.0, %v3506
          %3508 = vmatprep.mubr.bf16.mxu0 %v2634
          %3509 = vmatmul.mubr.bf16.gmra.mrb[0].mxu0 %v2633
          %v3510 = vpop.f32.mrb[0].mxu0
          %v3511 = vadd.f32 0.0, %v3510
          %v3512 = vpop.f32.mrb[0].mxu0
          %v3513 = vadd.f32 0.0, %v3512
          %v3514 = vpop.f32.mrb[0].mxu0
          %v3515 = vadd.f32 0.0, %v3514
          %v3516 = vpop.f32.mrb[0].mxu0
          %v3517 = vadd.f32 0.0, %v3516
          %3518 = vdwg.mxu0
          %3519 = vmatprep.subr.bf16.mxu0 %v3153
          %3520 = vmatpush1.bf16.msra.mxu0 %v3152
          %3521 = vmatprep.subr.bf16.mxu0 %v3161
          %3522 = vmatpush1.bf16.msra.mxu0 %v3160
          %3523 = vmatprep.subr.bf16.mxu0 %v3169
          %3524 = vmatpush1.bf16.msra.mxu0 %v3168
          %3525 = vmatprep.subr.bf16.mxu0 %v3177
          %3526 = vmatpush1.bf16.msra.mxu0 %v3176
          %3527 = vmatprep.subr.bf16.mxu0 %v3185
          %3528 = vmatpush1.bf16.msra.mxu0 %v3184
          %3529 = vmatprep.subr.bf16.mxu0 %v3193
          %3530 = vmatpush1.bf16.msra.mxu0 %v3192
          %3531 = vmatprep.subr.bf16.mxu0 %v3201
          %3532 = vmatpush1.bf16.msra.mxu0 %v3200
          %3533 = vmatprep.subr.bf16.mxu0 %v3209
          %3534 = vmatpush1.bf16.msra.mxu0 %v3208
          %3535 = vmatprep.subr.bf16.mxu0 %v3217
          %3536 = vmatpush1.bf16.msra.mxu0 %v3216
          %3537 = vmatprep.subr.bf16.mxu0 %v3225
          %3538 = vmatpush1.bf16.msra.mxu0 %v3224
          %3539 = vmatprep.subr.bf16.mxu0 %v3233
          %3540 = vmatpush1.bf16.msra.mxu0 %v3232
          %3541 = vmatprep.subr.bf16.mxu0 %v3241
          %3542 = vmatpush1.bf16.msra.mxu0 %v3240
          %3543 = vmatprep.subr.bf16.mxu0 %v3249
          %3544 = vmatpush1.bf16.msra.mxu0 %v3248
          %3545 = vmatprep.subr.bf16.mxu0 %v3257
          %3546 = vmatpush1.bf16.msra.mxu0 %v3256
          %3547 = vmatprep.subr.bf16.mxu0 %v3265
          %3548 = vmatpush1.bf16.msra.mxu0 %v3264
          %3549 = vmatprep.subr.bf16.mxu0 %v3273
          %3550 = vmatpush1.bf16.msra.mxu0 %v3272
          %3551 = vmatprep.mubr.bf16.mxu0 %v2620
          %3552 = vmatmul.mubr.bf16.gmra.mrb[0].mxu0 %v2619
          %v3553 = vpop.f32.mrb[0].mxu0
          %v3554 = vadd.f32 0.0, %v3553
          %v3555 = vpop.f32.mrb[0].mxu0
          %v3556 = vadd.f32 0.0, %v3555
          %v3557 = vpop.f32.mrb[0].mxu0
          %v3558 = vadd.f32 0.0, %v3557
          %v3559 = vpop.f32.mrb[0].mxu0
          %v3560 = vadd.f32 0.0, %v3559
          %3561 = vmatprep.mubr.bf16.mxu0 %v2622
          %3562 = vmatmul.mubr.bf16.gmra.mrb[0].mxu0 %v2621
          %v3563 = vpop.f32.mrb[0].mxu0
          %v3564 = vadd.f32 0.0, %v3563
          %v3565 = vpop.f32.mrb[0].mxu0
          %v3566 = vadd.f32 0.0, %v3565
          %v3567 = vpop.f32.mrb[0].mxu0
          %v3568 = vadd.f32 0.0, %v3567
          %v3569 = vpop.f32.mrb[0].mxu0
          %v3570 = vadd.f32 0.0, %v3569
          %3571 = vmatprep.mubr.bf16.mxu0 %v2624
          %3572 = vmatmul.mubr.bf16.gmra.mrb[0].mxu0 %v2623
          %v3573 = vpop.f32.mrb[0].mxu0
          %v3574 = vadd.f32 0.0, %v3573
          %v3575 = vpop.f32.mrb[0].mxu0
          %v3576 = vadd.f32 0.0, %v3575
          %v3577 = vpop.f32.mrb[0].mxu0
          %v3578 = vadd.f32 0.0, %v3577
          %v3579 = vpop.f32.mrb[0].mxu0
          %v3580 = vadd.f32 0.0, %v3579
          %3581 = vmatprep.mubr.bf16.mxu0 %v2626
          %3582 = vmatmul.mubr.bf16.gmra.mrb[0].mxu0 %v2625
          %v3583 = vpop.f32.mrb[0].mxu0
          %v3584 = vadd.f32 0.0, %v3583
          %v3585 = vpop.f32.mrb[0].mxu0
          %v3586 = vadd.f32 0.0, %v3585
          %v3587 = vpop.f32.mrb[0].mxu0
          %v3588 = vadd.f32 0.0, %v3587
          %v3589 = vpop.f32.mrb[0].mxu0
          %v3590 = vadd.f32 0.0, %v3589
          %3591 = vmatprep.mubr.bf16.mxu0 %v2628
          %3592 = vmatmul.mubr.bf16.gmra.mrb[0].mxu0 %v2627
          %v3593 = vpop.f32.mrb[0].mxu0
          %v3594 = vadd.f32 0.0, %v3593
          %v3595 = vpop.f32.mrb[0].mxu0
          %v3596 = vadd.f32 0.0, %v3595
          %v3597 = vpop.f32.mrb[0].mxu0
          %v3598 = vadd.f32 0.0, %v3597
          %v3599 = vpop.f32.mrb[0].mxu0
          %v3600 = vadd.f32 0.0, %v3599
          %3601 = vmatprep.mubr.bf16.mxu0 %v2630
          %3602 = vmatmul.mubr.bf16.gmra.mrb[0].mxu0 %v2629
          %v3603 = vpop.f32.mrb[0].mxu0
          %v3604 = vadd.f32 0.0, %v3603
          %v3605 = vpop.f32.mrb[0].mxu0
          %v3606 = vadd.f32 0.0, %v3605
          %v3607 = vpop.f32.mrb[0].mxu0
          %v3608 = vadd.f32 0.0, %v3607
          %v3609 = vpop.f32.mrb[0].mxu0
          %v3610 = vadd.f32 0.0, %v3609
          %3611 = vmatprep.mubr.bf16.mxu0 %v2632
          %3612 = vmatmul.mubr.bf16.gmra.mrb[0].mxu0 %v2631
          %v3613 = vpop.f32.mrb[0].mxu0
          %v3614 = vadd.f32 0.0, %v3613
          %v3615 = vpop.f32.mrb[0].mxu0
          %v3616 = vadd.f32 0.0, %v3615
          %v3617 = vpop.f32.mrb[0].mxu0
          %v3618 = vadd.f32 0.0, %v3617
          %v3619 = vpop.f32.mrb[0].mxu0
          %v3620 = vadd.f32 0.0, %v3619
          %3621 = vmatprep.mubr.bf16.mxu0 %v2634
          %3622 = vmatmul.mubr.bf16.gmra.mrb[0].mxu0 %v2633
          %v3623 = vpop.f32.mrb[0].mxu0
          %v3624 = vadd.f32 0.0, %v3623
          %v3625 = vpop.f32.mrb[0].mxu0
          %v3626 = vadd.f32 0.0, %v3625
          %v3627 = vpop.f32.mrb[0].mxu0
          %v3628 = vadd.f32 0.0, %v3627
          %v3629 = vpop.f32.mrb[0].mxu0
          %v3630 = vadd.f32 0.0, %v3629
          %3631 = vdwg.mxu0
          %3632 = vmatprep.subr.bf16.mxu0 %v3155
          %3633 = vmatpush1.bf16.msra.mxu0 %v3154
          %3634 = vmatprep.subr.bf16.mxu0 %v3163
          %3635 = vmatpush1.bf16.msra.mxu0 %v3162
          %3636 = vmatprep.subr.bf16.mxu0 %v3171
          %3637 = vmatpush1.bf16.msra.mxu0 %v3170
          %3638 = vmatprep.subr.bf16.mxu0 %v3179
          %3639 = vmatpush1.bf16.msra.mxu0 %v3178
          %3640 = vmatprep.subr.bf16.mxu0 %v3187
          %3641 = vmatpush1.bf16.msra.mxu0 %v3186
          %3642 = vmatprep.subr.bf16.mxu0 %v3195
          %3643 = vmatpush1.bf16.msra.mxu0 %v3194
          %3644 = vmatprep.subr.bf16.mxu0 %v3203
          %3645 = vmatpush1.bf16.msra.mxu0 %v3202
          %3646 = vmatprep.subr.bf16.mxu0 %v3211
          %3647 = vmatpush1.bf16.msra.mxu0 %v3210
          %3648 = vmatprep.subr.bf16.mxu0 %v3219
          %3649 = vmatpush1.bf16.msra.mxu0 %v3218
          %3650 = vmatprep.subr.bf16.mxu0 %v3227
          %3651 = vmatpush1.bf16.msra.mxu0 %v3226
          %3652 = vmatprep.subr.bf16.mxu0 %v3235
          %3653 = vmatpush1.bf16.msra.mxu0 %v3234
          %3654 = vmatprep.subr.bf16.mxu0 %v3243
          %3655 = vmatpush1.bf16.msra.mxu0 %v3242
          %3656 = vmatprep.subr.bf16.mxu0 %v3251
          %3657 = vmatpush1.bf16.msra.mxu0 %v3250
          %3658 = vmatprep.subr.bf16.mxu0 %v3259
          %3659 = vmatpush1.bf16.msra.mxu0 %v3258
          %3660 = vmatprep.subr.bf16.mxu0 %v3267
          %3661 = vmatpush1.bf16.msra.mxu0 %v3266
          %3662 = vmatprep.subr.bf16.mxu0 %v3275
          %3663 = vmatpush1.bf16.msra.mxu0 %v3274
          %3664 = vmatprep.mubr.bf16.mxu0 %v2620
          %3665 = vmatmul.mubr.bf16.gmra.mrb[0].mxu0 %v2619
          %v3666 = vpop.f32.mrb[0].mxu0
          %v3667 = vadd.f32 0.0, %v3666
          %v3668 = vpop.f32.mrb[0].mxu0
          %v3669 = vadd.f32 0.0, %v3668
          %v3670 = vpop.f32.mrb[0].mxu0
          %v3671 = vadd.f32 0.0, %v3670
          %v3672 = vpop.f32.mrb[0].mxu0
          %v3673 = vadd.f32 0.0, %v3672
          %3674 = vmatprep.mubr.bf16.mxu0 %v2622
          %3675 = vmatmul.mubr.bf16.gmra.mrb[0].mxu0 %v2621
          %v3676 = vpop.f32.mrb[0].mxu0
          %v3677 = vadd.f32 0.0, %v3676
          %v3678 = vpop.f32.mrb[0].mxu0
          %v3679 = vadd.f32 0.0, %v3678
          %v3680 = vpop.f32.mrb[0].mxu0
          %v3681 = vadd.f32 0.0, %v3680
          %v3682 = vpop.f32.mrb[0].mxu0
          %v3683 = vadd.f32 0.0, %v3682
          %3684 = vmatprep.mubr.bf16.mxu0 %v2624
          %3685 = vmatmul.mubr.bf16.gmra.mrb[0].mxu0 %v2623
          %v3686 = vpop.f32.mrb[0].mxu0
          %v3687 = vadd.f32 0.0, %v3686
          %v3688 = vpop.f32.mrb[0].mxu0
          %v3689 = vadd.f32 0.0, %v3688
          %v3690 = vpop.f32.mrb[0].mxu0
          %v3691 = vadd.f32 0.0, %v3690
          %v3692 = vpop.f32.mrb[0].mxu0
          %v3693 = vadd.f32 0.0, %v3692
          %3694 = vmatprep.mubr.bf16.mxu0 %v2626
          %3695 = vmatmul.mubr.bf16.gmra.mrb[0].mxu0 %v2625
          %v3696 = vpop.f32.mrb[0].mxu0
          %v3697 = vadd.f32 0.0, %v3696
          %v3698 = vpop.f32.mrb[0].mxu0
          %v3699 = vadd.f32 0.0, %v3698
          %v3700 = vpop.f32.mrb[0].mxu0
          %v3701 = vadd.f32 0.0, %v3700
          %v3702 = vpop.f32.mrb[0].mxu0
          %v3703 = vadd.f32 0.0, %v3702
          %3704 = vmatprep.mubr.bf16.mxu0 %v2628
          %3705 = vmatmul.mubr.bf16.gmra.mrb[0].mxu0 %v2627
          %v3706 = vpop.f32.mrb[0].mxu0
          %v3707 = vadd.f32 0.0, %v3706
          %v3708 = vpop.f32.mrb[0].mxu0
          %v3709 = vadd.f32 0.0, %v3708
          %v3710 = vpop.f32.mrb[0].mxu0
          %v3711 = vadd.f32 0.0, %v3710
          %v3712 = vpop.f32.mrb[0].mxu0
          %v3713 = vadd.f32 0.0, %v3712
          %3714 = vmatprep.mubr.bf16.mxu0 %v2630
          %3715 = vmatmul.mubr.bf16.gmra.mrb[0].mxu0 %v2629
          %v3716 = vpop.f32.mrb[0].mxu0
          %v3717 = vadd.f32 0.0, %v3716
          %v3718 = vpop.f32.mrb[0].mxu0
          %v3719 = vadd.f32 0.0, %v3718
          %v3720 = vpop.f32.mrb[0].mxu0
          %v3721 = vadd.f32 0.0, %v3720
          %v3722 = vpop.f32.mrb[0].mxu0
          %v3723 = vadd.f32 0.0, %v3722
          %3724 = vmatprep.mubr.bf16.mxu0 %v2632
          %3725 = vmatmul.mubr.bf16.gmra.mrb[0].mxu0 %v2631
          %v3726 = vpop.f32.mrb[0].mxu0
          %v3727 = vadd.f32 0.0, %v3726
          %v3728 = vpop.f32.mrb[0].mxu0
          %v3729 = vadd.f32 0.0, %v3728
          %v3730 = vpop.f32.mrb[0].mxu0
          %v3731 = vadd.f32 0.0, %v3730
          %v3732 = vpop.f32.mrb[0].mxu0
          %v3733 = vadd.f32 0.0, %v3732
          %3734 = vmatprep.mubr.bf16.mxu0 %v2634
          %3735 = vmatmul.mubr.bf16.gmra.mrb[0].mxu0 %v2633
          %v3736 = vpop.f32.mrb[0].mxu0
          %v3737 = vadd.f32 0.0, %v3736
          %v3738 = vpop.f32.mrb[0].mxu0
          %v3739 = vadd.f32 0.0, %v3738
          %v3740 = vpop.f32.mrb[0].mxu0
          %v3741 = vadd.f32 0.0, %v3740
          %v3742 = vpop.f32.mrb[0].mxu0
          %v3743 = vadd.f32 0.0, %v3742
          %3744 = vdwg.mxu0
          %3745 = vmatprep.subr.bf16.mxu0 %v3157
          %3746 = vmatpush1.bf16.msra.mxu0 %v3156
          %3747 = vmatprep.subr.bf16.mxu0 %v3165
          %3748 = vmatpush1.bf16.msra.mxu0 %v3164
          %3749 = vmatprep.subr.bf16.mxu0 %v3173
          %3750 = vmatpush1.bf16.msra.mxu0 %v3172
          %3751 = vmatprep.subr.bf16.mxu0 %v3181
          %3752 = vmatpush1.bf16.msra.mxu0 %v3180
          %3753 = vmatprep.subr.bf16.mxu0 %v3189
          %3754 = vmatpush1.bf16.msra.mxu0 %v3188
          %3755 = vmatprep.subr.bf16.mxu0 %v3197
          %3756 = vmatpush1.bf16.msra.mxu0 %v3196
          %3757 = vmatprep.subr.bf16.mxu0 %v3205
          %3758 = vmatpush1.bf16.msra.mxu0 %v3204
          %3759 = vmatprep.subr.bf16.mxu0 %v3213
          %3760 = vmatpush1.bf16.msra.mxu0 %v3212
          %3761 = vmatprep.subr.bf16.mxu0 %v3221
          %3762 = vmatpush1.bf16.msra.mxu0 %v3220
          %3763 = vmatprep.subr.bf16.mxu0 %v3229
          %3764 = vmatpush1.bf16.msra.mxu0 %v3228
          %3765 = vmatprep.subr.bf16.mxu0 %v3237
          %3766 = vmatpush1.bf16.msra.mxu0 %v3236
          %3767 = vmatprep.subr.bf16.mxu0 %v3245
          %3768 = vmatpush1.bf16.msra.mxu0 %v3244
          %3769 = vmatprep.subr.bf16.mxu0 %v3253
          %3770 = vmatpush1.bf16.msra.mxu0 %v3252
          %3771 = vmatprep.subr.bf16.mxu0 %v3261
          %3772 = vmatpush1.bf16.msra.mxu0 %v3260
          %3773 = vmatprep.subr.bf16.mxu0 %v3269
          %3774 = vmatpush1.bf16.msra.mxu0 %v3268
          %3775 = vmatprep.subr.bf16.mxu0 %v3277
          %3776 = vmatpush1.bf16.msra.mxu0 %v3276
          %3777 = vmatprep.mubr.bf16.mxu0 %v2620
          %3778 = vmatmul.mubr.bf16.gmra.mrb[0].mxu0 %v2619
          %v3779 = vpop.f32.mrb[0].mxu0
          %v3780 = vadd.f32 0.0, %v3779
          %v3781 = vpop.f32.mrb[0].mxu0
          %v3782 = vadd.f32 0.0, %v3781
          %v3783 = vpop.f32.mrb[0].mxu0
          %v3784 = vadd.f32 0.0, %v3783
          %v3785 = vpop.f32.mrb[0].mxu0
          %v3786 = vadd.f32 0.0, %v3785
          %3787 = vmatprep.mubr.bf16.mxu0 %v2622
          %3788 = vmatmul.mubr.bf16.gmra.mrb[0].mxu0 %v2621
          %v3789 = vpop.f32.mrb[0].mxu0
          %v3790 = vadd.f32 0.0, %v3789
          %v3791 = vpop.f32.mrb[0].mxu0
          %v3792 = vadd.f32 0.0, %v3791
          %v3793 = vpop.f32.mrb[0].mxu0
          %v3794 = vadd.f32 0.0, %v3793
          %v3795 = vpop.f32.mrb[0].mxu0
          %v3796 = vadd.f32 0.0, %v3795
          %3797 = vmatprep.mubr.bf16.mxu0 %v2624
          %3798 = vmatmul.mubr.bf16.gmra.mrb[0].mxu0 %v2623
          %v3799 = vpop.f32.mrb[0].mxu0
          %v3800 = vadd.f32 0.0, %v3799
          %v3801 = vpop.f32.mrb[0].mxu0
          %v3802 = vadd.f32 0.0, %v3801
          %v3803 = vpop.f32.mrb[0].mxu0
          %v3804 = vadd.f32 0.0, %v3803
          %v3805 = vpop.f32.mrb[0].mxu0
          %v3806 = vadd.f32 0.0, %v3805
          %3807 = vmatprep.mubr.bf16.mxu0 %v2626
          %3808 = vmatmul.mubr.bf16.gmra.mrb[0].mxu0 %v2625
          %v3809 = vpop.f32.mrb[0].mxu0
          %v3810 = vadd.f32 0.0, %v3809
          %v3811 = vpop.f32.mrb[0].mxu0
          %v3812 = vadd.f32 0.0, %v3811
          %v3813 = vpop.f32.mrb[0].mxu0
          %v3814 = vadd.f32 0.0, %v3813
          %v3815 = vpop.f32.mrb[0].mxu0
          %v3816 = vadd.f32 0.0, %v3815
          %3817 = vmatprep.mubr.bf16.mxu0 %v2628
          %3818 = vmatmul.mubr.bf16.gmra.mrb[0].mxu0 %v2627
          %v3819 = vpop.f32.mrb[0].mxu0
          %v3820 = vadd.f32 0.0, %v3819
          %v3821 = vpop.f32.mrb[0].mxu0
          %v3822 = vadd.f32 0.0, %v3821
          %v3823 = vpop.f32.mrb[0].mxu0
          %v3824 = vadd.f32 0.0, %v3823
          %v3825 = vpop.f32.mrb[0].mxu0
          %v3826 = vadd.f32 0.0, %v3825
          %3827 = vmatprep.mubr.bf16.mxu0 %v2630
          %3828 = vmatmul.mubr.bf16.gmra.mrb[0].mxu0 %v2629
          %v3829 = vpop.f32.mrb[0].mxu0
          %v3830 = vadd.f32 0.0, %v3829
          %v3831 = vpop.f32.mrb[0].mxu0
          %v3832 = vadd.f32 0.0, %v3831
          %v3833 = vpop.f32.mrb[0].mxu0
          %v3834 = vadd.f32 0.0, %v3833
          %v3835 = vpop.f32.mrb[0].mxu0
          %v3836 = vadd.f32 0.0, %v3835
          %3837 = vmatprep.mubr.bf16.mxu0 %v2632
          %3838 = vmatmul.mubr.bf16.gmra.mrb[0].mxu0 %v2631
          %v3839 = vpop.f32.mrb[0].mxu0
          %v3840 = vadd.f32 0.0, %v3839
          %v3841 = vpop.f32.mrb[0].mxu0
          %v3842 = vadd.f32 0.0, %v3841
          %v3843 = vpop.f32.mrb[0].mxu0
          %v3844 = vadd.f32 0.0, %v3843
          %v3845 = vpop.f32.mrb[0].mxu0
          %v3846 = vadd.f32 0.0, %v3845
          %3847 = vmatprep.mubr.bf16.mxu0 %v2634
          %3848 = vmatmul.mubr.bf16.gmra.mrb[0].mxu0 %v2633
          %v3849 = vpop.f32.mrb[0].mxu0
          %v3850 = vadd.f32 0.0, %v3849
          %v3851 = vpop.f32.mrb[0].mxu0
          %v3852 = vadd.f32 0.0, %v3851
          %v3853 = vpop.f32.mrb[0].mxu0
          %v3854 = vadd.f32 0.0, %v3853
          %v3855 = vpop.f32.mrb[0].mxu0
          %v3856 = vadd.f32 0.0, %v3855
          %3857 = vdwg.mxu0
          %v3858 = vmax.f32 %v3441, 0.0
          %v3859 = vmax.f32 %v3443, 0.0
          %v3860 = vmax.f32 %v3554, 0.0
          %v3861 = vmax.f32 %v3556, 0.0
          %v3862 = vmax.f32 %v3667, 0.0
          %v3863 = vmax.f32 %v3669, 0.0
          %v3864 = vmax.f32 %v3780, 0.0
          %v3865 = vmax.f32 %v3782, 0.0
          %v3866 = vmax.f32 %v3445, 0.0
          %v3867 = vmax.f32 %v3447, 0.0
          %v3868 = vmax.f32 %v3558, 0.0
          %v3869 = vmax.f32 %v3560, 0.0
          %v3870 = vmax.f32 %v3671, 0.0
          %v3871 = vmax.f32 %v3673, 0.0
          %v3872 = vmax.f32 %v3784, 0.0
          %v3873 = vmax.f32 %v3786, 0.0
          %v3874 = vmax.f32 %v3451, 0.0
          %v3875 = vmax.f32 %v3453, 0.0
          %v3876 = vmax.f32 %v3564, 0.0
          %v3877 = vmax.f32 %v3566, 0.0
          %v3878 = vmax.f32 %v3677, 0.0
          %v3879 = vmax.f32 %v3679, 0.0
          %v3880 = vmax.f32 %v3790, 0.0
          %v3881 = vmax.f32 %v3792, 0.0
          %v3882 = vmax.f32 %v3455, 0.0
          %v3883 = vmax.f32 %v3457, 0.0
          %v3884 = vmax.f32 %v3568, 0.0
          %v3885 = vmax.f32 %v3570, 0.0
          %v3886 = vmax.f32 %v3681, 0.0
          %v3887 = vmax.f32 %v3683, 0.0
          %v3888 = vmax.f32 %v3794, 0.0
          %v3889 = vmax.f32 %v3796, 0.0
          %v3890 = vmax.f32 %v3461, 0.0
          %v3891 = vmax.f32 %v3463, 0.0
          %v3892 = vmax.f32 %v3574, 0.0
          %v3893 = vmax.f32 %v3576, 0.0
          %v3894 = vmax.f32 %v3687, 0.0
          %v3895 = vmax.f32 %v3689, 0.0
          %v3896 = vmax.f32 %v3800, 0.0
          %v3897 = vmax.f32 %v3802, 0.0
          %v3898 = vmax.f32 %v3465, 0.0
          %v3899 = vmax.f32 %v3467, 0.0
          %v3900 = vmax.f32 %v3578, 0.0
          %v3901 = vmax.f32 %v3580, 0.0
          %v3902 = vmax.f32 %v3691, 0.0
          %v3903 = vmax.f32 %v3693, 0.0
          %v3904 = vmax.f32 %v3804, 0.0
          %v3905 = vmax.f32 %v3806, 0.0
          %v3906 = vmax.f32 %v3471, 0.0
          %v3907 = vmax.f32 %v3473, 0.0
          %v3908 = vmax.f32 %v3584, 0.0
          %v3909 = vmax.f32 %v3586, 0.0
          %v3910 = vmax.f32 %v3697, 0.0
          %v3911 = vmax.f32 %v3699, 0.0
          %v3912 = vmax.f32 %v3810, 0.0
          %v3913 = vmax.f32 %v3812, 0.0
          %v3914 = vmax.f32 %v3475, 0.0
          %v3915 = vmax.f32 %v3477, 0.0
          %v3916 = vmax.f32 %v3588, 0.0
          %v3917 = vmax.f32 %v3590, 0.0
          %v3918 = vmax.f32 %v3701, 0.0
          %v3919 = vmax.f32 %v3703, 0.0
          %v3920 = vmax.f32 %v3814, 0.0
          %v3921 = vmax.f32 %v3816, 0.0
          %v3922 = vmax.f32 %v3481, 0.0
          %v3923 = vmax.f32 %v3483, 0.0
          %v3924 = vmax.f32 %v3594, 0.0
          %v3925 = vmax.f32 %v3596, 0.0
          %v3926 = vmax.f32 %v3707, 0.0
          %v3927 = vmax.f32 %v3709, 0.0
          %v3928 = vmax.f32 %v3820, 0.0
          %v3929 = vmax.f32 %v3822, 0.0
          %v3930 = vmax.f32 %v3485, 0.0
          %v3931 = vmax.f32 %v3487, 0.0
          %v3932 = vmax.f32 %v3598, 0.0
          %v3933 = vmax.f32 %v3600, 0.0
          %v3934 = vmax.f32 %v3711, 0.0
          %v3935 = vmax.f32 %v3713, 0.0
          %v3936 = vmax.f32 %v3824, 0.0
          %v3937 = vmax.f32 %v3826, 0.0
          %v3938 = vmax.f32 %v3491, 0.0
          %v3939 = vmax.f32 %v3493, 0.0
          %v3940 = vmax.f32 %v3604, 0.0
          %v3941 = vmax.f32 %v3606, 0.0
          %v3942 = vmax.f32 %v3717, 0.0
          %v3943 = vmax.f32 %v3719, 0.0
          %v3944 = vmax.f32 %v3830, 0.0
          %v3945 = vmax.f32 %v3832, 0.0
          %v3946 = vmax.f32 %v3495, 0.0
          %v3947 = vmax.f32 %v3497, 0.0
          %v3948 = vmax.f32 %v3608, 0.0
          %v3949 = vmax.f32 %v3610, 0.0
          %v3950 = vmax.f32 %v3721, 0.0
          %v3951 = vmax.f32 %v3723, 0.0
          %v3952 = vmax.f32 %v3834, 0.0
          %v3953 = vmax.f32 %v3836, 0.0
          %v3954 = vmax.f32 %v3501, 0.0
          %v3955 = vmax.f32 %v3503, 0.0
          %v3956 = vmax.f32 %v3614, 0.0
          %v3957 = vmax.f32 %v3616, 0.0
          %v3958 = vmax.f32 %v3727, 0.0
          %v3959 = vmax.f32 %v3729, 0.0
          %v3960 = vmax.f32 %v3840, 0.0
          %v3961 = vmax.f32 %v3842, 0.0
          %v3962 = vmax.f32 %v3505, 0.0
          %v3963 = vmax.f32 %v3507, 0.0
          %v3964 = vmax.f32 %v3618, 0.0
          %v3965 = vmax.f32 %v3620, 0.0
          %v3966 = vmax.f32 %v3731, 0.0
          %v3967 = vmax.f32 %v3733, 0.0
          %v3968 = vmax.f32 %v3844, 0.0
          %v3969 = vmax.f32 %v3846, 0.0
          %v3970 = vmax.f32 %v3511, 0.0
          %v3971 = vmax.f32 %v3513, 0.0
          %v3972 = vmax.f32 %v3624, 0.0
          %v3973 = vmax.f32 %v3626, 0.0
          %v3974 = vmax.f32 %v3737, 0.0
          %v3975 = vmax.f32 %v3739, 0.0
          %v3976 = vmax.f32 %v3850, 0.0
          %v3977 = vmax.f32 %v3852, 0.0
          %v3978 = vmax.f32 %v3515, 0.0
          %v3979 = vmax.f32 %v3517, 0.0
          %v3980 = vmax.f32 %v3628, 0.0
          %v3981 = vmax.f32 %v3630, 0.0
          %v3982 = vmax.f32 %v3741, 0.0
          %v3983 = vmax.f32 %v3743, 0.0
          %v3984 = vmax.f32 %v3854, 0.0
          %v3985 = vmax.f32 %v3856, 0.0
          %3986 = vst [vmem:[#allocation2] sm:$0xff] %v3858
          %3987 = vst [vmem:[#allocation2 + $0x8] sm:$0xff] %v3859
          %3988 = vst [vmem:[#allocation2 + $0x10] sm:$0xff] %v3860
          %3989 = vst [vmem:[#allocation2 + $0x18] sm:$0xff] %v3861
          %3990 = vst [vmem:[#allocation2 + $0x20] sm:$0xff] %v3862
          %3991 = vst [vmem:[#allocation2 + $0x28] sm:$0xff] %v3863
          %3992 = vst [vmem:[#allocation2 + $0x30] sm:$0xff] %v3864
          %3993 = vst [vmem:[#allocation2 + $0x38] sm:$0xff] %v3865
          %3994 = vst [vmem:[#allocation2 + $0x40] sm:$0xff] %v3866
          %3995 = vst [vmem:[#allocation2 + $0x48] sm:$0xff] %v3867
          %3996 = vst [vmem:[#allocation2 + $0x50] sm:$0xff] %v3868
          %3997 = vst [vmem:[#allocation2 + $0x58] sm:$0xff] %v3869
          %3998 = vst [vmem:[#allocation2 + $0x60] sm:$0xff] %v3870
          %3999 = vst [vmem:[#allocation2 + $0x68] sm:$0xff] %v3871
          %4000 = vst [vmem:[#allocation2 + $0x70] sm:$0xff] %v3872
          %4001 = vst [vmem:[#allocation2 + $0x78] sm:$0xff] %v3873
          %4002 = vst [vmem:[#allocation2 + $0x80] sm:$0xff] %v3874
          %4003 = vst [vmem:[#allocation2 + $0x88] sm:$0xff] %v3875
          %4004 = vst [vmem:[#allocation2 + $0x90] sm:$0xff] %v3876
          %4005 = vst [vmem:[#allocation2 + $0x98] sm:$0xff] %v3877
          %4006 = vst [vmem:[#allocation2 + $0xa0] sm:$0xff] %v3878
          %4007 = vst [vmem:[#allocation2 + $0xa8] sm:$0xff] %v3879
          %4008 = vst [vmem:[#allocation2 + $0xb0] sm:$0xff] %v3880
          %4009 = vst [vmem:[#allocation2 + $0xb8] sm:$0xff] %v3881
          %4010 = vst [vmem:[#allocation2 + $0xc0] sm:$0xff] %v3882
          %4011 = vst [vmem:[#allocation2 + $0xc8] sm:$0xff] %v3883
          %4012 = vst [vmem:[#allocation2 + $0xd0] sm:$0xff] %v3884
          %4013 = vst [vmem:[#allocation2 + $0xd8] sm:$0xff] %v3885
          %4014 = vst [vmem:[#allocation2 + $0xe0] sm:$0xff] %v3886
          %4015 = vst [vmem:[#allocation2 + $0xe8] sm:$0xff] %v3887
          %4016 = vst [vmem:[#allocation2 + $0xf0] sm:$0xff] %v3888
          %4017 = vst [vmem:[#allocation2 + $0xf8] sm:$0xff] %v3889
          %4018 = vst [vmem:[#allocation2 + $0x100] sm:$0xff] %v3890
          %4019 = vst [vmem:[#allocation2 + $0x108] sm:$0xff] %v3891
          %4020 = vst [vmem:[#allocation2 + $0x110] sm:$0xff] %v3892
          %4021 = vst [vmem:[#allocation2 + $0x118] sm:$0xff] %v3893
          %4022 = vst [vmem:[#allocation2 + $0x120] sm:$0xff] %v3894
          %4023 = vst [vmem:[#allocation2 + $0x128] sm:$0xff] %v3895
          %4024 = vst [vmem:[#allocation2 + $0x130] sm:$0xff] %v3896
          %4025 = vst [vmem:[#allocation2 + $0x138] sm:$0xff] %v3897
          %4026 = vst [vmem:[#allocation2 + $0x140] sm:$0xff] %v3898
          %4027 = vst [vmem:[#allocation2 + $0x148] sm:$0xff] %v3899
          %4028 = vst [vmem:[#allocation2 + $0x150] sm:$0xff] %v3900
          %4029 = vst [vmem:[#allocation2 + $0x158] sm:$0xff] %v3901
          %4030 = vst [vmem:[#allocation2 + $0x160] sm:$0xff] %v3902
          %4031 = vst [vmem:[#allocation2 + $0x168] sm:$0xff] %v3903
          %4032 = vst [vmem:[#allocation2 + $0x170] sm:$0xff] %v3904
          %4033 = vst [vmem:[#allocation2 + $0x178] sm:$0xff] %v3905
          %4034 = vst [vmem:[#allocation2 + $0x180] sm:$0xff] %v3906
          %4035 = vst [vmem:[#allocation2 + $0x188] sm:$0xff] %v3907
          %4036 = vst [vmem:[#allocation2 + $0x190] sm:$0xff] %v3908
          %4037 = vst [vmem:[#allocation2 + $0x198] sm:$0xff] %v3909
          %4038 = vst [vmem:[#allocation2 + $0x1a0] sm:$0xff] %v3910
          %4039 = vst [vmem:[#allocation2 + $0x1a8] sm:$0xff] %v3911
          %4040 = vst [vmem:[#allocation2 + $0x1b0] sm:$0xff] %v3912
          %4041 = vst [vmem:[#allocation2 + $0x1b8] sm:$0xff] %v3913
          %4042 = vst [vmem:[#allocation2 + $0x1c0] sm:$0xff] %v3914
          %4043 = vst [vmem:[#allocation2 + $0x1c8] sm:$0xff] %v3915
          %4044 = vst [vmem:[#allocation2 + $0x1d0] sm:$0xff] %v3916
          %4045 = vst [vmem:[#allocation2 + $0x1d8] sm:$0xff] %v3917
          %4046 = vst [vmem:[#allocation2 + $0x1e0] sm:$0xff] %v3918
          %4047 = vst [vmem:[#allocation2 + $0x1e8] sm:$0xff] %v3919
          %4048 = vst [vmem:[#allocation2 + $0x1f0] sm:$0xff] %v3920
          %4049 = vst [vmem:[#allocation2 + $0x1f8] sm:$0xff] %v3921
          %4050 = vst [vmem:[#allocation2 + $0x200] sm:$0xff] %v3922
          %4051 = vst [vmem:[#allocation2 + $0x208] sm:$0xff] %v3923
          %4052 = vst [vmem:[#allocation2 + $0x210] sm:$0xff] %v3924
          %4053 = vst [vmem:[#allocation2 + $0x218] sm:$0xff] %v3925
          %4054 = vst [vmem:[#allocation2 + $0x220] sm:$0xff] %v3926
          %4055 = vst [vmem:[#allocation2 + $0x228] sm:$0xff] %v3927
          %4056 = vst [vmem:[#allocation2 + $0x230] sm:$0xff] %v3928
          %4057 = vst [vmem:[#allocation2 + $0x238] sm:$0xff] %v3929
          %4058 = vst [vmem:[#allocation2 + $0x240] sm:$0xff] %v3930
          %4059 = vst [vmem:[#allocation2 + $0x248] sm:$0xff] %v3931
          %4060 = vst [vmem:[#allocation2 + $0x250] sm:$0xff] %v3932
          %4061 = vst [vmem:[#allocation2 + $0x258] sm:$0xff] %v3933
          %4062 = vst [vmem:[#allocation2 + $0x260] sm:$0xff] %v3934
          %4063 = vst [vmem:[#allocation2 + $0x268] sm:$0xff] %v3935
          %4064 = vst [vmem:[#allocation2 + $0x270] sm:$0xff] %v3936
          %4065 = vst [vmem:[#allocation2 + $0x278] sm:$0xff] %v3937
          %4066 = vst [vmem:[#allocation2 + $0x280] sm:$0xff] %v3938
          %4067 = vst [vmem:[#allocation2 + $0x288] sm:$0xff] %v3939
          %4068 = vst [vmem:[#allocation2 + $0x290] sm:$0xff] %v3940
          %4069 = vst [vmem:[#allocation2 + $0x298] sm:$0xff] %v3941
          %4070 = vst [vmem:[#allocation2 + $0x2a0] sm:$0xff] %v3942
          %4071 = vst [vmem:[#allocation2 + $0x2a8] sm:$0xff] %v3943
          %4072 = vst [vmem:[#allocation2 + $0x2b0] sm:$0xff] %v3944
          %4073 = vst [vmem:[#allocation2 + $0x2b8] sm:$0xff] %v3945
          %4074 = vst [vmem:[#allocation2 + $0x2c0] sm:$0xff] %v3946
          %4075 = vst [vmem:[#allocation2 + $0x2c8] sm:$0xff] %v3947
          %4076 = vst [vmem:[#allocation2 + $0x2d0] sm:$0xff] %v3948
          %4077 = vst [vmem:[#allocation2 + $0x2d8] sm:$0xff] %v3949
          %4078 = vst [vmem:[#allocation2 + $0x2e0] sm:$0xff] %v3950
          %4079 = vst [vmem:[#allocation2 + $0x2e8] sm:$0xff] %v3951
          %4080 = vst [vmem:[#allocation2 + $0x2f0] sm:$0xff] %v3952
          %4081 = vst [vmem:[#allocation2 + $0x2f8] sm:$0xff] %v3953
          %4082 = vst [vmem:[#allocation2 + $0x300] sm:$0xff] %v3954
          %4083 = vst [vmem:[#allocation2 + $0x308] sm:$0xff] %v3955
          %4084 = vst [vmem:[#allocation2 + $0x310] sm:$0xff] %v3956
          %4085 = vst [vmem:[#allocation2 + $0x318] sm:$0xff] %v3957
          %4086 = vst [vmem:[#allocation2 + $0x320] sm:$0xff] %v3958
          %4087 = vst [vmem:[#allocation2 + $0x328] sm:$0xff] %v3959
          %4088 = vst [vmem:[#allocation2 + $0x330] sm:$0xff] %v3960
          %4089 = vst [vmem:[#allocation2 + $0x338] sm:$0xff] %v3961
          %4090 = vst [vmem:[#allocation2 + $0x340] sm:$0xff] %v3962
          %4091 = vst [vmem:[#allocation2 + $0x348] sm:$0xff] %v3963
          %4092 = vst [vmem:[#allocation2 + $0x350] sm:$0xff] %v3964
          %4093 = vst [vmem:[#allocation2 + $0x358] sm:$0xff] %v3965
          %4094 = vst [vmem:[#allocation2 + $0x360] sm:$0xff] %v3966
          %4095 = vst [vmem:[#allocation2 + $0x368] sm:$0xff] %v3967
          %4096 = vst [vmem:[#allocation2 + $0x370] sm:$0xff] %v3968
          %4097 = vst [vmem:[#allocation2 + $0x378] sm:$0xff] %v3969
          %4098 = vst [vmem:[#allocation2 + $0x380] sm:$0xff] %v3970
          %4099 = vst [vmem:[#allocation2 + $0x388] sm:$0xff] %v3971
          %4100 = vst [vmem:[#allocation2 + $0x390] sm:$0xff] %v3972
          %4101 = vst [vmem:[#allocation2 + $0x398] sm:$0xff] %v3973
          %4102 = vst [vmem:[#allocation2 + $0x3a0] sm:$0xff] %v3974
          %4103 = vst [vmem:[#allocation2 + $0x3a8] sm:$0xff] %v3975
          %4104 = vst [vmem:[#allocation2 + $0x3b0] sm:$0xff] %v3976
          %4105 = vst [vmem:[#allocation2 + $0x3b8] sm:$0xff] %v3977
          %4106 = vst [vmem:[#allocation2 + $0x3c0] sm:$0xff] %v3978
          %4107 = vst [vmem:[#allocation2 + $0x3c8] sm:$0xff] %v3979
          %4108 = vst [vmem:[#allocation2 + $0x3d0] sm:$0xff] %v3980
          %4109 = vst [vmem:[#allocation2 + $0x3d8] sm:$0xff] %v3981
          %4110 = vst [vmem:[#allocation2 + $0x3e0] sm:$0xff] %v3982
          %4111 = vst [vmem:[#allocation2 + $0x3e8] sm:$0xff] %v3983
          %4112 = vst [vmem:[#allocation2 + $0x3f0] sm:$0xff] %v3984
          %4113 = vst [vmem:[#allocation2 + $0x3f8] sm:$0xff] %v3985
          %v4114 = vld [vmem:[#allocation2] sm:$0xff]
          %v4115 = vld [vmem:[#allocation2 + $0x40] sm:$0xff]
          %v4116 = vld [vmem:[#allocation2 + $0x80] sm:$0xff]
          %v4117 = vld [vmem:[#allocation2 + $0xc0] sm:$0xff]
          %v4118 = vld [vmem:[#allocation2 + $0x100] sm:$0xff]
          %v4119 = vld [vmem:[#allocation2 + $0x140] sm:$0xff]
          %v4120 = vld [vmem:[#allocation2 + $0x180] sm:$0xff]
          %v4121 = vld [vmem:[#allocation2 + $0x1c0] sm:$0xff]
          %v4122 = vld [vmem:[#allocation2 + $0x200] sm:$0xff]
          %v4123 = vld [vmem:[#allocation2 + $0x240] sm:$0xff]
          %v4124 = vld [vmem:[#allocation2 + $0x280] sm:$0xff]
          %v4125 = vld [vmem:[#allocation2 + $0x2c0] sm:$0xff]
          %v4126 = vld [vmem:[#allocation2 + $0x300] sm:$0xff]
          %v4127 = vld [vmem:[#allocation2 + $0x340] sm:$0xff]
          %v4128 = vld [vmem:[#allocation2 + $0x380] sm:$0xff]
          %v4129 = vld [vmem:[#allocation2 + $0x3c0] sm:$0xff]
          %4131 = vset.pattern.permute.xlu0 0
          %4132 = vperm.xlu0 %4131, %v2351
          %v4133 = vpop.permute.xlu0 %4132
          %4136 = vset.pattern.permute.xlu0 0
          %4137 = vperm.xlu0 %4136, %v2352
          %v4138 = vpop.permute.xlu0 %4137
          %4141 = vset.pattern.permute.xlu0 0
          %4142 = vperm.xlu0 %4141, %v2353
          %v4143 = vpop.permute.xlu0 %4142
          %4146 = vset.pattern.permute.xlu0 0
          %4147 = vperm.xlu0 %4146, %v2354
          %v4148 = vpop.permute.xlu0 %4147
          %4151 = vset.pattern.permute.xlu0 0
          %4152 = vperm.xlu0 %4151, %v2355
          %v4153 = vpop.permute.xlu0 %4152
          %4156 = vset.pattern.permute.xlu0 0
          %4157 = vperm.xlu0 %4156, %v2356
          %v4158 = vpop.permute.xlu0 %4157
          %4161 = vset.pattern.permute.xlu0 0
          %4162 = vperm.xlu0 %4161, %v2357
          %v4163 = vpop.permute.xlu0 %4162
          %4166 = vset.pattern.permute.xlu0 0
          %4167 = vperm.xlu0 %4166, %v2358
          %v4168 = vpop.permute.xlu0 %4167
          %4171 = vset.pattern.permute.xlu0 0
          %4172 = vperm.xlu0 %4171, %v2359
          %v4173 = vpop.permute.xlu0 %4172
          %4176 = vset.pattern.permute.xlu0 0
          %4177 = vperm.xlu0 %4176, %v2360
          %v4178 = vpop.permute.xlu0 %4177
          %4181 = vset.pattern.permute.xlu0 0
          %4182 = vperm.xlu0 %4181, %v2361
          %v4183 = vpop.permute.xlu0 %4182
          %4186 = vset.pattern.permute.xlu0 0
          %4187 = vperm.xlu0 %4186, %v2362
          %v4188 = vpop.permute.xlu0 %4187
          %4191 = vset.pattern.permute.xlu0 0
          %4192 = vperm.xlu0 %4191, %v2363
          %v4193 = vpop.permute.xlu0 %4192
          %4196 = vset.pattern.permute.xlu0 0
          %4197 = vperm.xlu0 %4196, %v2364
          %v4198 = vpop.permute.xlu0 %4197
          %4201 = vset.pattern.permute.xlu0 0
          %4202 = vperm.xlu0 %4201, %v2365
          %v4203 = vpop.permute.xlu0 %4202
          %4206 = vset.pattern.permute.xlu0 0
          %4207 = vperm.xlu0 %4206, %v2366
          %v4208 = vpop.permute.xlu0 %4207
          %v4210 = vmul.f32 %v4133, %v4114
          %v4211 = vmul.f32 %v4138, %v4115
          %v4212 = vmul.f32 %v4143, %v4116
          %v4213 = vmul.f32 %v4148, %v4117
          %v4214 = vmul.f32 %v4153, %v4118
          %v4215 = vmul.f32 %v4158, %v4119
          %v4216 = vmul.f32 %v4163, %v4120
          %v4217 = vmul.f32 %v4168, %v4121
          %v4218 = vmul.f32 %v4173, %v4122
          %v4219 = vmul.f32 %v4178, %v4123
          %v4220 = vmul.f32 %v4183, %v4124
          %v4221 = vmul.f32 %v4188, %v4125
          %v4222 = vmul.f32 %v4193, %v4126
          %v4223 = vmul.f32 %v4198, %v4127
          %v4224 = vmul.f32 %v4203, %v4128
          %v4225 = vmul.f32 %v4208, %v4129
          %v4226 = vadd.f32 %v4210, 0.0
          %v4227 = vadd.f32 %v4211, 0.0
          %v4228 = vadd.f32 %v4212, 0.0
          %v4229 = vadd.f32 %v4213, 0.0
          %v4230 = vadd.f32 %v4214, 0.0
          %v4231 = vadd.f32 %v4215, 0.0
          %v4232 = vadd.f32 %v4216, 0.0
          %v4233 = vadd.f32 %v4217, 0.0
          %v4234 = vadd.f32 %v4218, 0.0
          %v4235 = vadd.f32 %v4219, 0.0
          %v4236 = vadd.f32 %v4220, 0.0
          %v4237 = vadd.f32 %v4221, 0.0
          %v4238 = vadd.f32 %v4222, 0.0
          %v4239 = vadd.f32 %v4223, 0.0
          %v4240 = vadd.f32 %v4224, 0.0
          %v4241 = vadd.f32 %v4225, 0.0
          %v4242 = vld [vmem:[#allocation2 + $0x8] sm:$0xff]
          %v4243 = vld [vmem:[#allocation2 + $0x48] sm:$0xff]
          %v4244 = vld [vmem:[#allocation2 + $0x88] sm:$0xff]
          %v4245 = vld [vmem:[#allocation2 + $0xc8] sm:$0xff]
          %v4246 = vld [vmem:[#allocation2 + $0x108] sm:$0xff]
          %v4247 = vld [vmem:[#allocation2 + $0x148] sm:$0xff]
          %v4248 = vld [vmem:[#allocation2 + $0x188] sm:$0xff]
          %v4249 = vld [vmem:[#allocation2 + $0x1c8] sm:$0xff]
          %v4250 = vld [vmem:[#allocation2 + $0x208] sm:$0xff]
          %v4251 = vld [vmem:[#allocation2 + $0x248] sm:$0xff]
          %v4252 = vld [vmem:[#allocation2 + $0x288] sm:$0xff]
          %v4253 = vld [vmem:[#allocation2 + $0x2c8] sm:$0xff]
          %v4254 = vld [vmem:[#allocation2 + $0x308] sm:$0xff]
          %v4255 = vld [vmem:[#allocation2 + $0x348] sm:$0xff]
          %v4256 = vld [vmem:[#allocation2 + $0x388] sm:$0xff]
          %v4257 = vld [vmem:[#allocation2 + $0x3c8] sm:$0xff]
          %4258 = vset.pattern.permute.xlu0 1
          %4259 = vperm.xlu0 %4258, %v2351
          %v4260 = vpop.permute.xlu0 %4259
          %4262 = vset.pattern.permute.xlu0 1
          %4263 = vperm.xlu0 %4262, %v2352
          %v4264 = vpop.permute.xlu0 %4263
          %4266 = vset.pattern.permute.xlu0 1
          %4267 = vperm.xlu0 %4266, %v2353
          %v4268 = vpop.permute.xlu0 %4267
          %4270 = vset.pattern.permute.xlu0 1
          %4271 = vperm.xlu0 %4270, %v2354
          %v4272 = vpop.permute.xlu0 %4271
          %4274 = vset.pattern.permute.xlu0 1
          %4275 = vperm.xlu0 %4274, %v2355
          %v4276 = vpop.permute.xlu0 %4275
          %4278 = vset.pattern.permute.xlu0 1
          %4279 = vperm.xlu0 %4278, %v2356
          %v4280 = vpop.permute.xlu0 %4279
          %4282 = vset.pattern.permute.xlu0 1
          %4283 = vperm.xlu0 %4282, %v2357
          %v4284 = vpop.permute.xlu0 %4283
          %4286 = vset.pattern.permute.xlu0 1
          %4287 = vperm.xlu0 %4286, %v2358
          %v4288 = vpop.permute.xlu0 %4287
          %4290 = vset.pattern.permute.xlu0 1
          %4291 = vperm.xlu0 %4290, %v2359
          %v4292 = vpop.permute.xlu0 %4291
          %4294 = vset.pattern.permute.xlu0 1
          %4295 = vperm.xlu0 %4294, %v2360
          %v4296 = vpop.permute.xlu0 %4295
          %4298 = vset.pattern.permute.xlu0 1
          %4299 = vperm.xlu0 %4298, %v2361
          %v4300 = vpop.permute.xlu0 %4299
          %4302 = vset.pattern.permute.xlu0 1
          %4303 = vperm.xlu0 %4302, %v2362
          %v4304 = vpop.permute.xlu0 %4303
          %4306 = vset.pattern.permute.xlu0 1
          %4307 = vperm.xlu0 %4306, %v2363
          %v4308 = vpop.permute.xlu0 %4307
          %4310 = vset.pattern.permute.xlu0 1
          %4311 = vperm.xlu0 %4310, %v2364
          %v4312 = vpop.permute.xlu0 %4311
          %4314 = vset.pattern.permute.xlu0 1
          %4315 = vperm.xlu0 %4314, %v2365
          %v4316 = vpop.permute.xlu0 %4315
          %4318 = vset.pattern.permute.xlu0 1
          %4319 = vperm.xlu0 %4318, %v2366
          %v4320 = vpop.permute.xlu0 %4319
          %v4322 = vmul.f32 %v4260, %v4242
          %v4323 = vmul.f32 %v4264, %v4243
          %v4324 = vmul.f32 %v4268, %v4244
          %v4325 = vmul.f32 %v4272, %v4245
          %v4326 = vmul.f32 %v4276, %v4246
          %v4327 = vmul.f32 %v4280, %v4247
          %v4328 = vmul.f32 %v4284, %v4248
          %v4329 = vmul.f32 %v4288, %v4249
          %v4330 = vmul.f32 %v4292, %v4250
          %v4331 = vmul.f32 %v4296, %v4251
          %v4332 = vmul.f32 %v4300, %v4252
          %v4333 = vmul.f32 %v4304, %v4253
          %v4334 = vmul.f32 %v4308, %v4254
          %v4335 = vmul.f32 %v4312, %v4255
          %v4336 = vmul.f32 %v4316, %v4256
          %v4337 = vmul.f32 %v4320, %v4257
          %v4338 = vadd.f32 %v4226, %v4322
          %v4339 = vadd.f32 %v4227, %v4323
          %v4340 = vadd.f32 %v4228, %v4324
          %v4341 = vadd.f32 %v4229, %v4325
          %v4342 = vadd.f32 %v4230, %v4326
          %v4343 = vadd.f32 %v4231, %v4327
          %v4344 = vadd.f32 %v4232, %v4328
          %v4345 = vadd.f32 %v4233, %v4329
          %v4346 = vadd.f32 %v4234, %v4330
          %v4347 = vadd.f32 %v4235, %v4331
          %v4348 = vadd.f32 %v4236, %v4332
          %v4349 = vadd.f32 %v4237, %v4333
          %v4350 = vadd.f32 %v4238, %v4334
          %v4351 = vadd.f32 %v4239, %v4335
          %v4352 = vadd.f32 %v4240, %v4336
          %v4353 = vadd.f32 %v4241, %v4337
          %v4354 = vld [vmem:[#allocation2 + $0x10] sm:$0xff]
          %v4355 = vld [vmem:[#allocation2 + $0x50] sm:$0xff]
          %v4356 = vld [vmem:[#allocation2 + $0x90] sm:$0xff]
          %v4357 = vld [vmem:[#allocation2 + $0xd0] sm:$0xff]
          %v4358 = vld [vmem:[#allocation2 + $0x110] sm:$0xff]
          %v4359 = vld [vmem:[#allocation2 + $0x150] sm:$0xff]
          %v4360 = vld [vmem:[#allocation2 + $0x190] sm:$0xff]
          %v4361 = vld [vmem:[#allocation2 + $0x1d0] sm:$0xff]
          %v4362 = vld [vmem:[#allocation2 + $0x210] sm:$0xff]
          %v4363 = vld [vmem:[#allocation2 + $0x250] sm:$0xff]
          %v4364 = vld [vmem:[#allocation2 + $0x290] sm:$0xff]
          %v4365 = vld [vmem:[#allocation2 + $0x2d0] sm:$0xff]
          %v4366 = vld [vmem:[#allocation2 + $0x310] sm:$0xff]
          %v4367 = vld [vmem:[#allocation2 + $0x350] sm:$0xff]
          %v4368 = vld [vmem:[#allocation2 + $0x390] sm:$0xff]
          %v4369 = vld [vmem:[#allocation2 + $0x3d0] sm:$0xff]
          %4370 = vset.pattern.permute.xlu0 2
          %4371 = vperm.xlu0 %4370, %v2351
          %v4372 = vpop.permute.xlu0 %4371
          %4374 = vset.pattern.permute.xlu0 2
          %4375 = vperm.xlu0 %4374, %v2352
          %v4376 = vpop.permute.xlu0 %4375
          %4378 = vset.pattern.permute.xlu0 2
          %4379 = vperm.xlu0 %4378, %v2353
          %v4380 = vpop.permute.xlu0 %4379
          %4382 = vset.pattern.permute.xlu0 2
          %4383 = vperm.xlu0 %4382, %v2354
          %v4384 = vpop.permute.xlu0 %4383
          %4386 = vset.pattern.permute.xlu0 2
          %4387 = vperm.xlu0 %4386, %v2355
          %v4388 = vpop.permute.xlu0 %4387
          %4390 = vset.pattern.permute.xlu0 2
          %4391 = vperm.xlu0 %4390, %v2356
          %v4392 = vpop.permute.xlu0 %4391
          %4394 = vset.pattern.permute.xlu0 2
          %4395 = vperm.xlu0 %4394, %v2357
          %v4396 = vpop.permute.xlu0 %4395
          %4398 = vset.pattern.permute.xlu0 2
          %4399 = vperm.xlu0 %4398, %v2358
          %v4400 = vpop.permute.xlu0 %4399
          %4402 = vset.pattern.permute.xlu0 2
          %4403 = vperm.xlu0 %4402, %v2359
          %v4404 = vpop.permute.xlu0 %4403
          %4406 = vset.pattern.permute.xlu0 2
          %4407 = vperm.xlu0 %4406, %v2360
          %v4408 = vpop.permute.xlu0 %4407
          %4410 = vset.pattern.permute.xlu0 2
          %4411 = vperm.xlu0 %4410, %v2361
          %v4412 = vpop.permute.xlu0 %4411
          %4414 = vset.pattern.permute.xlu0 2
          %4415 = vperm.xlu0 %4414, %v2362
          %v4416 = vpop.permute.xlu0 %4415
          %4418 = vset.pattern.permute.xlu0 2
          %4419 = vperm.xlu0 %4418, %v2363
          %v4420 = vpop.permute.xlu0 %4419
          %4422 = vset.pattern.permute.xlu0 2
          %4423 = vperm.xlu0 %4422, %v2364
          %v4424 = vpop.permute.xlu0 %4423
          %4426 = vset.pattern.permute.xlu0 2
          %4427 = vperm.xlu0 %4426, %v2365
          %v4428 = vpop.permute.xlu0 %4427
          %4430 = vset.pattern.permute.xlu0 2
          %4431 = vperm.xlu0 %4430, %v2366
          %v4432 = vpop.permute.xlu0 %4431
          %v4434 = vmul.f32 %v4372, %v4354
          %v4435 = vmul.f32 %v4376, %v4355
          %v4436 = vmul.f32 %v4380, %v4356
          %v4437 = vmul.f32 %v4384, %v4357
          %v4438 = vmul.f32 %v4388, %v4358
          %v4439 = vmul.f32 %v4392, %v4359
          %v4440 = vmul.f32 %v4396, %v4360
          %v4441 = vmul.f32 %v4400, %v4361
          %v4442 = vmul.f32 %v4404, %v4362
          %v4443 = vmul.f32 %v4408, %v4363
          %v4444 = vmul.f32 %v4412, %v4364
          %v4445 = vmul.f32 %v4416, %v4365
          %v4446 = vmul.f32 %v4420, %v4366
          %v4447 = vmul.f32 %v4424, %v4367
          %v4448 = vmul.f32 %v4428, %v4368
          %v4449 = vmul.f32 %v4432, %v4369
          %v4450 = vadd.f32 %v4338, %v4434
          %v4451 = vadd.f32 %v4339, %v4435
          %v4452 = vadd.f32 %v4340, %v4436
          %v4453 = vadd.f32 %v4341, %v4437
          %v4454 = vadd.f32 %v4342, %v4438
          %v4455 = vadd.f32 %v4343, %v4439
          %v4456 = vadd.f32 %v4344, %v4440
          %v4457 = vadd.f32 %v4345, %v4441
          %v4458 = vadd.f32 %v4346, %v4442
          %v4459 = vadd.f32 %v4347, %v4443
          %v4460 = vadd.f32 %v4348, %v4444
          %v4461 = vadd.f32 %v4349, %v4445
          %v4462 = vadd.f32 %v4350, %v4446
          %v4463 = vadd.f32 %v4351, %v4447
          %v4464 = vadd.f32 %v4352, %v4448
          %v4465 = vadd.f32 %v4353, %v4449
          %v4466 = vld [vmem:[#allocation2 + $0x18] sm:$0xff]
          %v4467 = vld [vmem:[#allocation2 + $0x58] sm:$0xff]
          %v4468 = vld [vmem:[#allocation2 + $0x98] sm:$0xff]
          %v4469 = vld [vmem:[#allocation2 + $0xd8] sm:$0xff]
          %v4470 = vld [vmem:[#allocation2 + $0x118] sm:$0xff]
          %v4471 = vld [vmem:[#allocation2 + $0x158] sm:$0xff]
          %v4472 = vld [vmem:[#allocation2 + $0x198] sm:$0xff]
          %v4473 = vld [vmem:[#allocation2 + $0x1d8] sm:$0xff]
          %v4474 = vld [vmem:[#allocation2 + $0x218] sm:$0xff]
          %v4475 = vld [vmem:[#allocation2 + $0x258] sm:$0xff]
          %v4476 = vld [vmem:[#allocation2 + $0x298] sm:$0xff]
          %v4477 = vld [vmem:[#allocation2 + $0x2d8] sm:$0xff]
          %v4478 = vld [vmem:[#allocation2 + $0x318] sm:$0xff]
          %v4479 = vld [vmem:[#allocation2 + $0x358] sm:$0xff]
          %v4480 = vld [vmem:[#allocation2 + $0x398] sm:$0xff]
          %v4481 = vld [vmem:[#allocation2 + $0x3d8] sm:$0xff]
          %4482 = vset.pattern.permute.xlu0 3
          %4483 = vperm.xlu0 %4482, %v2351
          %v4484 = vpop.permute.xlu0 %4483
          %4486 = vset.pattern.permute.xlu0 3
          %4487 = vperm.xlu0 %4486, %v2352
          %v4488 = vpop.permute.xlu0 %4487
          %4490 = vset.pattern.permute.xlu0 3
          %4491 = vperm.xlu0 %4490, %v2353
          %v4492 = vpop.permute.xlu0 %4491
          %4494 = vset.pattern.permute.xlu0 3
          %4495 = vperm.xlu0 %4494, %v2354
          %v4496 = vpop.permute.xlu0 %4495
          %4498 = vset.pattern.permute.xlu0 3
          %4499 = vperm.xlu0 %4498, %v2355
          %v4500 = vpop.permute.xlu0 %4499
          %4502 = vset.pattern.permute.xlu0 3
          %4503 = vperm.xlu0 %4502, %v2356
          %v4504 = vpop.permute.xlu0 %4503
          %4506 = vset.pattern.permute.xlu0 3
          %4507 = vperm.xlu0 %4506, %v2357
          %v4508 = vpop.permute.xlu0 %4507
          %4510 = vset.pattern.permute.xlu0 3
          %4511 = vperm.xlu0 %4510, %v2358
          %v4512 = vpop.permute.xlu0 %4511
          %4514 = vset.pattern.permute.xlu0 3
          %4515 = vperm.xlu0 %4514, %v2359
          %v4516 = vpop.permute.xlu0 %4515
          %4518 = vset.pattern.permute.xlu0 3
          %4519 = vperm.xlu0 %4518, %v2360
          %v4520 = vpop.permute.xlu0 %4519
          %4522 = vset.pattern.permute.xlu0 3
          %4523 = vperm.xlu0 %4522, %v2361
          %v4524 = vpop.permute.xlu0 %4523
          %4526 = vset.pattern.permute.xlu0 3
          %4527 = vperm.xlu0 %4526, %v2362
          %v4528 = vpop.permute.xlu0 %4527
          %4530 = vset.pattern.permute.xlu0 3
          %4531 = vperm.xlu0 %4530, %v2363
          %v4532 = vpop.permute.xlu0 %4531
          %4534 = vset.pattern.permute.xlu0 3
          %4535 = vperm.xlu0 %4534, %v2364
          %v4536 = vpop.permute.xlu0 %4535
          %4538 = vset.pattern.permute.xlu0 3
          %4539 = vperm.xlu0 %4538, %v2365
          %v4540 = vpop.permute.xlu0 %4539
          %4542 = vset.pattern.permute.xlu0 3
          %4543 = vperm.xlu0 %4542, %v2366
          %v4544 = vpop.permute.xlu0 %4543
          %v4546 = vmul.f32 %v4484, %v4466
          %v4547 = vmul.f32 %v4488, %v4467
          %v4548 = vmul.f32 %v4492, %v4468
          %v4549 = vmul.f32 %v4496, %v4469
          %v4550 = vmul.f32 %v4500, %v4470
          %v4551 = vmul.f32 %v4504, %v4471
          %v4552 = vmul.f32 %v4508, %v4472
          %v4553 = vmul.f32 %v4512, %v4473
          %v4554 = vmul.f32 %v4516, %v4474
          %v4555 = vmul.f32 %v4520, %v4475
          %v4556 = vmul.f32 %v4524, %v4476
          %v4557 = vmul.f32 %v4528, %v4477
          %v4558 = vmul.f32 %v4532, %v4478
          %v4559 = vmul.f32 %v4536, %v4479
          %v4560 = vmul.f32 %v4540, %v4480
          %v4561 = vmul.f32 %v4544, %v4481
          %v4562 = vadd.f32 %v4450, %v4546
          %v4563 = vadd.f32 %v4451, %v4547
          %v4564 = vadd.f32 %v4452, %v4548
          %v4565 = vadd.f32 %v4453, %v4549
          %v4566 = vadd.f32 %v4454, %v4550
          %v4567 = vadd.f32 %v4455, %v4551
          %v4568 = vadd.f32 %v4456, %v4552
          %v4569 = vadd.f32 %v4457, %v4553
          %v4570 = vadd.f32 %v4458, %v4554
          %v4571 = vadd.f32 %v4459, %v4555
          %v4572 = vadd.f32 %v4460, %v4556
          %v4573 = vadd.f32 %v4461, %v4557
          %v4574 = vadd.f32 %v4462, %v4558
          %v4575 = vadd.f32 %v4463, %v4559
          %v4576 = vadd.f32 %v4464, %v4560
          %v4577 = vadd.f32 %v4465, %v4561
          %v4578 = vld [vmem:[#allocation2 + $0x20] sm:$0xff]
          %v4579 = vld [vmem:[#allocation2 + $0x60] sm:$0xff]
          %v4580 = vld [vmem:[#allocation2 + $0xa0] sm:$0xff]
          %v4581 = vld [vmem:[#allocation2 + $0xe0] sm:$0xff]
          %v4582 = vld [vmem:[#allocation2 + $0x120] sm:$0xff]
          %v4583 = vld [vmem:[#allocation2 + $0x160] sm:$0xff]
          %v4584 = vld [vmem:[#allocation2 + $0x1a0] sm:$0xff]
          %v4585 = vld [vmem:[#allocation2 + $0x1e0] sm:$0xff]
          %v4586 = vld [vmem:[#allocation2 + $0x220] sm:$0xff]
          %v4587 = vld [vmem:[#allocation2 + $0x260] sm:$0xff]
          %v4588 = vld [vmem:[#allocation2 + $0x2a0] sm:$0xff]
          %v4589 = vld [vmem:[#allocation2 + $0x2e0] sm:$0xff]
          %v4590 = vld [vmem:[#allocation2 + $0x320] sm:$0xff]
          %v4591 = vld [vmem:[#allocation2 + $0x360] sm:$0xff]
          %v4592 = vld [vmem:[#allocation2 + $0x3a0] sm:$0xff]
          %v4593 = vld [vmem:[#allocation2 + $0x3e0] sm:$0xff]
          %4594 = vset.pattern.permute.xlu0 4
          %4595 = vperm.xlu0 %4594, %v2351
          %v4596 = vpop.permute.xlu0 %4595
          %4598 = vset.pattern.permute.xlu0 4
          %4599 = vperm.xlu0 %4598, %v2352
          %v4600 = vpop.permute.xlu0 %4599
          %4602 = vset.pattern.permute.xlu0 4
          %4603 = vperm.xlu0 %4602, %v2353
          %v4604 = vpop.permute.xlu0 %4603
          %4606 = vset.pattern.permute.xlu0 4
          %4607 = vperm.xlu0 %4606, %v2354
          %v4608 = vpop.permute.xlu0 %4607
          %4610 = vset.pattern.permute.xlu0 4
          %4611 = vperm.xlu0 %4610, %v2355
          %v4612 = vpop.permute.xlu0 %4611
          %4614 = vset.pattern.permute.xlu0 4
          %4615 = vperm.xlu0 %4614, %v2356
          %v4616 = vpop.permute.xlu0 %4615
          %4618 = vset.pattern.permute.xlu0 4
          %4619 = vperm.xlu0 %4618, %v2357
          %v4620 = vpop.permute.xlu0 %4619
          %4622 = vset.pattern.permute.xlu0 4
          %4623 = vperm.xlu0 %4622, %v2358
          %v4624 = vpop.permute.xlu0 %4623
          %4626 = vset.pattern.permute.xlu0 4
          %4627 = vperm.xlu0 %4626, %v2359
          %v4628 = vpop.permute.xlu0 %4627
          %4630 = vset.pattern.permute.xlu0 4
          %4631 = vperm.xlu0 %4630, %v2360
          %v4632 = vpop.permute.xlu0 %4631
          %4634 = vset.pattern.permute.xlu0 4
          %4635 = vperm.xlu0 %4634, %v2361
          %v4636 = vpop.permute.xlu0 %4635
          %4638 = vset.pattern.permute.xlu0 4
          %4639 = vperm.xlu0 %4638, %v2362
          %v4640 = vpop.permute.xlu0 %4639
          %4642 = vset.pattern.permute.xlu0 4
          %4643 = vperm.xlu0 %4642, %v2363
          %v4644 = vpop.permute.xlu0 %4643
          %4646 = vset.pattern.permute.xlu0 4
          %4647 = vperm.xlu0 %4646, %v2364
          %v4648 = vpop.permute.xlu0 %4647
          %4650 = vset.pattern.permute.xlu0 4
          %4651 = vperm.xlu0 %4650, %v2365
          %v4652 = vpop.permute.xlu0 %4651
          %4654 = vset.pattern.permute.xlu0 4
          %4655 = vperm.xlu0 %4654, %v2366
          %v4656 = vpop.permute.xlu0 %4655
          %v4658 = vmul.f32 %v4596, %v4578
          %v4659 = vmul.f32 %v4600, %v4579
          %v4660 = vmul.f32 %v4604, %v4580
          %v4661 = vmul.f32 %v4608, %v4581
          %v4662 = vmul.f32 %v4612, %v4582
          %v4663 = vmul.f32 %v4616, %v4583
          %v4664 = vmul.f32 %v4620, %v4584
          %v4665 = vmul.f32 %v4624, %v4585
          %v4666 = vmul.f32 %v4628, %v4586
          %v4667 = vmul.f32 %v4632, %v4587
          %v4668 = vmul.f32 %v4636, %v4588
          %v4669 = vmul.f32 %v4640, %v4589
          %v4670 = vmul.f32 %v4644, %v4590
          %v4671 = vmul.f32 %v4648, %v4591
          %v4672 = vmul.f32 %v4652, %v4592
          %v4673 = vmul.f32 %v4656, %v4593
          %v4674 = vadd.f32 %v4562, %v4658
          %v4675 = vadd.f32 %v4563, %v4659
          %v4676 = vadd.f32 %v4564, %v4660
          %v4677 = vadd.f32 %v4565, %v4661
          %v4678 = vadd.f32 %v4566, %v4662
          %v4679 = vadd.f32 %v4567, %v4663
          %v4680 = vadd.f32 %v4568, %v4664
          %v4681 = vadd.f32 %v4569, %v4665
          %v4682 = vadd.f32 %v4570, %v4666
          %v4683 = vadd.f32 %v4571, %v4667
          %v4684 = vadd.f32 %v4572, %v4668
          %v4685 = vadd.f32 %v4573, %v4669
          %v4686 = vadd.f32 %v4574, %v4670
          %v4687 = vadd.f32 %v4575, %v4671
          %v4688 = vadd.f32 %v4576, %v4672
          %v4689 = vadd.f32 %v4577, %v4673
          %v4690 = vld [vmem:[#allocation2 + $0x28] sm:$0xff]
          %v4691 = vld [vmem:[#allocation2 + $0x68] sm:$0xff]
          %v4692 = vld [vmem:[#allocation2 + $0xa8] sm:$0xff]
          %v4693 = vld [vmem:[#allocation2 + $0xe8] sm:$0xff]
          %v4694 = vld [vmem:[#allocation2 + $0x128] sm:$0xff]
          %v4695 = vld [vmem:[#allocation2 + $0x168] sm:$0xff]
          %v4696 = vld [vmem:[#allocation2 + $0x1a8] sm:$0xff]
          %v4697 = vld [vmem:[#allocation2 + $0x1e8] sm:$0xff]
          %v4698 = vld [vmem:[#allocation2 + $0x228] sm:$0xff]
          %v4699 = vld [vmem:[#allocation2 + $0x268] sm:$0xff]
          %v4700 = vld [vmem:[#allocation2 + $0x2a8] sm:$0xff]
          %v4701 = vld [vmem:[#allocation2 + $0x2e8] sm:$0xff]
          %v4702 = vld [vmem:[#allocation2 + $0x328] sm:$0xff]
          %v4703 = vld [vmem:[#allocation2 + $0x368] sm:$0xff]
          %v4704 = vld [vmem:[#allocation2 + $0x3a8] sm:$0xff]
          %v4705 = vld [vmem:[#allocation2 + $0x3e8] sm:$0xff]
          %4706 = vset.pattern.permute.xlu0 5
          %4707 = vperm.xlu0 %4706, %v2351
          %v4708 = vpop.permute.xlu0 %4707
          %4710 = vset.pattern.permute.xlu0 5
          %4711 = vperm.xlu0 %4710, %v2352
          %v4712 = vpop.permute.xlu0 %4711
          %4714 = vset.pattern.permute.xlu0 5
          %4715 = vperm.xlu0 %4714, %v2353
          %v4716 = vpop.permute.xlu0 %4715
          %4718 = vset.pattern.permute.xlu0 5
          %4719 = vperm.xlu0 %4718, %v2354
          %v4720 = vpop.permute.xlu0 %4719
          %4722 = vset.pattern.permute.xlu0 5
          %4723 = vperm.xlu0 %4722, %v2355
          %v4724 = vpop.permute.xlu0 %4723
          %4726 = vset.pattern.permute.xlu0 5
          %4727 = vperm.xlu0 %4726, %v2356
          %v4728 = vpop.permute.xlu0 %4727
          %4730 = vset.pattern.permute.xlu0 5
          %4731 = vperm.xlu0 %4730, %v2357
          %v4732 = vpop.permute.xlu0 %4731
          %4734 = vset.pattern.permute.xlu0 5
          %4735 = vperm.xlu0 %4734, %v2358
          %v4736 = vpop.permute.xlu0 %4735
          %4738 = vset.pattern.permute.xlu0 5
          %4739 = vperm.xlu0 %4738, %v2359
          %v4740 = vpop.permute.xlu0 %4739
          %4742 = vset.pattern.permute.xlu0 5
          %4743 = vperm.xlu0 %4742, %v2360
          %v4744 = vpop.permute.xlu0 %4743
          %4746 = vset.pattern.permute.xlu0 5
          %4747 = vperm.xlu0 %4746, %v2361
          %v4748 = vpop.permute.xlu0 %4747
          %4750 = vset.pattern.permute.xlu0 5
          %4751 = vperm.xlu0 %4750, %v2362
          %v4752 = vpop.permute.xlu0 %4751
          %4754 = vset.pattern.permute.xlu0 5
          %4755 = vperm.xlu0 %4754, %v2363
          %v4756 = vpop.permute.xlu0 %4755
          %4758 = vset.pattern.permute.xlu0 5
          %4759 = vperm.xlu0 %4758, %v2364
          %v4760 = vpop.permute.xlu0 %4759
          %4762 = vset.pattern.permute.xlu0 5
          %4763 = vperm.xlu0 %4762, %v2365
          %v4764 = vpop.permute.xlu0 %4763
          %4766 = vset.pattern.permute.xlu0 5
          %4767 = vperm.xlu0 %4766, %v2366
          %v4768 = vpop.permute.xlu0 %4767
          %v4770 = vmul.f32 %v4708, %v4690
          %v4771 = vmul.f32 %v4712, %v4691
          %v4772 = vmul.f32 %v4716, %v4692
          %v4773 = vmul.f32 %v4720, %v4693
          %v4774 = vmul.f32 %v4724, %v4694
          %v4775 = vmul.f32 %v4728, %v4695
          %v4776 = vmul.f32 %v4732, %v4696
          %v4777 = vmul.f32 %v4736, %v4697
          %v4778 = vmul.f32 %v4740, %v4698
          %v4779 = vmul.f32 %v4744, %v4699
          %v4780 = vmul.f32 %v4748, %v4700
          %v4781 = vmul.f32 %v4752, %v4701
          %v4782 = vmul.f32 %v4756, %v4702
          %v4783 = vmul.f32 %v4760, %v4703
          %v4784 = vmul.f32 %v4764, %v4704
          %v4785 = vmul.f32 %v4768, %v4705
          %v4786 = vadd.f32 %v4674, %v4770
          %v4787 = vadd.f32 %v4675, %v4771
          %v4788 = vadd.f32 %v4676, %v4772
          %v4789 = vadd.f32 %v4677, %v4773
          %v4790 = vadd.f32 %v4678, %v4774
          %v4791 = vadd.f32 %v4679, %v4775
          %v4792 = vadd.f32 %v4680, %v4776
          %v4793 = vadd.f32 %v4681, %v4777
          %v4794 = vadd.f32 %v4682, %v4778
          %v4795 = vadd.f32 %v4683, %v4779
          %v4796 = vadd.f32 %v4684, %v4780
          %v4797 = vadd.f32 %v4685, %v4781
          %v4798 = vadd.f32 %v4686, %v4782
          %v4799 = vadd.f32 %v4687, %v4783
          %v4800 = vadd.f32 %v4688, %v4784
          %v4801 = vadd.f32 %v4689, %v4785
          %v4802 = vld [vmem:[#allocation2 + $0x30] sm:$0xff]
          %v4803 = vld [vmem:[#allocation2 + $0x70] sm:$0xff]
          %v4804 = vld [vmem:[#allocation2 + $0xb0] sm:$0xff]
          %v4805 = vld [vmem:[#allocation2 + $0xf0] sm:$0xff]
          %v4806 = vld [vmem:[#allocation2 + $0x130] sm:$0xff]
          %v4807 = vld [vmem:[#allocation2 + $0x170] sm:$0xff]
          %v4808 = vld [vmem:[#allocation2 + $0x1b0] sm:$0xff]
          %v4809 = vld [vmem:[#allocation2 + $0x1f0] sm:$0xff]
          %v4810 = vld [vmem:[#allocation2 + $0x230] sm:$0xff]
          %v4811 = vld [vmem:[#allocation2 + $0x270] sm:$0xff]
          %v4812 = vld [vmem:[#allocation2 + $0x2b0] sm:$0xff]
          %v4813 = vld [vmem:[#allocation2 + $0x2f0] sm:$0xff]
          %v4814 = vld [vmem:[#allocation2 + $0x330] sm:$0xff]
          %v4815 = vld [vmem:[#allocation2 + $0x370] sm:$0xff]
          %v4816 = vld [vmem:[#allocation2 + $0x3b0] sm:$0xff]
          %v4817 = vld [vmem:[#allocation2 + $0x3f0] sm:$0xff]
          %4818 = vset.pattern.permute.xlu0 6
          %4819 = vperm.xlu0 %4818, %v2351
          %v4820 = vpop.permute.xlu0 %4819
          %4822 = vset.pattern.permute.xlu0 6
          %4823 = vperm.xlu0 %4822, %v2352
          %v4824 = vpop.permute.xlu0 %4823
          %4826 = vset.pattern.permute.xlu0 6
          %4827 = vperm.xlu0 %4826, %v2353
          %v4828 = vpop.permute.xlu0 %4827
          %4830 = vset.pattern.permute.xlu0 6
          %4831 = vperm.xlu0 %4830, %v2354
          %v4832 = vpop.permute.xlu0 %4831
          %4834 = vset.pattern.permute.xlu0 6
          %4835 = vperm.xlu0 %4834, %v2355
          %v4836 = vpop.permute.xlu0 %4835
          %4838 = vset.pattern.permute.xlu0 6
          %4839 = vperm.xlu0 %4838, %v2356
          %v4840 = vpop.permute.xlu0 %4839
          %4842 = vset.pattern.permute.xlu0 6
          %4843 = vperm.xlu0 %4842, %v2357
          %v4844 = vpop.permute.xlu0 %4843
          %4846 = vset.pattern.permute.xlu0 6
          %4847 = vperm.xlu0 %4846, %v2358
          %v4848 = vpop.permute.xlu0 %4847
          %4850 = vset.pattern.permute.xlu0 6
          %4851 = vperm.xlu0 %4850, %v2359
          %v4852 = vpop.permute.xlu0 %4851
          %4854 = vset.pattern.permute.xlu0 6
          %4855 = vperm.xlu0 %4854, %v2360
          %v4856 = vpop.permute.xlu0 %4855
          %4858 = vset.pattern.permute.xlu0 6
          %4859 = vperm.xlu0 %4858, %v2361
          %v4860 = vpop.permute.xlu0 %4859
          %4862 = vset.pattern.permute.xlu0 6
          %4863 = vperm.xlu0 %4862, %v2362
          %v4864 = vpop.permute.xlu0 %4863
          %4866 = vset.pattern.permute.xlu0 6
          %4867 = vperm.xlu0 %4866, %v2363
          %v4868 = vpop.permute.xlu0 %4867
          %4870 = vset.pattern.permute.xlu0 6
          %4871 = vperm.xlu0 %4870, %v2364
          %v4872 = vpop.permute.xlu0 %4871
          %4874 = vset.pattern.permute.xlu0 6
          %4875 = vperm.xlu0 %4874, %v2365
          %v4876 = vpop.permute.xlu0 %4875
          %4878 = vset.pattern.permute.xlu0 6
          %4879 = vperm.xlu0 %4878, %v2366
          %v4880 = vpop.permute.xlu0 %4879
          %v4882 = vmul.f32 %v4820, %v4802
          %v4883 = vmul.f32 %v4824, %v4803
          %v4884 = vmul.f32 %v4828, %v4804
          %v4885 = vmul.f32 %v4832, %v4805
          %v4886 = vmul.f32 %v4836, %v4806
          %v4887 = vmul.f32 %v4840, %v4807
          %v4888 = vmul.f32 %v4844, %v4808
          %v4889 = vmul.f32 %v4848, %v4809
          %v4890 = vmul.f32 %v4852, %v4810
          %v4891 = vmul.f32 %v4856, %v4811
          %v4892 = vmul.f32 %v4860, %v4812
          %v4893 = vmul.f32 %v4864, %v4813
          %v4894 = vmul.f32 %v4868, %v4814
          %v4895 = vmul.f32 %v4872, %v4815
          %v4896 = vmul.f32 %v4876, %v4816
          %v4897 = vmul.f32 %v4880, %v4817
          %v4898 = vadd.f32 %v4786, %v4882
          %v4899 = vadd.f32 %v4787, %v4883
          %v4900 = vadd.f32 %v4788, %v4884
          %v4901 = vadd.f32 %v4789, %v4885
          %v4902 = vadd.f32 %v4790, %v4886
          %v4903 = vadd.f32 %v4791, %v4887
          %v4904 = vadd.f32 %v4792, %v4888
          %v4905 = vadd.f32 %v4793, %v4889
          %v4906 = vadd.f32 %v4794, %v4890
          %v4907 = vadd.f32 %v4795, %v4891
          %v4908 = vadd.f32 %v4796, %v4892
          %v4909 = vadd.f32 %v4797, %v4893
          %v4910 = vadd.f32 %v4798, %v4894
          %v4911 = vadd.f32 %v4799, %v4895
          %v4912 = vadd.f32 %v4800, %v4896
          %v4913 = vadd.f32 %v4801, %v4897
          %v4914 = vld [vmem:[#allocation2 + $0x38] sm:$0xff]
          %v4915 = vld [vmem:[#allocation2 + $0x78] sm:$0xff]
          %v4916 = vld [vmem:[#allocation2 + $0xb8] sm:$0xff]
          %v4917 = vld [vmem:[#allocation2 + $0xf8] sm:$0xff]
          %v4918 = vld [vmem:[#allocation2 + $0x138] sm:$0xff]
          %v4919 = vld [vmem:[#allocation2 + $0x178] sm:$0xff]
          %v4920 = vld [vmem:[#allocation2 + $0x1b8] sm:$0xff]
          %v4921 = vld [vmem:[#allocation2 + $0x1f8] sm:$0xff]
          %v4922 = vld [vmem:[#allocation2 + $0x238] sm:$0xff]
          %v4923 = vld [vmem:[#allocation2 + $0x278] sm:$0xff]
          %v4924 = vld [vmem:[#allocation2 + $0x2b8] sm:$0xff]
          %v4925 = vld [vmem:[#allocation2 + $0x2f8] sm:$0xff]
          %v4926 = vld [vmem:[#allocation2 + $0x338] sm:$0xff]
          %v4927 = vld [vmem:[#allocation2 + $0x378] sm:$0xff]
          %v4928 = vld [vmem:[#allocation2 + $0x3b8] sm:$0xff]
          %v4929 = vld [vmem:[#allocation2 + $0x3f8] sm:$0xff]
          %4930 = vset.pattern.permute.xlu0 7
          %4931 = vperm.xlu0 %4930, %v2351
          %v4932 = vpop.permute.xlu0 %4931
          %4934 = vset.pattern.permute.xlu0 7
          %4935 = vperm.xlu0 %4934, %v2352
          %v4936 = vpop.permute.xlu0 %4935
          %4938 = vset.pattern.permute.xlu0 7
          %4939 = vperm.xlu0 %4938, %v2353
          %v4940 = vpop.permute.xlu0 %4939
          %4942 = vset.pattern.permute.xlu0 7
          %4943 = vperm.xlu0 %4942, %v2354
          %v4944 = vpop.permute.xlu0 %4943
          %4946 = vset.pattern.permute.xlu0 7
          %4947 = vperm.xlu0 %4946, %v2355
          %v4948 = vpop.permute.xlu0 %4947
          %4950 = vset.pattern.permute.xlu0 7
          %4951 = vperm.xlu0 %4950, %v2356
          %v4952 = vpop.permute.xlu0 %4951
          %4954 = vset.pattern.permute.xlu0 7
          %4955 = vperm.xlu0 %4954, %v2357
          %v4956 = vpop.permute.xlu0 %4955
          %4958 = vset.pattern.permute.xlu0 7
          %4959 = vperm.xlu0 %4958, %v2358
          %v4960 = vpop.permute.xlu0 %4959
          %4962 = vset.pattern.permute.xlu0 7
          %4963 = vperm.xlu0 %4962, %v2359
          %v4964 = vpop.permute.xlu0 %4963
          %4966 = vset.pattern.permute.xlu0 7
          %4967 = vperm.xlu0 %4966, %v2360
          %v4968 = vpop.permute.xlu0 %4967
          %4970 = vset.pattern.permute.xlu0 7
          %4971 = vperm.xlu0 %4970, %v2361
          %v4972 = vpop.permute.xlu0 %4971
          %4974 = vset.pattern.permute.xlu0 7
          %4975 = vperm.xlu0 %4974, %v2362
          %v4976 = vpop.permute.xlu0 %4975
          %4978 = vset.pattern.permute.xlu0 7
          %4979 = vperm.xlu0 %4978, %v2363
          %v4980 = vpop.permute.xlu0 %4979
          %4982 = vset.pattern.permute.xlu0 7
          %4983 = vperm.xlu0 %4982, %v2364
          %v4984 = vpop.permute.xlu0 %4983
          %4986 = vset.pattern.permute.xlu0 7
          %4987 = vperm.xlu0 %4986, %v2365
          %v4988 = vpop.permute.xlu0 %4987
          %4990 = vset.pattern.permute.xlu0 7
          %4991 = vperm.xlu0 %4990, %v2366
          %v4992 = vpop.permute.xlu0 %4991
          %v4994 = vmul.f32 %v4932, %v4914
          %v4995 = vmul.f32 %v4936, %v4915
          %v4996 = vmul.f32 %v4940, %v4916
          %v4997 = vmul.f32 %v4944, %v4917
          %v4998 = vmul.f32 %v4948, %v4918
          %v4999 = vmul.f32 %v4952, %v4919
          %v5000 = vmul.f32 %v4956, %v4920
          %v5001 = vmul.f32 %v4960, %v4921
          %v5002 = vmul.f32 %v4964, %v4922
          %v5003 = vmul.f32 %v4968, %v4923
          %v5004 = vmul.f32 %v4972, %v4924
          %v5005 = vmul.f32 %v4976, %v4925
          %v5006 = vmul.f32 %v4980, %v4926
          %v5007 = vmul.f32 %v4984, %v4927
          %v5008 = vmul.f32 %v4988, %v4928
          %v5009 = vmul.f32 %v4992, %v4929
          %v5010 = vadd.f32 %v4898, %v4994
          %v5011 = vadd.f32 %v4899, %v4995
          %v5012 = vadd.f32 %v4900, %v4996
          %v5013 = vadd.f32 %v4901, %v4997
          %v5014 = vadd.f32 %v4902, %v4998
          %v5015 = vadd.f32 %v4903, %v4999
          %v5016 = vadd.f32 %v4904, %v5000
          %v5017 = vadd.f32 %v4905, %v5001
          %v5018 = vadd.f32 %v4906, %v5002
          %v5019 = vadd.f32 %v4907, %v5003
          %v5020 = vadd.f32 %v4908, %v5004
          %v5021 = vadd.f32 %v4909, %v5005
          %v5022 = vadd.f32 %v4910, %v5006
          %v5023 = vadd.f32 %v4911, %v5007
          %v5024 = vadd.f32 %v4912, %v5008
          %v5025 = vadd.f32 %v4913, %v5009
        $region61: #{moe_sparse_forward.1} parent=51 // loop_footer
          %s553 = sadd.s32 1, %s549
        $region62: #{moe_sparse_forward.1} parent=51 // loop_footer_branch
          %548 = sbr.rel target = $region58
        $region63: #{moe_sparse_forward.1} parent=51 // loop_exit
          _
        %v5026 = vld [vmem:[%s6] sm:$0xff]
        %v5027 = vld [vmem:[%s6 + $0x8] sm:$0xff]
        %v5028 = vld [vmem:[%s6 + $0x10] sm:$0xff]
        %v5029 = vld [vmem:[%s6 + $0x18] sm:$0xff]
        %v5030 = vld [vmem:[%s6 + $0x20] sm:$0xff]
        %v5031 = vld [vmem:[%s6 + $0x28] sm:$0xff]
        %v5032 = vld [vmem:[%s6 + $0x30] sm:$0xff]
        %v5033 = vld [vmem:[%s6 + $0x38] sm:$0xff]
        %v5034 = vld [vmem:[%s6 + $0x40] sm:$0xff]
        %v5035 = vld [vmem:[%s6 + $0x48] sm:$0xff]
        %v5036 = vld [vmem:[%s6 + $0x50] sm:$0xff]
        %v5037 = vld [vmem:[%s6 + $0x58] sm:$0xff]
        %v5038 = vld [vmem:[%s6 + $0x60] sm:$0xff]
        %v5039 = vld [vmem:[%s6 + $0x68] sm:$0xff]
        %v5040 = vld [vmem:[%s6 + $0x70] sm:$0xff]
        %v5041 = vld [vmem:[%s6 + $0x78] sm:$0xff]
        %v5042 = vld [vmem:[%s7] sm:$0x1]
        %v5044 = vlaneseq
        %v5045 = vshrl.u32 %v5044, 7
        %v5046 = vsub.s32 0, %v5045
        %v5047 = vrot.slane %v5042, %v5046
        %5049 = vmatprep.subr.mxu0 0.0
        %5050 = vmatpush1.msra.mxu0 %v5026
        %5051 = vmatprep.subr.mxu0 0.0
        %5052 = vmatpush1.msra.mxu0 %v5027
        %5053 = vmatprep.subr.mxu0 0.0
        %5054 = vmatpush1.msra.mxu0 %v5028
        %5055 = vmatprep.subr.mxu0 0.0
        %5056 = vmatpush1.msra.mxu0 %v5029
        %5057 = vmatprep.subr.mxu0 0.0
        %5058 = vmatpush1.msra.mxu0 %v5030
        %5059 = vmatprep.subr.mxu0 0.0
        %5060 = vmatpush1.msra.mxu0 %v5031
        %5061 = vmatprep.subr.mxu0 0.0
        %5062 = vmatpush1.msra.mxu0 %v5032
        %5063 = vmatprep.subr.mxu0 0.0
        %5064 = vmatpush1.msra.mxu0 %v5033
        %5065 = vmatprep.subr.mxu0 0.0
        %5066 = vmatpush1.msra.mxu0 %v5034
        %5067 = vmatprep.subr.mxu0 0.0
        %5068 = vmatpush1.msra.mxu0 %v5035
        %5069 = vmatprep.subr.mxu0 0.0
        %5070 = vmatpush1.msra.mxu0 %v5036
        %5071 = vmatprep.subr.mxu0 0.0
        %5072 = vmatpush1.msra.mxu0 %v5037
        %5073 = vmatprep.subr.mxu0 0.0
        %5074 = vmatpush1.msra.mxu0 %v5038
        %5075 = vmatprep.subr.mxu0 0.0
        %5076 = vmatpush1.msra.mxu0 %v5039
        %5077 = vmatprep.subr.mxu0 0.0
        %5078 = vmatpush1.msra.mxu0 %v5040
        %5079 = vmatprep.subr.mxu0 0.0
        %5080 = vmatpush1.msra.mxu0 %v5041
        %5081 = vmatprep.subr.mxu0 0.0
        %5082 = vmatpush1.msra.mxu0 0.0
        %5083 = vmatprep.subr.mxu0 0.0
        %5084 = vmatpush1.msra.mxu0 0.0
        %5085 = vmatprep.subr.mxu0 0.0
        %5086 = vmatpush1.msra.mxu0 0.0
        %5087 = vmatprep.subr.mxu0 0.0
        %5088 = vmatpush1.msra.mxu0 0.0
        %5089 = vmatprep.subr.mxu0 0.0
        %5090 = vmatpush1.msra.mxu0 0.0
        %5091 = vmatprep.subr.mxu0 0.0
        %5092 = vmatpush1.msra.mxu0 0.0
        %5093 = vmatprep.subr.mxu0 0.0
        %5094 = vmatpush1.msra.mxu0 0.0
        %5095 = vmatprep.subr.mxu0 0.0
        %5096 = vmatpush1.msra.mxu0 0.0
        %5097 = vmatprep.subr.mxu0 0.0
        %5098 = vmatpush1.msra.mxu0 0.0
        %5099 = vmatprep.subr.mxu0 0.0
        %5100 = vmatpush1.msra.mxu0 0.0
        %5101 = vmatprep.subr.mxu0 0.0
        %5102 = vmatpush1.msra.mxu0 0.0
        %5103 = vmatprep.subr.mxu0 0.0
        %5104 = vmatpush1.msra.mxu0 0.0
        %5105 = vmatprep.subr.mxu0 0.0
        %5106 = vmatpush1.msra.mxu0 0.0
        %5107 = vmatprep.subr.mxu0 0.0
        %5108 = vmatpush1.msra.mxu0 0.0
        %5109 = vmatprep.subr.mxu0 0.0
        %5110 = vmatpush1.msra.mxu0 0.0
        %5111 = vmatprep.subr.mxu0 0.0
        %5112 = vmatpush1.msra.mxu0 0.0
        %5113 = vmatprep.mubr.f32.mxu0 0.0
        %5114 = vmatmul.mubr.f32.gmra.mrb[0].mxu0 %v554
        %v5115 = vpop.f32.mrb[0].mxu0
        %v5116 = vadd.f32 %v5047, %v5115
        %v5117 = vpop.f32.mrb[0].mxu0
        %5118 = vmatprep.mubr.f32.mxu0 0.0
        %5119 = vmatmul.mubr.f32.gmra.mrb[0].mxu0 %v555
        %v5120 = vpop.f32.mrb[0].mxu0
        %v5121 = vadd.f32 %v5047, %v5120
        %v5122 = vpop.f32.mrb[0].mxu0
        %5123 = vmatprep.mubr.f32.mxu0 0.0
        %5124 = vmatmul.mubr.f32.gmra.mrb[0].mxu0 %v556
        %v5125 = vpop.f32.mrb[0].mxu0
        %v5126 = vadd.f32 %v5047, %v5125
        %v5127 = vpop.f32.mrb[0].mxu0
        %5128 = vmatprep.mubr.f32.mxu0 0.0
        %5129 = vmatmul.mubr.f32.gmra.mrb[0].mxu0 %v557
        %v5130 = vpop.f32.mrb[0].mxu0
        %v5131 = vadd.f32 %v5047, %v5130
        %v5132 = vpop.f32.mrb[0].mxu0
        %5133 = vmatprep.mubr.f32.mxu0 0.0
        %5134 = vmatmul.mubr.f32.gmra.mrb[0].mxu0 %v558
        %v5135 = vpop.f32.mrb[0].mxu0
        %v5136 = vadd.f32 %v5047, %v5135
        %v5137 = vpop.f32.mrb[0].mxu0
        %5138 = vmatprep.mubr.f32.mxu0 0.0
        %5139 = vmatmul.mubr.f32.gmra.mrb[0].mxu0 %v559
        %v5140 = vpop.f32.mrb[0].mxu0
        %v5141 = vadd.f32 %v5047, %v5140
        %v5142 = vpop.f32.mrb[0].mxu0
        %5143 = vmatprep.mubr.f32.mxu0 0.0
        %5144 = vmatmul.mubr.f32.gmra.mrb[0].mxu0 %v560
        %v5145 = vpop.f32.mrb[0].mxu0
        %v5146 = vadd.f32 %v5047, %v5145
        %v5147 = vpop.f32.mrb[0].mxu0
        %5148 = vmatprep.mubr.f32.mxu0 0.0
        %5149 = vmatmul.mubr.f32.gmra.mrb[0].mxu0 %v561
        %v5150 = vpop.f32.mrb[0].mxu0
        %v5151 = vadd.f32 %v5047, %v5150
        %v5152 = vpop.f32.mrb[0].mxu0
        %5153 = vmatprep.mubr.f32.mxu0 0.0
        %5154 = vmatmul.mubr.f32.gmra.mrb[0].mxu0 %v562
        %v5155 = vpop.f32.mrb[0].mxu0
        %v5156 = vadd.f32 %v5047, %v5155
        %v5157 = vpop.f32.mrb[0].mxu0
        %5158 = vmatprep.mubr.f32.mxu0 0.0
        %5159 = vmatmul.mubr.f32.gmra.mrb[0].mxu0 %v563
        %v5160 = vpop.f32.mrb[0].mxu0
        %v5161 = vadd.f32 %v5047, %v5160
        %v5162 = vpop.f32.mrb[0].mxu0
        %5163 = vmatprep.mubr.f32.mxu0 0.0
        %5164 = vmatmul.mubr.f32.gmra.mrb[0].mxu0 %v564
        %v5165 = vpop.f32.mrb[0].mxu0
        %v5166 = vadd.f32 %v5047, %v5165
        %v5167 = vpop.f32.mrb[0].mxu0
        %5168 = vmatprep.mubr.f32.mxu0 0.0
        %5169 = vmatmul.mubr.f32.gmra.mrb[0].mxu0 %v565
        %v5170 = vpop.f32.mrb[0].mxu0
        %v5171 = vadd.f32 %v5047, %v5170
        %v5172 = vpop.f32.mrb[0].mxu0
        %5173 = vmatprep.mubr.f32.mxu0 0.0
        %5174 = vmatmul.mubr.f32.gmra.mrb[0].mxu0 %v566
        %v5175 = vpop.f32.mrb[0].mxu0
        %v5176 = vadd.f32 %v5047, %v5175
        %v5177 = vpop.f32.mrb[0].mxu0
        %5178 = vmatprep.mubr.f32.mxu0 0.0
        %5179 = vmatmul.mubr.f32.gmra.mrb[0].mxu0 %v567
        %v5180 = vpop.f32.mrb[0].mxu0
        %v5181 = vadd.f32 %v5047, %v5180
        %v5182 = vpop.f32.mrb[0].mxu0
        %5183 = vmatprep.mubr.f32.mxu0 0.0
        %5184 = vmatmul.mubr.f32.gmra.mrb[0].mxu0 %v568
        %v5185 = vpop.f32.mrb[0].mxu0
        %v5186 = vadd.f32 %v5047, %v5185
        %v5187 = vpop.f32.mrb[0].mxu0
        %5188 = vmatprep.mubr.f32.mxu0 0.0
        %5189 = vmatmul.mubr.f32.gmra.mrb[0].mxu0 %v569
        %v5190 = vpop.f32.mrb[0].mxu0
        %v5191 = vadd.f32 %v5047, %v5190
        %v5192 = vpop.f32.mrb[0].mxu0
        %5193 = vdwg.mxu0
        %vm5194 = vcmask 130048
        %5195 = vst.msk [vmem:[%s322] sm:$0xff] %vm5194, %v5116
        %5196 = vst.msk [vmem:[%s322 + $0x8] sm:$0xff] %vm5194, %v5121
        %5197 = vst.msk [vmem:[%s322 + $0x10] sm:$0xff] %vm5194, %v5126
        %5198 = vst.msk [vmem:[%s322 + $0x18] sm:$0xff] %vm5194, %v5131
        %5199 = vst.msk [vmem:[%s322 + $0x20] sm:$0xff] %vm5194, %v5136
        %5200 = vst.msk [vmem:[%s322 + $0x28] sm:$0xff] %vm5194, %v5141
        %5201 = vst.msk [vmem:[%s322 + $0x30] sm:$0xff] %vm5194, %v5146
        %5202 = vst.msk [vmem:[%s322 + $0x38] sm:$0xff] %vm5194, %v5151
        %5203 = vst.msk [vmem:[%s322 + $0x40] sm:$0xff] %vm5194, %v5156
        %5204 = vst.msk [vmem:[%s322 + $0x48] sm:$0xff] %vm5194, %v5161
        %5205 = vst.msk [vmem:[%s322 + $0x50] sm:$0xff] %vm5194, %v5166
        %5206 = vst.msk [vmem:[%s322 + $0x58] sm:$0xff] %vm5194, %v5171
        %5207 = vst.msk [vmem:[%s322 + $0x60] sm:$0xff] %vm5194, %v5176
        %5208 = vst.msk [vmem:[%s322 + $0x68] sm:$0xff] %vm5194, %v5181
        %5209 = vst.msk [vmem:[%s322 + $0x70] sm:$0xff] %vm5194, %v5186
        %5210 = vst.msk [vmem:[%s322 + $0x78] sm:$0xff] %vm5194, %v5191
        %s5211 = smul.u32 16, %s20
        %p5212 = scmp.lt.s32.totalorder %s5211, 31
        %s5213 = scalar_select %p5212, %s5211, 31
        %s5214 = smul.addr %s5213, 8
        %s5215 = scalar_lea.vmem %s8, %s5214
        // Predicated region
        $region64: #{moe_sparse_forward.1} parent=51 // pred_check
          %p5216 = pneg %p211
        $region65: #{moe_sparse_forward.1} parent=51 // pred_check_branch
          %5218 = sbr.rel (%p5216) target = $region67
        $region66: #{moe_sparse_forward.1} parent=51 // pred_region
          %s5219 = smul.u32 16, %s20
        $region67: #{moe_sparse_forward.1} parent=51 // pred_fallthru
          _
      $region52: #{moe_sparse_forward.1} parent=5 // pred_fallthru
        _
      %p5220 = scmp.le.s32.totalorder 2, %s15
      // Predicated region
      $region68: #{moe_sparse_forward.1} parent=5 // pred_check
        %p5221 = pneg %p5220
      $region69: #{moe_sparse_forward.1} parent=5 // pred_check_branch
        %5223 = sbr.rel (%p5221) target = $region71
      $region70: #{moe_sparse_forward.1} parent=5 // pred_region
        %s5224 = ssub.s32 %s15, 2
        // Predicated region
        $region72: #{moe_sparse_forward.1} parent=70 // pred_check
          %p5225 = pneg %p217
        $region73: #{moe_sparse_forward.1} parent=70 // pred_check_branch
          %5227 = sbr.rel (%p5225) target = $region75
        $region74: #{moe_sparse_forward.1} parent=70 // pred_region
          %s5228 = smul.u32 16, %s21
          %p5229 = scmp.lt.s32.totalorder %s5228, 31
          %s5230 = scalar_select %p5229, %s5228, 31
          %s5231 = smul.addr %s5230, 8
          %s5232 = scalar_lea.vmem %s8, %s5231
        $region75: #{moe_sparse_forward.1} parent=70 // pred_fallthru
          _
      $region71: #{moe_sparse_forward.1} parent=5 // pred_fallthru
        _
    $region6: #{moe_sparse_forward.1} parent=1 // loop_footer
      %s19 = sadd.s32 1, %s15
    $region7: #{moe_sparse_forward.1} parent=1 // loop_footer_branch
      %14 = sbr.rel target = $region3
    $region8: #{moe_sparse_forward.1} parent=1 // loop_exit
      _
    %5233 = vsyncpa [#allocation4], 1
    %s5234 = scalar_lea.sflag [#allocation4], 1
    %5235 = vsyncpa %s5234, 1

</llo_original>
